<compile_context>
chip_gen: v6e
topology: v6e:2x2x1
jax: 0.10.0
libtpu: 0.0.40
codegen_flags: <defaults>
</compile_context>

<pallas_src>
import jax
import jax.numpy as jnp
from jax import lax
from jax.experimental import pallas as pl
from jax.experimental.pallas import tpu as pltpu


def _round_up(n, m):
    return ((n + m - 1) // m) * m


def _make_fused_kernel(T, B_pad, D_pad, H, Lp, n_real, eps=1e-5):
    """Single kernel: 2-layer LSTM recurrence + skip sum + ByolMlp head."""

    def kernel(x_ref, wcat0_ref, b0_ref, wcat1_ref, b1_ref,
               w1_ref, gamma_ref, beta_ref, w2_ref, b2_ref, mask_ref,
               agg_ref, preds_ref):
        wcat0 = wcat0_ref[...]                                   # (D_pad+H, 4H)
        wcat1 = wcat1_ref[...]                                   # (2H, 4H)
        # Hoist the bias broadcasts out of the recurrence loop (no CSE inside loop).
        bias0 = jnp.broadcast_to(b0_ref[...], (B_pad, 4 * H))
        bias1 = jnp.broadcast_to(b1_ref[...], (B_pad, 4 * H))

        def cell(xin, c, wcat, bias):
            # Fused gate matmul: one MXU contraction over (D_pad+H) or (2H).
            g = jnp.dot(xin, wcat, preferred_element_type=jnp.float32) + bias
            i = jax.nn.sigmoid(g[:, 0:H])
            f = jax.nn.sigmoid(g[:, H:2 * H])
            gg = jnp.tanh(g[:, 2 * H:3 * H])
            o = jax.nn.sigmoid(g[:, 3 * H:4 * H])
            c_new = f * c + i * gg
            h_new = o * jnp.tanh(c_new)
            return h_new, c_new

        def step(t, carry):
            h0, c0, h1, c1 = carry
            x_t = x_ref[t]                                       # (B_pad, D_pad)
            h0, c0 = cell(jnp.concatenate([x_t, h0], axis=-1), c0, wcat0, bias0)
            h1, c1 = cell(jnp.concatenate([h0, h1], axis=-1), c1, wcat1, bias1)
            agg_ref[t] = h0 + h1                                 # skip connection (VMEM write)
            return h0, c0, h1, c1

        z0 = jnp.zeros((B_pad, H), jnp.float32)
        lax.fori_loop(0, T, step, (z0, z0, z0, z0), unroll=True)

        # ---- ByolMlp head: Linear(no bias) -> BN (train-mode, masked stats) -> ReLU -> Linear
        agg_flat = agg_ref[...].reshape(T * B_pad, H)            # still in VMEM
        mask = mask_ref[...]                                     # (T*B_pad, 1): 1=real row, 0=pad
        z = jnp.dot(agg_flat, w1_ref[...], preferred_element_type=jnp.float32)
        inv_n = 1.0 / float(n_real)
        mean = jnp.sum(z * mask, axis=0, keepdims=True) * inv_n
        d = (z - mean) * mask
        var = jnp.sum(d * d, axis=0, keepdims=True) * inv_n      # biased variance (PyTorch BN)
        zn = (z - mean) * lax.rsqrt(var + eps)
        zn = zn * gamma_ref[...] + beta_ref[...]
        a = jnp.maximum(zn, 0.0)
        preds = jnp.dot(a, w2_ref[...], preferred_element_type=jnp.float32) + b2_ref[...]
        preds_ref[...] = preds.astype(preds_ref.dtype)           # lane-dense (Lp = multiple of 128)

    return kernel


def skip_connect_forward_agg(x, params):
    T, B, D = x.shape
    H = params["whh0_t"].shape[0]
    L = params["w2_t"].shape[1]

    B_pad = _round_up(B, 8)           # sublane alignment
    D_pad = _round_up(D, 128)         # lane alignment for the fused [x, h] concat
    Lp = _round_up(L, 128)            # lane-dense output stores
    N_pad = T * B_pad

    # Zero-padded inputs / fused weights (host-side, one-time).
    x_pad = jnp.zeros((T, B_pad, D_pad), jnp.float32).at[:, :B, :D].set(x)

    wcat0 = jnp.zeros((D_pad + H, 4 * H), jnp.float32)
    wcat0 = wcat0.at[:D].set(params["wih0_t"]).at[D_pad:].set(params["whh0_t"])
    wcat1 = jnp.concatenate([params["wih1_t"], params["whh1_t"]], axis=0)   # (2H, 4H)

    w2p = jnp.zeros((H, Lp), jnp.float32).at[:, :L].set(params["w2_t"])
    b2p = jnp.zeros((1, Lp), jnp.float32).at[:, :L].set(params["b2"])

    # Row mask for BatchNorm statistics: padded batch rows must not contribute.
    row_mask = (jnp.arange(B_pad) < B).astype(jnp.float32)                  # (B_pad,)
    mask = jnp.tile(row_mask, T).reshape(N_pad, 1)

    kernel = _make_fused_kernel(T, B_pad, D_pad, H, Lp, n_real=T * B)

    def full_spec(shape):
        nd = len(shape)
        return pl.BlockSpec(shape, lambda i, _nd=nd: (0,) * _nd)

    agg_pad, preds_pad = pl.pallas_call(
        kernel,
        out_shape=(jax.ShapeDtypeStruct((T, B_pad, H), jnp.float32),
                   jax.ShapeDtypeStruct((N_pad, Lp), jnp.float32)),
        grid=(1,),
        in_specs=[
            full_spec((T, B_pad, D_pad)),
            full_spec((D_pad + H, 4 * H)),
            full_spec((1, 4 * H)),
            full_spec((2 * H, 4 * H)),
            full_spec((1, 4 * H)),
            full_spec((H, H)),
            full_spec((1, H)),
            full_spec((1, H)),
            full_spec((H, Lp)),
            full_spec((1, Lp)),
            full_spec((N_pad, 1)),
        ],
        out_specs=(full_spec((T, B_pad, H)), full_spec((N_pad, Lp))),
        compiler_params=pltpu.CompilerParams(
            dimension_semantics=("arbitrary",),      # sequential recurrence; never "parallel"
            vmem_limit_bytes=32 * 1024 * 1024,
        ),
    )(x_pad, wcat0, params["b0"], wcat1, params["b1"],
      params["w1_t"], params["gamma"], params["beta"], w2p, b2p, mask)

    agg = agg_pad[:, :B, :]
    preds = preds_pad.reshape(T, B_pad, Lp)[:, :B, :L]
    return preds, agg


def init_params(key, D, H, L):
    """Deterministic synthetic params (PyTorch-style uniform(-1/sqrt(H), 1/sqrt(H)))."""
    ks = jax.random.split(key, 9)
    s = 1.0 / (H ** 0.5)
    u = lambda k, shape: jax.random.uniform(k, shape, jnp.float32, -s, s)
    return {
        # LSTMCell layer 0 (weights pre-transposed for x @ W^T convention)
        "wih0_t": u(ks[0], (D, 4 * H)),
        "whh0_t": u(ks[1], (H, 4 * H)),
        "b0": u(ks[2], (1, 4 * H)),          # b_ih + b_hh folded
        # LSTMCell layer 1
        "wih1_t": u(ks[3], (H, 4 * H)),
        "whh1_t": u(ks[4], (H, 4 * H)),
        "b1": u(ks[5], (1, 4 * H)),
        # ByolMlpModel head: Linear(H,H,bias=False) -> BN -> ReLU -> Linear(H,L)
        "w1_t": u(ks[6], (H, H)),
        "gamma": jnp.ones((1, H), jnp.float32),
        "beta": jnp.zeros((1, H), jnp.float32),
        "w2_t": u(ks[7], (H, L)),
        "b2": u(ks[8], (1, L)),
    }


def reference(x, params):
    """Pure-JAX reference matching the PyTorch forward semantics (unfused weights)."""
    T, B, D = x.shape
    H = params["whh0_t"].shape[0]

    def run_layer(inp, wih_t, whh_t, b):
        h = jnp.zeros((B, H), jnp.float32)
        c = jnp.zeros((B, H), jnp.float32)
        outs = []
        for t in range(T):
            gates = inp[t] @ wih_t + h @ whh_t + b
            i = jax.nn.sigmoid(gates[:, :H])
            f = jax.nn.sigmoid(gates[:, H:2 * H])
            g = jnp.tanh(gates[:, 2 * H:3 * H])
            o = jax.nn.sigmoid(gates[:, 3 * H:])
            c = f * c + i * g
            h = o * jnp.tanh(c)
            outs.append(h)
        return jnp.stack(outs, axis=0)

    y0 = run_layer(x, params["wih0_t"], params["whh0_t"], params["b0"])
    y1 = run_layer(y0, params["wih1_t"], params["whh1_t"], params["b1"])
    agg = y0 + y1
    z = agg.reshape(T * B, H) @ params["w1_t"]
    mean = z.mean(axis=0, keepdims=True)
    var = ((z - mean) ** 2).mean(axis=0, keepdims=True)
    zn = (z - mean) / jnp.sqrt(var + 1e-5) * params["gamma"] + params["beta"]
    a = jnp.maximum(zn, 0.0)
    preds = (a @ params["w2_t"] + params["b2"]).reshape(T, B, -1)
    return preds, agg


if __name__ == "__main__":
    # batch_T, batch_B, input_size, hidden_sizes, latent_size
    # H chosen as 128 so gate slices / head matmuls sit on lane-tile boundaries.
    T, B, D, H, L = 8, 4, 16, 128, 16

    key = jax.random.PRNGKey(0)
    kx, kp = jax.random.split(key)
    x = jax.random.normal(kx, (T, B, D), jnp.float32)
    params = init_params(kp, D, H, L)

    preds, agg = skip_connect_forward_agg(x, params)
    preds = jax.block_until_ready(preds)
    agg = jax.block_until_ready(agg)

    preds_ref, agg_ref = reference(x, params)
    assert preds.shape == (T, B, L) and agg.shape == (T, B, H)
    assert jnp.allclose(agg, agg_ref, rtol=1e-3, atol=1e-3)
    assert jnp.allclose(preds, preds_ref, rtol=1e-3, atol=1e-3)

    print("KERNEL_OK")
</pallas_src>

<mosaic_0001>
module attributes {stable_mosaic.version = 11 : i64} {
  func.func @kernel(%arg0: i32, %arg1: memref<8x8x128xf32, #tpu.memory_space<vmem>>, %arg2: memref<256x512xf32, #tpu.memory_space<vmem>>, %arg3: memref<1x512xf32, #tpu.memory_space<vmem>>, %arg4: memref<256x512xf32, #tpu.memory_space<vmem>>, %arg5: memref<1x512xf32, #tpu.memory_space<vmem>>, %arg6: memref<128x128xf32, #tpu.memory_space<vmem>>, %arg7: memref<1x128xf32, #tpu.memory_space<vmem>>, %arg8: memref<1x128xf32, #tpu.memory_space<vmem>>, %arg9: memref<128x128xf32, #tpu.memory_space<vmem>>, %arg10: memref<1x128xf32, #tpu.memory_space<vmem>>, %arg11: memref<64x1xf32, #tpu.memory_space<vmem>>, %arg12: memref<8x8x128xf32, #tpu.memory_space<vmem>>, %arg13: memref<64x128xf32, #tpu.memory_space<vmem>>) attributes {dimension_semantics = [#tpu.dimension_semantics<arbitrary>], iteration_bounds = array<i64: 1>, scalar_prefetch = 0 : i64, scratch_operands = 0 : i64, tpu.core_type = #tpu.core_type<tc>, window_params = [{pipeline_mode = #tpu.pipeline_mode<synchronous>, transform_indices = @transform_0, window_bounds = array<i64: 8, 8, 128>}, {pipeline_mode = #tpu.pipeline_mode<synchronous>, transform_indices = @transform_1, window_bounds = array<i64: 256, 512>}, {pipeline_mode = #tpu.pipeline_mode<synchronous>, transform_indices = @transform_2, window_bounds = array<i64: 1, 512>}, {pipeline_mode = #tpu.pipeline_mode<synchronous>, transform_indices = @transform_3, window_bounds = array<i64: 256, 512>}, {pipeline_mode = #tpu.pipeline_mode<synchronous>, transform_indices = @transform_4, window_bounds = array<i64: 1, 512>}, {pipeline_mode = #tpu.pipeline_mode<synchronous>, transform_indices = @transform_5, window_bounds = array<i64: 128, 128>}, {pipeline_mode = #tpu.pipeline_mode<synchronous>, transform_indices = @transform_6, window_bounds = array<i64: 1, 128>}, {pipeline_mode = #tpu.pipeline_mode<synchronous>, transform_indices = @transform_7, window_bounds = array<i64: 1, 128>}, {pipeline_mode = #tpu.pipeline_mode<synchronous>, transform_indices = @transform_8, window_bounds = array<i64: 128, 128>}, {pipeline_mode = #tpu.pipeline_mode<synchronous>, transform_indices = @transform_9, window_bounds = array<i64: 1, 128>}, {pipeline_mode = #tpu.pipeline_mode<synchronous>, transform_indices = @transform_10, window_bounds = array<i64: 64, 1>}, {pipeline_mode = #tpu.pipeline_mode<synchronous>, transform_indices = @transform_11, window_bounds = array<i64: 8, 8, 128>}, {pipeline_mode = #tpu.pipeline_mode<synchronous>, transform_indices = @transform_12, window_bounds = array<i64: 64, 128>}]} {
    %c0 = arith.constant 0 : index
    %c0_0 = arith.constant 0 : index
    %0 = vector.load %arg2[%c0, %c0_0] : memref<256x512xf32, #tpu.memory_space<vmem>>, vector<256x512xf32>
    %c0_1 = arith.constant 0 : index
    %c0_2 = arith.constant 0 : index
    %1 = vector.load %arg4[%c0_1, %c0_2] : memref<256x512xf32, #tpu.memory_space<vmem>>, vector<256x512xf32>
    %c0_3 = arith.constant 0 : index
    %c0_4 = arith.constant 0 : index
    %2 = vector.load %arg3[%c0_3, %c0_4] : memref<1x512xf32, #tpu.memory_space<vmem>>, vector<1x512xf32>
    %3 = vector.shape_cast %2 : vector<1x512xf32> to vector<1x512xf32>
    %4 = vector.broadcast %3 : vector<1x512xf32> to vector<8x512xf32>
    %c0_5 = arith.constant 0 : index
    %c0_6 = arith.constant 0 : index
    %5 = vector.load %arg5[%c0_5, %c0_6] : memref<1x512xf32, #tpu.memory_space<vmem>>, vector<1x512xf32>
    %6 = vector.shape_cast %5 : vector<1x512xf32> to vector<1x512xf32>
    %7 = vector.broadcast %6 : vector<1x512xf32> to vector<8x512xf32>
    %cst = arith.constant 0.000000e+00 : f32
    %8 = vector.broadcast %cst : f32 to vector<8x128xf32>
    %c0_i32 = arith.constant 0 : i32
    %9 = arith.index_cast %c0_i32 : i32 to index
    %c0_7 = arith.constant 0 : index
    %c0_8 = arith.constant 0 : index
    %10 = vector.load %arg1[%9, %c0_7, %c0_8] : memref<8x8x128xf32, #tpu.memory_space<vmem>>, vector<1x8x128xf32>
    %11 = vector.shape_cast %10 : vector<1x8x128xf32> to vector<8x128xf32>
    %12 = tpu.concatenate %11, %8 in 1 : vector<8x128xf32>, vector<8x128xf32> -> vector<8x256xf32>
    %cst_9 = arith.constant dense<0.000000e+00> : vector<8x512xf32>
    %13 = tpu.matmul %12, %0, %cst_9 {dimension_numbers = #tpu.dot_dimension_numbers<[1], [0], [0], [1], [0, 0, 1, 1], [], []>} : vector<8x256xf32>, vector<256x512xf32>, vector<8x512xf32> -> vector<8x512xf32>
    %14 = arith.addf %13, %4 : vector<8x512xf32>
    %15 = vector.extract_strided_slice %14 {offsets = [0, 0], sizes = [8, 128], strides = [1, 1]} : vector<8x512xf32> to vector<8x128xf32>
    %16 = arith.negf %15 : vector<8x128xf32>
    %17 = math.exp %16 : vector<8x128xf32>
    %cst_10 = arith.constant 1.000000e+00 : f32
    %18 = vector.broadcast %cst_10 : f32 to vector<8x128xf32>
    %19 = arith.addf %18, %17 : vector<8x128xf32>
    %20 = arith.divf %18, %19 : vector<8x128xf32>
    %21 = vector.extract_strided_slice %14 {offsets = [0, 128], sizes = [8, 128], strides = [1, 1]} : vector<8x512xf32> to vector<8x128xf32>
    %22 = arith.negf %21 : vector<8x128xf32>
    %23 = math.exp %22 : vector<8x128xf32>
    %cst_11 = arith.constant 1.000000e+00 : f32
    %24 = vector.broadcast %cst_11 : f32 to vector<8x128xf32>
    %25 = arith.addf %24, %23 : vector<8x128xf32>
    %26 = arith.divf %24, %25 : vector<8x128xf32>
    %27 = vector.extract_strided_slice %14 {offsets = [0, 256], sizes = [8, 128], strides = [1, 1]} : vector<8x512xf32> to vector<8x128xf32>
    %28 = math.tanh %27 : vector<8x128xf32>
    %29 = vector.extract_strided_slice %14 {offsets = [0, 384], sizes = [8, 128], strides = [1, 1]} : vector<8x512xf32> to vector<8x128xf32>
    %30 = arith.negf %29 : vector<8x128xf32>
    %31 = math.exp %30 : vector<8x128xf32>
    %cst_12 = arith.constant 1.000000e+00 : f32
    %32 = vector.broadcast %cst_12 : f32 to vector<8x128xf32>
    %33 = arith.addf %32, %31 : vector<8x128xf32>
    %34 = arith.divf %32, %33 : vector<8x128xf32>
    %35 = arith.mulf %26, %8 : vector<8x128xf32>
    %36 = arith.mulf %20, %28 : vector<8x128xf32>
    %37 = arith.addf %35, %36 : vector<8x128xf32>
    %38 = math.tanh %37 : vector<8x128xf32>
    %39 = arith.mulf %34, %38 : vector<8x128xf32>
    %40 = tpu.concatenate %39, %8 in 1 : vector<8x128xf32>, vector<8x128xf32> -> vector<8x256xf32>
    %cst_13 = arith.constant dense<0.000000e+00> : vector<8x512xf32>
    %41 = tpu.matmul %40, %1, %cst_13 {dimension_numbers = #tpu.dot_dimension_numbers<[1], [0], [0], [1], [0, 0, 1, 1], [], []>} : vector<8x256xf32>, vector<256x512xf32>, vector<8x512xf32> -> vector<8x512xf32>
    %42 = arith.addf %41, %7 : vector<8x512xf32>
    %43 = vector.extract_strided_slice %42 {offsets = [0, 0], sizes = [8, 128], strides = [1, 1]} : vector<8x512xf32> to vector<8x128xf32>
    %44 = arith.negf %43 : vector<8x128xf32>
    %45 = math.exp %44 : vector<8x128xf32>
    %cst_14 = arith.constant 1.000000e+00 : f32
    %46 = vector.broadcast %cst_14 : f32 to vector<8x128xf32>
    %47 = arith.addf %46, %45 : vector<8x128xf32>
    %48 = arith.divf %46, %47 : vector<8x128xf32>
    %49 = vector.extract_strided_slice %42 {offsets = [0, 128], sizes = [8, 128], strides = [1, 1]} : vector<8x512xf32> to vector<8x128xf32>
    %50 = arith.negf %49 : vector<8x128xf32>
    %51 = math.exp %50 : vector<8x128xf32>
    %cst_15 = arith.constant 1.000000e+00 : f32
    %52 = vector.broadcast %cst_15 : f32 to vector<8x128xf32>
    %53 = arith.addf %52, %51 : vector<8x128xf32>
    %54 = arith.divf %52, %53 : vector<8x128xf32>
    %55 = vector.extract_strided_slice %42 {offsets = [0, 256], sizes = [8, 128], strides = [1, 1]} : vector<8x512xf32> to vector<8x128xf32>
    %56 = math.tanh %55 : vector<8x128xf32>
    %57 = vector.extract_strided_slice %42 {offsets = [0, 384], sizes = [8, 128], strides = [1, 1]} : vector<8x512xf32> to vector<8x128xf32>
    %58 = arith.negf %57 : vector<8x128xf32>
    %59 = math.exp %58 : vector<8x128xf32>
    %cst_16 = arith.constant 1.000000e+00 : f32
    %60 = vector.broadcast %cst_16 : f32 to vector<8x128xf32>
    %61 = arith.addf %60, %59 : vector<8x128xf32>
    %62 = arith.divf %60, %61 : vector<8x128xf32>
    %63 = arith.mulf %54, %8 : vector<8x128xf32>
    %64 = arith.mulf %48, %56 : vector<8x128xf32>
    %65 = arith.addf %63, %64 : vector<8x128xf32>
    %66 = math.tanh %65 : vector<8x128xf32>
    %67 = arith.mulf %62, %66 : vector<8x128xf32>
    %68 = arith.addf %39, %67 : vector<8x128xf32>
    %69 = arith.index_cast %c0_i32 : i32 to index
    %c0_17 = arith.constant 0 : index
    %c0_18 = arith.constant 0 : index
    %70 = vector.load %arg12[%69, %c0_17, %c0_18] : memref<8x8x128xf32, #tpu.memory_space<vmem>>, vector<1x8x128xf32>
    %71 = vector.shape_cast %70 : vector<1x8x128xf32> to vector<8x128xf32>
    %72 = vector.shape_cast %68 : vector<8x128xf32> to vector<1x8x128xf32>
    tpu.vector_store %arg12[%69, %c0_17, %c0_18], %72 {strides = array<i32>} : memref<8x8x128xf32, #tpu.memory_space<vmem>>, vector<1x8x128xf32>,
    %c1_i32 = arith.constant 1 : i32
    %73 = arith.index_cast %c1_i32 : i32 to index
    %c0_19 = arith.constant 0 : index
    %c0_20 = arith.constant 0 : index
    %74 = vector.load %arg1[%73, %c0_19, %c0_20] : memref<8x8x128xf32, #tpu.memory_space<vmem>>, vector<1x8x128xf32>
    %75 = vector.shape_cast %74 : vector<1x8x128xf32> to vector<8x128xf32>
    %76 = tpu.concatenate %75, %39 in 1 : vector<8x128xf32>, vector<8x128xf32> -> vector<8x256xf32>
    %cst_21 = arith.constant dense<0.000000e+00> : vector<8x512xf32>
    %77 = tpu.matmul %76, %0, %cst_21 {dimension_numbers = #tpu.dot_dimension_numbers<[1], [0], [0], [1], [0, 0, 1, 1], [], []>} : vector<8x256xf32>, vector<256x512xf32>, vector<8x512xf32> -> vector<8x512xf32>
    %78 = arith.addf %77, %4 : vector<8x512xf32>
    %79 = vector.extract_strided_slice %78 {offsets = [0, 0], sizes = [8, 128], strides = [1, 1]} : vector<8x512xf32> to vector<8x128xf32>
    %80 = arith.negf %79 : vector<8x128xf32>
    %81 = math.exp %80 : vector<8x128xf32>
    %cst_22 = arith.constant 1.000000e+00 : f32
    %82 = vector.broadcast %cst_22 : f32 to vector<8x128xf32>
    %83 = arith.addf %82, %81 : vector<8x128xf32>
    %84 = arith.divf %82, %83 : vector<8x128xf32>
    %85 = vector.extract_strided_slice %78 {offsets = [0, 128], sizes = [8, 128], strides = [1, 1]} : vector<8x512xf32> to vector<8x128xf32>
    %86 = arith.negf %85 : vector<8x128xf32>
    %87 = math.exp %86 : vector<8x128xf32>
    %cst_23 = arith.constant 1.000000e+00 : f32
    %88 = vector.broadcast %cst_23 : f32 to vector<8x128xf32>
    %89 = arith.addf %88, %87 : vector<8x128xf32>
    %90 = arith.divf %88, %89 : vector<8x128xf32>
    %91 = vector.extract_strided_slice %78 {offsets = [0, 256], sizes = [8, 128], strides = [1, 1]} : vector<8x512xf32> to vector<8x128xf32>
    %92 = math.tanh %91 : vector<8x128xf32>
    %93 = vector.extract_strided_slice %78 {offsets = [0, 384], sizes = [8, 128], strides = [1, 1]} : vector<8x512xf32> to vector<8x128xf32>
    %94 = arith.negf %93 : vector<8x128xf32>
    %95 = math.exp %94 : vector<8x128xf32>
    %cst_24 = arith.constant 1.000000e+00 : f32
    %96 = vector.broadcast %cst_24 : f32 to vector<8x128xf32>
    %97 = arith.addf %96, %95 : vector<8x128xf32>
    %98 = arith.divf %96, %97 : vector<8x128xf32>
    %99 = arith.mulf %90, %37 : vector<8x128xf32>
    %100 = arith.mulf %84, %92 : vector<8x128xf32>
    %101 = arith.addf %99, %100 : vector<8x128xf32>
    %102 = math.tanh %101 : vector<8x128xf32>
    %103 = arith.mulf %98, %102 : vector<8x128xf32>
    %104 = tpu.concatenate %103, %67 in 1 : vector<8x128xf32>, vector<8x128xf32> -> vector<8x256xf32>
    %cst_25 = arith.constant dense<0.000000e+00> : vector<8x512xf32>
    %105 = tpu.matmul %104, %1, %cst_25 {dimension_numbers = #tpu.dot_dimension_numbers<[1], [0], [0], [1], [0, 0, 1, 1], [], []>} : vector<8x256xf32>, vector<256x512xf32>, vector<8x512xf32> -> vector<8x512xf32>
    %106 = arith.addf %105, %7 : vector<8x512xf32>
    %107 = vector.extract_strided_slice %106 {offsets = [0, 0], sizes = [8, 128], strides = [1, 1]} : vector<8x512xf32> to vector<8x128xf32>
    %108 = arith.negf %107 : vector<8x128xf32>
    %109 = math.exp %108 : vector<8x128xf32>
    %cst_26 = arith.constant 1.000000e+00 : f32
    %110 = vector.broadcast %cst_26 : f32 to vector<8x128xf32>
    %111 = arith.addf %110, %109 : vector<8x128xf32>
    %112 = arith.divf %110, %111 : vector<8x128xf32>
    %113 = vector.extract_strided_slice %106 {offsets = [0, 128], sizes = [8, 128], strides = [1, 1]} : vector<8x512xf32> to vector<8x128xf32>
    %114 = arith.negf %113 : vector<8x128xf32>
    %115 = math.exp %114 : vector<8x128xf32>
    %cst_27 = arith.constant 1.000000e+00 : f32
    %116 = vector.broadcast %cst_27 : f32 to vector<8x128xf32>
    %117 = arith.addf %116, %115 : vector<8x128xf32>
    %118 = arith.divf %116, %117 : vector<8x128xf32>
    %119 = vector.extract_strided_slice %106 {offsets = [0, 256], sizes = [8, 128], strides = [1, 1]} : vector<8x512xf32> to vector<8x128xf32>
    %120 = math.tanh %119 : vector<8x128xf32>
    %121 = vector.extract_strided_slice %106 {offsets = [0, 384], sizes = [8, 128], strides = [1, 1]} : vector<8x512xf32> to vector<8x128xf32>
    %122 = arith.negf %121 : vector<8x128xf32>
    %123 = math.exp %122 : vector<8x128xf32>
    %cst_28 = arith.constant 1.000000e+00 : f32
    %124 = vector.broadcast %cst_28 : f32 to vector<8x128xf32>
    %125 = arith.addf %124, %123 : vector<8x128xf32>
    %126 = arith.divf %124, %125 : vector<8x128xf32>
    %127 = arith.mulf %118, %65 : vector<8x128xf32>
    %128 = arith.mulf %112, %120 : vector<8x128xf32>
    %129 = arith.addf %127, %128 : vector<8x128xf32>
    %130 = math.tanh %129 : vector<8x128xf32>
    %131 = arith.mulf %126, %130 : vector<8x128xf32>
    %132 = arith.addf %103, %131 : vector<8x128xf32>
    %133 = arith.index_cast %c1_i32 : i32 to index
    %c0_29 = arith.constant 0 : index
    %c0_30 = arith.constant 0 : index
    %134 = vector.load %arg12[%133, %c0_29, %c0_30] : memref<8x8x128xf32, #tpu.memory_space<vmem>>, vector<1x8x128xf32>
    %135 = vector.shape_cast %134 : vector<1x8x128xf32> to vector<8x128xf32>
    %136 = vector.shape_cast %132 : vector<8x128xf32> to vector<1x8x128xf32>
    tpu.vector_store %arg12[%133, %c0_29, %c0_30], %136 {strides = array<i32>} : memref<8x8x128xf32, #tpu.memory_space<vmem>>, vector<1x8x128xf32>,
    %c2_i32 = arith.constant 2 : i32
    %137 = arith.index_cast %c2_i32 : i32 to index
    %c0_31 = arith.constant 0 : index
    %c0_32 = arith.constant 0 : index
    %138 = vector.load %arg1[%137, %c0_31, %c0_32] : memref<8x8x128xf32, #tpu.memory_space<vmem>>, vector<1x8x128xf32>
    %139 = vector.shape_cast %138 : vector<1x8x128xf32> to vector<8x128xf32>
    %140 = tpu.concatenate %139, %103 in 1 : vector<8x128xf32>, vector<8x128xf32> -> vector<8x256xf32>
    %cst_33 = arith.constant dense<0.000000e+00> : vector<8x512xf32>
    %141 = tpu.matmul %140, %0, %cst_33 {dimension_numbers = #tpu.dot_dimension_numbers<[1], [0], [0], [1], [0, 0, 1, 1], [], []>} : vector<8x256xf32>, vector<256x512xf32>, vector<8x512xf32> -> vector<8x512xf32>
    %142 = arith.addf %141, %4 : vector<8x512xf32>
    %143 = vector.extract_strided_slice %142 {offsets = [0, 0], sizes = [8, 128], strides = [1, 1]} : vector<8x512xf32> to vector<8x128xf32>
    %144 = arith.negf %143 : vector<8x128xf32>
    %145 = math.exp %144 : vector<8x128xf32>
    %cst_34 = arith.constant 1.000000e+00 : f32
    %146 = vector.broadcast %cst_34 : f32 to vector<8x128xf32>
    %147 = arith.addf %146, %145 : vector<8x128xf32>
    %148 = arith.divf %146, %147 : vector<8x128xf32>
    %149 = vector.extract_strided_slice %142 {offsets = [0, 128], sizes = [8, 128], strides = [1, 1]} : vector<8x512xf32> to vector<8x128xf32>
    %150 = arith.negf %149 : vector<8x128xf32>
    %151 = math.exp %150 : vector<8x128xf32>
    %cst_35 = arith.constant 1.000000e+00 : f32
    %152 = vector.broadcast %cst_35 : f32 to vector<8x128xf32>
    %153 = arith.addf %152, %151 : vector<8x128xf32>
    %154 = arith.divf %152, %153 : vector<8x128xf32>
    %155 = vector.extract_strided_slice %142 {offsets = [0, 256], sizes = [8, 128], strides = [1, 1]} : vector<8x512xf32> to vector<8x128xf32>
    %156 = math.tanh %155 : vector<8x128xf32>
    %157 = vector.extract_strided_slice %142 {offsets = [0, 384], sizes = [8, 128], strides = [1, 1]} : vector<8x512xf32> to vector<8x128xf32>
    %158 = arith.negf %157 : vector<8x128xf32>
    %159 = math.exp %158 : vector<8x128xf32>
    %cst_36 = arith.constant 1.000000e+00 : f32
    %160 = vector.broadcast %cst_36 : f32 to vector<8x128xf32>
    %161 = arith.addf %160, %159 : vector<8x128xf32>
    %162 = arith.divf %160, %161 : vector<8x128xf32>
    %163 = arith.mulf %154, %101 : vector<8x128xf32>
    %164 = arith.mulf %148, %156 : vector<8x128xf32>
    %165 = arith.addf %163, %164 : vector<8x128xf32>
    %166 = math.tanh %165 : vector<8x128xf32>
    %167 = arith.mulf %162, %166 : vector<8x128xf32>
    %168 = tpu.concatenate %167, %131 in 1 : vector<8x128xf32>, vector<8x128xf32> -> vector<8x256xf32>
    %cst_37 = arith.constant dense<0.000000e+00> : vector<8x512xf32>
    %169 = tpu.matmul %168, %1, %cst_37 {dimension_numbers = #tpu.dot_dimension_numbers<[1], [0], [0], [1], [0, 0, 1, 1], [], []>} : vector<8x256xf32>, vector<256x512xf32>, vector<8x512xf32> -> vector<8x512xf32>
    %170 = arith.addf %169, %7 : vector<8x512xf32>
    %171 = vector.extract_strided_slice %170 {offsets = [0, 0], sizes = [8, 128], strides = [1, 1]} : vector<8x512xf32> to vector<8x128xf32>
    %172 = arith.negf %171 : vector<8x128xf32>
    %173 = math.exp %172 : vector<8x128xf32>
    %cst_38 = arith.constant 1.000000e+00 : f32
    %174 = vector.broadcast %cst_38 : f32 to vector<8x128xf32>
    %175 = arith.addf %174, %173 : vector<8x128xf32>
    %176 = arith.divf %174, %175 : vector<8x128xf32>
    %177 = vector.extract_strided_slice %170 {offsets = [0, 128], sizes = [8, 128], strides = [1, 1]} : vector<8x512xf32> to vector<8x128xf32>
    %178 = arith.negf %177 : vector<8x128xf32>
    %179 = math.exp %178 : vector<8x128xf32>
    %cst_39 = arith.constant 1.000000e+00 : f32
    %180 = vector.broadcast %cst_39 : f32 to vector<8x128xf32>
    %181 = arith.addf %180, %179 : vector<8x128xf32>
    %182 = arith.divf %180, %181 : vector<8x128xf32>
    %183 = vector.extract_strided_slice %170 {offsets = [0, 256], sizes = [8, 128], strides = [1, 1]} : vector<8x512xf32> to vector<8x128xf32>
    %184 = math.tanh %183 : vector<8x128xf32>
    %185 = vector.extract_strided_slice %170 {offsets = [0, 384], sizes = [8, 128], strides = [1, 1]} : vector<8x512xf32> to vector<8x128xf32>
    %186 = arith.negf %185 : vector<8x128xf32>
    %187 = math.exp %186 : vector<8x128xf32>
    %cst_40 = arith.constant 1.000000e+00 : f32
    %188 = vector.broadcast %cst_40 : f32 to vector<8x128xf32>
    %189 = arith.addf %188, %187 : vector<8x128xf32>
    %190 = arith.divf %188, %189 : vector<8x128xf32>
    %191 = arith.mulf %182, %129 : vector<8x128xf32>
    %192 = arith.mulf %176, %184 : vector<8x128xf32>
    %193 = arith.addf %191, %192 : vector<8x128xf32>
    %194 = math.tanh %193 : vector<8x128xf32>
    %195 = arith.mulf %190, %194 : vector<8x128xf32>
    %196 = arith.addf %167, %195 : vector<8x128xf32>
    %197 = arith.index_cast %c2_i32 : i32 to index
    %c0_41 = arith.constant 0 : index
    %c0_42 = arith.constant 0 : index
    %198 = vector.load %arg12[%197, %c0_41, %c0_42] : memref<8x8x128xf32, #tpu.memory_space<vmem>>, vector<1x8x128xf32>
    %199 = vector.shape_cast %198 : vector<1x8x128xf32> to vector<8x128xf32>
    %200 = vector.shape_cast %196 : vector<8x128xf32> to vector<1x8x128xf32>
    tpu.vector_store %arg12[%197, %c0_41, %c0_42], %200 {strides = array<i32>} : memref<8x8x128xf32, #tpu.memory_space<vmem>>, vector<1x8x128xf32>,
    %c3_i32 = arith.constant 3 : i32
    %201 = arith.index_cast %c3_i32 : i32 to index
    %c0_43 = arith.constant 0 : index
    %c0_44 = arith.constant 0 : index
    %202 = vector.load %arg1[%201, %c0_43, %c0_44] : memref<8x8x128xf32, #tpu.memory_space<vmem>>, vector<1x8x128xf32>
    %203 = vector.shape_cast %202 : vector<1x8x128xf32> to vector<8x128xf32>
    %204 = tpu.concatenate %203, %167 in 1 : vector<8x128xf32>, vector<8x128xf32> -> vector<8x256xf32>
    %cst_45 = arith.constant dense<0.000000e+00> : vector<8x512xf32>
    %205 = tpu.matmul %204, %0, %cst_45 {dimension_numbers = #tpu.dot_dimension_numbers<[1], [0], [0], [1], [0, 0, 1, 1], [], []>} : vector<8x256xf32>, vector<256x512xf32>, vector<8x512xf32> -> vector<8x512xf32>
    %206 = arith.addf %205, %4 : vector<8x512xf32>
    %207 = vector.extract_strided_slice %206 {offsets = [0, 0], sizes = [8, 128], strides = [1, 1]} : vector<8x512xf32> to vector<8x128xf32>
    %208 = arith.negf %207 : vector<8x128xf32>
    %209 = math.exp %208 : vector<8x128xf32>
    %cst_46 = arith.constant 1.000000e+00 : f32
    %210 = vector.broadcast %cst_46 : f32 to vector<8x128xf32>
    %211 = arith.addf %210, %209 : vector<8x128xf32>
    %212 = arith.divf %210, %211 : vector<8x128xf32>
    %213 = vector.extract_strided_slice %206 {offsets = [0, 128], sizes = [8, 128], strides = [1, 1]} : vector<8x512xf32> to vector<8x128xf32>
    %214 = arith.negf %213 : vector<8x128xf32>
    %215 = math.exp %214 : vector<8x128xf32>
    %cst_47 = arith.constant 1.000000e+00 : f32
    %216 = vector.broadcast %cst_47 : f32 to vector<8x128xf32>
    %217 = arith.addf %216, %215 : vector<8x128xf32>
    %218 = arith.divf %216, %217 : vector<8x128xf32>
    %219 = vector.extract_strided_slice %206 {offsets = [0, 256], sizes = [8, 128], strides = [1, 1]} : vector<8x512xf32> to vector<8x128xf32>
    %220 = math.tanh %219 : vector<8x128xf32>
    %221 = vector.extract_strided_slice %206 {offsets = [0, 384], sizes = [8, 128], strides = [1, 1]} : vector<8x512xf32> to vector<8x128xf32>
    %222 = arith.negf %221 : vector<8x128xf32>
    %223 = math.exp %222 : vector<8x128xf32>
    %cst_48 = arith.constant 1.000000e+00 : f32
    %224 = vector.broadcast %cst_48 : f32 to vector<8x128xf32>
    %225 = arith.addf %224, %223 : vector<8x128xf32>
    %226 = arith.divf %224, %225 : vector<8x128xf32>
    %227 = arith.mulf %218, %165 : vector<8x128xf32>
    %228 = arith.mulf %212, %220 : vector<8x128xf32>
    %229 = arith.addf %227, %228 : vector<8x128xf32>
    %230 = math.tanh %229 : vector<8x128xf32>
    %231 = arith.mulf %226, %230 : vector<8x128xf32>
    %232 = tpu.concatenate %231, %195 in 1 : vector<8x128xf32>, vector<8x128xf32> -> vector<8x256xf32>
    %cst_49 = arith.constant dense<0.000000e+00> : vector<8x512xf32>
    %233 = tpu.matmul %232, %1, %cst_49 {dimension_numbers = #tpu.dot_dimension_numbers<[1], [0], [0], [1], [0, 0, 1, 1], [], []>} : vector<8x256xf32>, vector<256x512xf32>, vector<8x512xf32> -> vector<8x512xf32>
    %234 = arith.addf %233, %7 : vector<8x512xf32>
    %235 = vector.extract_strided_slice %234 {offsets = [0, 0], sizes = [8, 128], strides = [1, 1]} : vector<8x512xf32> to vector<8x128xf32>
    %236 = arith.negf %235 : vector<8x128xf32>
    %237 = math.exp %236 : vector<8x128xf32>
    %cst_50 = arith.constant 1.000000e+00 : f32
    %238 = vector.broadcast %cst_50 : f32 to vector<8x128xf32>
    %239 = arith.addf %238, %237 : vector<8x128xf32>
    %240 = arith.divf %238, %239 : vector<8x128xf32>
    %241 = vector.extract_strided_slice %234 {offsets = [0, 128], sizes = [8, 128], strides = [1, 1]} : vector<8x512xf32> to vector<8x128xf32>
    %242 = arith.negf %241 : vector<8x128xf32>
    %243 = math.exp %242 : vector<8x128xf32>
    %cst_51 = arith.constant 1.000000e+00 : f32
    %244 = vector.broadcast %cst_51 : f32 to vector<8x128xf32>
    %245 = arith.addf %244, %243 : vector<8x128xf32>
    %246 = arith.divf %244, %245 : vector<8x128xf32>
    %247 = vector.extract_strided_slice %234 {offsets = [0, 256], sizes = [8, 128], strides = [1, 1]} : vector<8x512xf32> to vector<8x128xf32>
    %248 = math.tanh %247 : vector<8x128xf32>
    %249 = vector.extract_strided_slice %234 {offsets = [0, 384], sizes = [8, 128], strides = [1, 1]} : vector<8x512xf32> to vector<8x128xf32>
    %250 = arith.negf %249 : vector<8x128xf32>
    %251 = math.exp %250 : vector<8x128xf32>
    %cst_52 = arith.constant 1.000000e+00 : f32
    %252 = vector.broadcast %cst_52 : f32 to vector<8x128xf32>
    %253 = arith.addf %252, %251 : vector<8x128xf32>
    %254 = arith.divf %252, %253 : vector<8x128xf32>
    %255 = arith.mulf %246, %193 : vector<8x128xf32>
    %256 = arith.mulf %240, %248 : vector<8x128xf32>
    %257 = arith.addf %255, %256 : vector<8x128xf32>
    %258 = math.tanh %257 : vector<8x128xf32>
    %259 = arith.mulf %254, %258 : vector<8x128xf32>
    %260 = arith.addf %231, %259 : vector<8x128xf32>
    %261 = arith.index_cast %c3_i32 : i32 to index
    %c0_53 = arith.constant 0 : index
    %c0_54 = arith.constant 0 : index
    %262 = vector.load %arg12[%261, %c0_53, %c0_54] : memref<8x8x128xf32, #tpu.memory_space<vmem>>, vector<1x8x128xf32>
    %263 = vector.shape_cast %262 : vector<1x8x128xf32> to vector<8x128xf32>
    %264 = vector.shape_cast %260 : vector<8x128xf32> to vector<1x8x128xf32>
    tpu.vector_store %arg12[%261, %c0_53, %c0_54], %264 {strides = array<i32>} : memref<8x8x128xf32, #tpu.memory_space<vmem>>, vector<1x8x128xf32>,
    %c4_i32 = arith.constant 4 : i32
    %265 = arith.index_cast %c4_i32 : i32 to index
    %c0_55 = arith.constant 0 : index
    %c0_56 = arith.constant 0 : index
    %266 = vector.load %arg1[%265, %c0_55, %c0_56] : memref<8x8x128xf32, #tpu.memory_space<vmem>>, vector<1x8x128xf32>
    %267 = vector.shape_cast %266 : vector<1x8x128xf32> to vector<8x128xf32>
    %268 = tpu.concatenate %267, %231 in 1 : vector<8x128xf32>, vector<8x128xf32> -> vector<8x256xf32>
    %cst_57 = arith.constant dense<0.000000e+00> : vector<8x512xf32>
    %269 = tpu.matmul %268, %0, %cst_57 {dimension_numbers = #tpu.dot_dimension_numbers<[1], [0], [0], [1], [0, 0, 1, 1], [], []>} : vector<8x256xf32>, vector<256x512xf32>, vector<8x512xf32> -> vector<8x512xf32>
    %270 = arith.addf %269, %4 : vector<8x512xf32>
    %271 = vector.extract_strided_slice %270 {offsets = [0, 0], sizes = [8, 128], strides = [1, 1]} : vector<8x512xf32> to vector<8x128xf32>
    %272 = arith.negf %271 : vector<8x128xf32>
    %273 = math.exp %272 : vector<8x128xf32>
    %cst_58 = arith.constant 1.000000e+00 : f32
    %274 = vector.broadcast %cst_58 : f32 to vector<8x128xf32>
    %275 = arith.addf %274, %273 : vector<8x128xf32>
    %276 = arith.divf %274, %275 : vector<8x128xf32>
    %277 = vector.extract_strided_slice %270 {offsets = [0, 128], sizes = [8, 128], strides = [1, 1]} : vector<8x512xf32> to vector<8x128xf32>
    %278 = arith.negf %277 : vector<8x128xf32>
    %279 = math.exp %278 : vector<8x128xf32>
    %cst_59 = arith.constant 1.000000e+00 : f32
    %280 = vector.broadcast %cst_59 : f32 to vector<8x128xf32>
    %281 = arith.addf %280, %279 : vector<8x128xf32>
    %282 = arith.divf %280, %281 : vector<8x128xf32>
    %283 = vector.extract_strided_slice %270 {offsets = [0, 256], sizes = [8, 128], strides = [1, 1]} : vector<8x512xf32> to vector<8x128xf32>
    %284 = math.tanh %283 : vector<8x128xf32>
    %285 = vector.extract_strided_slice %270 {offsets = [0, 384], sizes = [8, 128], strides = [1, 1]} : vector<8x512xf32> to vector<8x128xf32>
    %286 = arith.negf %285 : vector<8x128xf32>
    %287 = math.exp %286 : vector<8x128xf32>
    %cst_60 = arith.constant 1.000000e+00 : f32
    %288 = vector.broadcast %cst_60 : f32 to vector<8x128xf32>
    %289 = arith.addf %288, %287 : vector<8x128xf32>
    %290 = arith.divf %288, %289 : vector<8x128xf32>
    %291 = arith.mulf %282, %229 : vector<8x128xf32>
    %292 = arith.mulf %276, %284 : vector<8x128xf32>
    %293 = arith.addf %291, %292 : vector<8x128xf32>
    %294 = math.tanh %293 : vector<8x128xf32>
    %295 = arith.mulf %290, %294 : vector<8x128xf32>
    %296 = tpu.concatenate %295, %259 in 1 : vector<8x128xf32>, vector<8x128xf32> -> vector<8x256xf32>
    %cst_61 = arith.constant dense<0.000000e+00> : vector<8x512xf32>
    %297 = tpu.matmul %296, %1, %cst_61 {dimension_numbers = #tpu.dot_dimension_numbers<[1], [0], [0], [1], [0, 0, 1, 1], [], []>} : vector<8x256xf32>, vector<256x512xf32>, vector<8x512xf32> -> vector<8x512xf32>
    %298 = arith.addf %297, %7 : vector<8x512xf32>
    %299 = vector.extract_strided_slice %298 {offsets = [0, 0], sizes = [8, 128], strides = [1, 1]} : vector<8x512xf32> to vector<8x128xf32>
    %300 = arith.negf %299 : vector<8x128xf32>
    %301 = math.exp %300 : vector<8x128xf32>
    %cst_62 = arith.constant 1.000000e+00 : f32
    %302 = vector.broadcast %cst_62 : f32 to vector<8x128xf32>
    %303 = arith.addf %302, %301 : vector<8x128xf32>
    %304 = arith.divf %302, %303 : vector<8x128xf32>
    %305 = vector.extract_strided_slice %298 {offsets = [0, 128], sizes = [8, 128], strides = [1, 1]} : vector<8x512xf32> to vector<8x128xf32>
    %306 = arith.negf %305 : vector<8x128xf32>
    %307 = math.exp %306 : vector<8x128xf32>
    %cst_63 = arith.constant 1.000000e+00 : f32
    %308 = vector.broadcast %cst_63 : f32 to vector<8x128xf32>
    %309 = arith.addf %308, %307 : vector<8x128xf32>
    %310 = arith.divf %308, %309 : vector<8x128xf32>
    %311 = vector.extract_strided_slice %298 {offsets = [0, 256], sizes = [8, 128], strides = [1, 1]} : vector<8x512xf32> to vector<8x128xf32>
    %312 = math.tanh %311 : vector<8x128xf32>
    %313 = vector.extract_strided_slice %298 {offsets = [0, 384], sizes = [8, 128], strides = [1, 1]} : vector<8x512xf32> to vector<8x128xf32>
    %314 = arith.negf %313 : vector<8x128xf32>
    %315 = math.exp %314 : vector<8x128xf32>
    %cst_64 = arith.constant 1.000000e+00 : f32
    %316 = vector.broadcast %cst_64 : f32 to vector<8x128xf32>
    %317 = arith.addf %316, %315 : vector<8x128xf32>
    %318 = arith.divf %316, %317 : vector<8x128xf32>
    %319 = arith.mulf %310, %257 : vector<8x128xf32>
    %320 = arith.mulf %304, %312 : vector<8x128xf32>
    %321 = arith.addf %319, %320 : vector<8x128xf32>
    %322 = math.tanh %321 : vector<8x128xf32>
    %323 = arith.mulf %318, %322 : vector<8x128xf32>
    %324 = arith.addf %295, %323 : vector<8x128xf32>
    %325 = arith.index_cast %c4_i32 : i32 to index
    %c0_65 = arith.constant 0 : index
    %c0_66 = arith.constant 0 : index
    %326 = vector.load %arg12[%325, %c0_65, %c0_66] : memref<8x8x128xf32, #tpu.memory_space<vmem>>, vector<1x8x128xf32>
    %327 = vector.shape_cast %326 : vector<1x8x128xf32> to vector<8x128xf32>
    %328 = vector.shape_cast %324 : vector<8x128xf32> to vector<1x8x128xf32>
    tpu.vector_store %arg12[%325, %c0_65, %c0_66], %328 {strides = array<i32>} : memref<8x8x128xf32, #tpu.memory_space<vmem>>, vector<1x8x128xf32>,
    %c5_i32 = arith.constant 5 : i32
    %329 = arith.index_cast %c5_i32 : i32 to index
    %c0_67 = arith.constant 0 : index
    %c0_68 = arith.constant 0 : index
    %330 = vector.load %arg1[%329, %c0_67, %c0_68] : memref<8x8x128xf32, #tpu.memory_space<vmem>>, vector<1x8x128xf32>
    %331 = vector.shape_cast %330 : vector<1x8x128xf32> to vector<8x128xf32>
    %332 = tpu.concatenate %331, %295 in 1 : vector<8x128xf32>, vector<8x128xf32> -> vector<8x256xf32>
    %cst_69 = arith.constant dense<0.000000e+00> : vector<8x512xf32>
    %333 = tpu.matmul %332, %0, %cst_69 {dimension_numbers = #tpu.dot_dimension_numbers<[1], [0], [0], [1], [0, 0, 1, 1], [], []>} : vector<8x256xf32>, vector<256x512xf32>, vector<8x512xf32> -> vector<8x512xf32>
    %334 = arith.addf %333, %4 : vector<8x512xf32>
    %335 = vector.extract_strided_slice %334 {offsets = [0, 0], sizes = [8, 128], strides = [1, 1]} : vector<8x512xf32> to vector<8x128xf32>
    %336 = arith.negf %335 : vector<8x128xf32>
    %337 = math.exp %336 : vector<8x128xf32>
    %cst_70 = arith.constant 1.000000e+00 : f32
    %338 = vector.broadcast %cst_70 : f32 to vector<8x128xf32>
    %339 = arith.addf %338, %337 : vector<8x128xf32>
    %340 = arith.divf %338, %339 : vector<8x128xf32>
    %341 = vector.extract_strided_slice %334 {offsets = [0, 128], sizes = [8, 128], strides = [1, 1]} : vector<8x512xf32> to vector<8x128xf32>
    %342 = arith.negf %341 : vector<8x128xf32>
    %343 = math.exp %342 : vector<8x128xf32>
    %cst_71 = arith.constant 1.000000e+00 : f32
    %344 = vector.broadcast %cst_71 : f32 to vector<8x128xf32>
    %345 = arith.addf %344, %343 : vector<8x128xf32>
    %346 = arith.divf %344, %345 : vector<8x128xf32>
    %347 = vector.extract_strided_slice %334 {offsets = [0, 256], sizes = [8, 128], strides = [1, 1]} : vector<8x512xf32> to vector<8x128xf32>
    %348 = math.tanh %347 : vector<8x128xf32>
    %349 = vector.extract_strided_slice %334 {offsets = [0, 384], sizes = [8, 128], strides = [1, 1]} : vector<8x512xf32> to vector<8x128xf32>
    %350 = arith.negf %349 : vector<8x128xf32>
    %351 = math.exp %350 : vector<8x128xf32>
    %cst_72 = arith.constant 1.000000e+00 : f32
    %352 = vector.broadcast %cst_72 : f32 to vector<8x128xf32>
    %353 = arith.addf %352, %351 : vector<8x128xf32>
    %354 = arith.divf %352, %353 : vector<8x128xf32>
    %355 = arith.mulf %346, %293 : vector<8x128xf32>
    %356 = arith.mulf %340, %348 : vector<8x128xf32>
    %357 = arith.addf %355, %356 : vector<8x128xf32>
    %358 = math.tanh %357 : vector<8x128xf32>
    %359 = arith.mulf %354, %358 : vector<8x128xf32>
    %360 = tpu.concatenate %359, %323 in 1 : vector<8x128xf32>, vector<8x128xf32> -> vector<8x256xf32>
    %cst_73 = arith.constant dense<0.000000e+00> : vector<8x512xf32>
    %361 = tpu.matmul %360, %1, %cst_73 {dimension_numbers = #tpu.dot_dimension_numbers<[1], [0], [0], [1], [0, 0, 1, 1], [], []>} : vector<8x256xf32>, vector<256x512xf32>, vector<8x512xf32> -> vector<8x512xf32>
    %362 = arith.addf %361, %7 : vector<8x512xf32>
    %363 = vector.extract_strided_slice %362 {offsets = [0, 0], sizes = [8, 128], strides = [1, 1]} : vector<8x512xf32> to vector<8x128xf32>
    %364 = arith.negf %363 : vector<8x128xf32>
    %365 = math.exp %364 : vector<8x128xf32>
    %cst_74 = arith.constant 1.000000e+00 : f32
    %366 = vector.broadcast %cst_74 : f32 to vector<8x128xf32>
    %367 = arith.addf %366, %365 : vector<8x128xf32>
    %368 = arith.divf %366, %367 : vector<8x128xf32>
    %369 = vector.extract_strided_slice %362 {offsets = [0, 128], sizes = [8, 128], strides = [1, 1]} : vector<8x512xf32> to vector<8x128xf32>
    %370 = arith.negf %369 : vector<8x128xf32>
    %371 = math.exp %370 : vector<8x128xf32>
    %cst_75 = arith.constant 1.000000e+00 : f32
    %372 = vector.broadcast %cst_75 : f32 to vector<8x128xf32>
    %373 = arith.addf %372, %371 : vector<8x128xf32>
    %374 = arith.divf %372, %373 : vector<8x128xf32>
    %375 = vector.extract_strided_slice %362 {offsets = [0, 256], sizes = [8, 128], strides = [1, 1]} : vector<8x512xf32> to vector<8x128xf32>
    %376 = math.tanh %375 : vector<8x128xf32>
    %377 = vector.extract_strided_slice %362 {offsets = [0, 384], sizes = [8, 128], strides = [1, 1]} : vector<8x512xf32> to vector<8x128xf32>
    %378 = arith.negf %377 : vector<8x128xf32>
    %379 = math.exp %378 : vector<8x128xf32>
    %cst_76 = arith.constant 1.000000e+00 : f32
    %380 = vector.broadcast %cst_76 : f32 to vector<8x128xf32>
    %381 = arith.addf %380, %379 : vector<8x128xf32>
    %382 = arith.divf %380, %381 : vector<8x128xf32>
    %383 = arith.mulf %374, %321 : vector<8x128xf32>
    %384 = arith.mulf %368, %376 : vector<8x128xf32>
    %385 = arith.addf %383, %384 : vector<8x128xf32>
    %386 = math.tanh %385 : vector<8x128xf32>
    %387 = arith.mulf %382, %386 : vector<8x128xf32>
    %388 = arith.addf %359, %387 : vector<8x128xf32>
    %389 = arith.index_cast %c5_i32 : i32 to index
    %c0_77 = arith.constant 0 : index
    %c0_78 = arith.constant 0 : index
    %390 = vector.load %arg12[%389, %c0_77, %c0_78] : memref<8x8x128xf32, #tpu.memory_space<vmem>>, vector<1x8x128xf32>
    %391 = vector.shape_cast %390 : vector<1x8x128xf32> to vector<8x128xf32>
    %392 = vector.shape_cast %388 : vector<8x128xf32> to vector<1x8x128xf32>
    tpu.vector_store %arg12[%389, %c0_77, %c0_78], %392 {strides = array<i32>} : memref<8x8x128xf32, #tpu.memory_space<vmem>>, vector<1x8x128xf32>,
    %c6_i32 = arith.constant 6 : i32
    %393 = arith.index_cast %c6_i32 : i32 to index
    %c0_79 = arith.constant 0 : index
    %c0_80 = arith.constant 0 : index
    %394 = vector.load %arg1[%393, %c0_79, %c0_80] : memref<8x8x128xf32, #tpu.memory_space<vmem>>, vector<1x8x128xf32>
    %395 = vector.shape_cast %394 : vector<1x8x128xf32> to vector<8x128xf32>
    %396 = tpu.concatenate %395, %359 in 1 : vector<8x128xf32>, vector<8x128xf32> -> vector<8x256xf32>
    %cst_81 = arith.constant dense<0.000000e+00> : vector<8x512xf32>
    %397 = tpu.matmul %396, %0, %cst_81 {dimension_numbers = #tpu.dot_dimension_numbers<[1], [0], [0], [1], [0, 0, 1, 1], [], []>} : vector<8x256xf32>, vector<256x512xf32>, vector<8x512xf32> -> vector<8x512xf32>
    %398 = arith.addf %397, %4 : vector<8x512xf32>
    %399 = vector.extract_strided_slice %398 {offsets = [0, 0], sizes = [8, 128], strides = [1, 1]} : vector<8x512xf32> to vector<8x128xf32>
    %400 = arith.negf %399 : vector<8x128xf32>
    %401 = math.exp %400 : vector<8x128xf32>
    %cst_82 = arith.constant 1.000000e+00 : f32
    %402 = vector.broadcast %cst_82 : f32 to vector<8x128xf32>
    %403 = arith.addf %402, %401 : vector<8x128xf32>
    %404 = arith.divf %402, %403 : vector<8x128xf32>
    %405 = vector.extract_strided_slice %398 {offsets = [0, 128], sizes = [8, 128], strides = [1, 1]} : vector<8x512xf32> to vector<8x128xf32>
    %406 = arith.negf %405 : vector<8x128xf32>
    %407 = math.exp %406 : vector<8x128xf32>
    %cst_83 = arith.constant 1.000000e+00 : f32
    %408 = vector.broadcast %cst_83 : f32 to vector<8x128xf32>
    %409 = arith.addf %408, %407 : vector<8x128xf32>
    %410 = arith.divf %408, %409 : vector<8x128xf32>
    %411 = vector.extract_strided_slice %398 {offsets = [0, 256], sizes = [8, 128], strides = [1, 1]} : vector<8x512xf32> to vector<8x128xf32>
    %412 = math.tanh %411 : vector<8x128xf32>
    %413 = vector.extract_strided_slice %398 {offsets = [0, 384], sizes = [8, 128], strides = [1, 1]} : vector<8x512xf32> to vector<8x128xf32>
    %414 = arith.negf %413 : vector<8x128xf32>
    %415 = math.exp %414 : vector<8x128xf32>
    %cst_84 = arith.constant 1.000000e+00 : f32
    %416 = vector.broadcast %cst_84 : f32 to vector<8x128xf32>
    %417 = arith.addf %416, %415 : vector<8x128xf32>
    %418 = arith.divf %416, %417 : vector<8x128xf32>
    %419 = arith.mulf %410, %357 : vector<8x128xf32>
    %420 = arith.mulf %404, %412 : vector<8x128xf32>
    %421 = arith.addf %419, %420 : vector<8x128xf32>
    %422 = math.tanh %421 : vector<8x128xf32>
    %423 = arith.mulf %418, %422 : vector<8x128xf32>
    %424 = tpu.concatenate %423, %387 in 1 : vector<8x128xf32>, vector<8x128xf32> -> vector<8x256xf32>
    %cst_85 = arith.constant dense<0.000000e+00> : vector<8x512xf32>
    %425 = tpu.matmul %424, %1, %cst_85 {dimension_numbers = #tpu.dot_dimension_numbers<[1], [0], [0], [1], [0, 0, 1, 1], [], []>} : vector<8x256xf32>, vector<256x512xf32>, vector<8x512xf32> -> vector<8x512xf32>
    %426 = arith.addf %425, %7 : vector<8x512xf32>
    %427 = vector.extract_strided_slice %426 {offsets = [0, 0], sizes = [8, 128], strides = [1, 1]} : vector<8x512xf32> to vector<8x128xf32>
    %428 = arith.negf %427 : vector<8x128xf32>
    %429 = math.exp %428 : vector<8x128xf32>
    %cst_86 = arith.constant 1.000000e+00 : f32
    %430 = vector.broadcast %cst_86 : f32 to vector<8x128xf32>
    %431 = arith.addf %430, %429 : vector<8x128xf32>
    %432 = arith.divf %430, %431 : vector<8x128xf32>
    %433 = vector.extract_strided_slice %426 {offsets = [0, 128], sizes = [8, 128], strides = [1, 1]} : vector<8x512xf32> to vector<8x128xf32>
    %434 = arith.negf %433 : vector<8x128xf32>
    %435 = math.exp %434 : vector<8x128xf32>
    %cst_87 = arith.constant 1.000000e+00 : f32
    %436 = vector.broadcast %cst_87 : f32 to vector<8x128xf32>
    %437 = arith.addf %436, %435 : vector<8x128xf32>
    %438 = arith.divf %436, %437 : vector<8x128xf32>
    %439 = vector.extract_strided_slice %426 {offsets = [0, 256], sizes = [8, 128], strides = [1, 1]} : vector<8x512xf32> to vector<8x128xf32>
    %440 = math.tanh %439 : vector<8x128xf32>
    %441 = vector.extract_strided_slice %426 {offsets = [0, 384], sizes = [8, 128], strides = [1, 1]} : vector<8x512xf32> to vector<8x128xf32>
    %442 = arith.negf %441 : vector<8x128xf32>
    %443 = math.exp %442 : vector<8x128xf32>
    %cst_88 = arith.constant 1.000000e+00 : f32
    %444 = vector.broadcast %cst_88 : f32 to vector<8x128xf32>
    %445 = arith.addf %444, %443 : vector<8x128xf32>
    %446 = arith.divf %444, %445 : vector<8x128xf32>
    %447 = arith.mulf %438, %385 : vector<8x128xf32>
    %448 = arith.mulf %432, %440 : vector<8x128xf32>
    %449 = arith.addf %447, %448 : vector<8x128xf32>
    %450 = math.tanh %449 : vector<8x128xf32>
    %451 = arith.mulf %446, %450 : vector<8x128xf32>
    %452 = arith.addf %423, %451 : vector<8x128xf32>
    %453 = arith.index_cast %c6_i32 : i32 to index
    %c0_89 = arith.constant 0 : index
    %c0_90 = arith.constant 0 : index
    %454 = vector.load %arg12[%453, %c0_89, %c0_90] : memref<8x8x128xf32, #tpu.memory_space<vmem>>, vector<1x8x128xf32>
    %455 = vector.shape_cast %454 : vector<1x8x128xf32> to vector<8x128xf32>
    %456 = vector.shape_cast %452 : vector<8x128xf32> to vector<1x8x128xf32>
    tpu.vector_store %arg12[%453, %c0_89, %c0_90], %456 {strides = array<i32>} : memref<8x8x128xf32, #tpu.memory_space<vmem>>, vector<1x8x128xf32>,
    %c7_i32 = arith.constant 7 : i32
    %457 = arith.index_cast %c7_i32 : i32 to index
    %c0_91 = arith.constant 0 : index
    %c0_92 = arith.constant 0 : index
    %458 = vector.load %arg1[%457, %c0_91, %c0_92] : memref<8x8x128xf32, #tpu.memory_space<vmem>>, vector<1x8x128xf32>
    %459 = vector.shape_cast %458 : vector<1x8x128xf32> to vector<8x128xf32>
    %460 = tpu.concatenate %459, %423 in 1 : vector<8x128xf32>, vector<8x128xf32> -> vector<8x256xf32>
    %cst_93 = arith.constant dense<0.000000e+00> : vector<8x512xf32>
    %461 = tpu.matmul %460, %0, %cst_93 {dimension_numbers = #tpu.dot_dimension_numbers<[1], [0], [0], [1], [0, 0, 1, 1], [], []>} : vector<8x256xf32>, vector<256x512xf32>, vector<8x512xf32> -> vector<8x512xf32>
    %462 = arith.addf %461, %4 : vector<8x512xf32>
    %463 = vector.extract_strided_slice %462 {offsets = [0, 0], sizes = [8, 128], strides = [1, 1]} : vector<8x512xf32> to vector<8x128xf32>
    %464 = arith.negf %463 : vector<8x128xf32>
    %465 = math.exp %464 : vector<8x128xf32>
    %cst_94 = arith.constant 1.000000e+00 : f32
    %466 = vector.broadcast %cst_94 : f32 to vector<8x128xf32>
    %467 = arith.addf %466, %465 : vector<8x128xf32>
    %468 = arith.divf %466, %467 : vector<8x128xf32>
    %469 = vector.extract_strided_slice %462 {offsets = [0, 128], sizes = [8, 128], strides = [1, 1]} : vector<8x512xf32> to vector<8x128xf32>
    %470 = arith.negf %469 : vector<8x128xf32>
    %471 = math.exp %470 : vector<8x128xf32>
    %cst_95 = arith.constant 1.000000e+00 : f32
    %472 = vector.broadcast %cst_95 : f32 to vector<8x128xf32>
    %473 = arith.addf %472, %471 : vector<8x128xf32>
    %474 = arith.divf %472, %473 : vector<8x128xf32>
    %475 = vector.extract_strided_slice %462 {offsets = [0, 256], sizes = [8, 128], strides = [1, 1]} : vector<8x512xf32> to vector<8x128xf32>
    %476 = math.tanh %475 : vector<8x128xf32>
    %477 = vector.extract_strided_slice %462 {offsets = [0, 384], sizes = [8, 128], strides = [1, 1]} : vector<8x512xf32> to vector<8x128xf32>
    %478 = arith.negf %477 : vector<8x128xf32>
    %479 = math.exp %478 : vector<8x128xf32>
    %cst_96 = arith.constant 1.000000e+00 : f32
    %480 = vector.broadcast %cst_96 : f32 to vector<8x128xf32>
    %481 = arith.addf %480, %479 : vector<8x128xf32>
    %482 = arith.divf %480, %481 : vector<8x128xf32>
    %483 = arith.mulf %474, %421 : vector<8x128xf32>
    %484 = arith.mulf %468, %476 : vector<8x128xf32>
    %485 = arith.addf %483, %484 : vector<8x128xf32>
    %486 = math.tanh %485 : vector<8x128xf32>
    %487 = arith.mulf %482, %486 : vector<8x128xf32>
    %488 = tpu.concatenate %487, %451 in 1 : vector<8x128xf32>, vector<8x128xf32> -> vector<8x256xf32>
    %cst_97 = arith.constant dense<0.000000e+00> : vector<8x512xf32>
    %489 = tpu.matmul %488, %1, %cst_97 {dimension_numbers = #tpu.dot_dimension_numbers<[1], [0], [0], [1], [0, 0, 1, 1], [], []>} : vector<8x256xf32>, vector<256x512xf32>, vector<8x512xf32> -> vector<8x512xf32>
    %490 = arith.addf %489, %7 : vector<8x512xf32>
    %491 = vector.extract_strided_slice %490 {offsets = [0, 0], sizes = [8, 128], strides = [1, 1]} : vector<8x512xf32> to vector<8x128xf32>
    %492 = arith.negf %491 : vector<8x128xf32>
    %493 = math.exp %492 : vector<8x128xf32>
    %cst_98 = arith.constant 1.000000e+00 : f32
    %494 = vector.broadcast %cst_98 : f32 to vector<8x128xf32>
    %495 = arith.addf %494, %493 : vector<8x128xf32>
    %496 = arith.divf %494, %495 : vector<8x128xf32>
    %497 = vector.extract_strided_slice %490 {offsets = [0, 128], sizes = [8, 128], strides = [1, 1]} : vector<8x512xf32> to vector<8x128xf32>
    %498 = arith.negf %497 : vector<8x128xf32>
    %499 = math.exp %498 : vector<8x128xf32>
    %cst_99 = arith.constant 1.000000e+00 : f32
    %500 = vector.broadcast %cst_99 : f32 to vector<8x128xf32>
    %501 = arith.addf %500, %499 : vector<8x128xf32>
    %502 = arith.divf %500, %501 : vector<8x128xf32>
    %503 = vector.extract_strided_slice %490 {offsets = [0, 256], sizes = [8, 128], strides = [1, 1]} : vector<8x512xf32> to vector<8x128xf32>
    %504 = math.tanh %503 : vector<8x128xf32>
    %505 = vector.extract_strided_slice %490 {offsets = [0, 384], sizes = [8, 128], strides = [1, 1]} : vector<8x512xf32> to vector<8x128xf32>
    %506 = arith.negf %505 : vector<8x128xf32>
    %507 = math.exp %506 : vector<8x128xf32>
    %cst_100 = arith.constant 1.000000e+00 : f32
    %508 = vector.broadcast %cst_100 : f32 to vector<8x128xf32>
    %509 = arith.addf %508, %507 : vector<8x128xf32>
    %510 = arith.divf %508, %509 : vector<8x128xf32>
    %511 = arith.mulf %502, %449 : vector<8x128xf32>
    %512 = arith.mulf %496, %504 : vector<8x128xf32>
    %513 = arith.addf %511, %512 : vector<8x128xf32>
    %514 = math.tanh %513 : vector<8x128xf32>
    %515 = arith.mulf %510, %514 : vector<8x128xf32>
    %516 = arith.addf %487, %515 : vector<8x128xf32>
    %517 = arith.index_cast %c7_i32 : i32 to index
    %c0_101 = arith.constant 0 : index
    %c0_102 = arith.constant 0 : index
    %518 = vector.load %arg12[%517, %c0_101, %c0_102] : memref<8x8x128xf32, #tpu.memory_space<vmem>>, vector<1x8x128xf32>
    %519 = vector.shape_cast %518 : vector<1x8x128xf32> to vector<8x128xf32>
    %520 = vector.shape_cast %516 : vector<8x128xf32> to vector<1x8x128xf32>
    tpu.vector_store %arg12[%517, %c0_101, %c0_102], %520 {strides = array<i32>} : memref<8x8x128xf32, #tpu.memory_space<vmem>>, vector<1x8x128xf32>,
    %c8_i32 = arith.constant 8 : i32
    %c0_103 = arith.constant 0 : index
    %c0_104 = arith.constant 0 : index
    %c0_105 = arith.constant 0 : index
    %521 = vector.load %arg12[%c0_103, %c0_104, %c0_105] : memref<8x8x128xf32, #tpu.memory_space<vmem>>, vector<8x8x128xf32>
    %522 = vector.shape_cast %521 : vector<8x8x128xf32> to vector<64x128xf32>
    %c0_106 = arith.constant 0 : index
    %c0_107 = arith.constant 0 : index
    %523 = vector.load %arg11[%c0_106, %c0_107] : memref<64x1xf32, #tpu.memory_space<vmem>>, vector<64x1xf32>
    %c0_108 = arith.constant 0 : index
    %c0_109 = arith.constant 0 : index
    %524 = vector.load %arg6[%c0_108, %c0_109] : memref<128x128xf32, #tpu.memory_space<vmem>>, vector<128x128xf32>
    %cst_110 = arith.constant dense<0.000000e+00> : vector<64x128xf32>
    %525 = tpu.matmul %522, %524, %cst_110 {dimension_numbers = #tpu.dot_dimension_numbers<[1], [0], [0], [1], [0, 0, 1, 1], [], []>} : vector<64x128xf32>, vector<128x128xf32>, vector<64x128xf32> -> vector<64x128xf32>
    %526 = vector.broadcast %523 : vector<64x1xf32> to vector<64x128xf32>
    %527 = arith.mulf %525, %526 : vector<64x128xf32>
    %cst_111 = arith.constant dense<0.000000e+00> : vector<128xf32>
    %528 = vector.multi_reduction <add>, %527, %cst_111 [0] : vector<64x128xf32> to vector<128xf32>
    %529 = vector.shape_cast %528 : vector<128xf32> to vector<1x128xf32>
    %cst_112 = arith.constant 3.125000e-02 : f32
    %530 = vector.broadcast %cst_112 : f32 to vector<1x128xf32>
    %531 = arith.mulf %529, %530 : vector<1x128xf32>
    %532 = vector.broadcast %531 : vector<1x128xf32> to vector<64x128xf32>
    %533 = arith.subf %525, %532 : vector<64x128xf32>
    %534 = vector.broadcast %523 : vector<64x1xf32> to vector<64x128xf32>
    %535 = arith.mulf %533, %534 : vector<64x128xf32>
    %536 = arith.mulf %535, %535 : vector<64x128xf32>
    %cst_113 = arith.constant dense<0.000000e+00> : vector<128xf32>
    %537 = vector.multi_reduction <add>, %536, %cst_113 [0] : vector<64x128xf32> to vector<128xf32>
    %538 = vector.shape_cast %537 : vector<128xf32> to vector<1x128xf32>
    %cst_114 = arith.constant 3.125000e-02 : f32
    %539 = vector.broadcast %cst_114 : f32 to vector<1x128xf32>
    %540 = arith.mulf %538, %539 : vector<1x128xf32>
    %541 = vector.broadcast %531 : vector<1x128xf32> to vector<64x128xf32>
    %542 = arith.subf %525, %541 : vector<64x128xf32>
    %cst_115 = arith.constant 9.99999974E-6 : f32
    %543 = vector.broadcast %cst_115 : f32 to vector<1x128xf32>
    %544 = arith.addf %540, %543 : vector<1x128xf32>
    %545 = math.rsqrt %544 : vector<1x128xf32>
    %546 = vector.broadcast %545 : vector<1x128xf32> to vector<64x128xf32>
    %547 = arith.mulf %542, %546 : vector<64x128xf32>
    %c0_116 = arith.constant 0 : index
    %c0_117 = arith.constant 0 : index
    %548 = vector.load %arg7[%c0_116, %c0_117] : memref<1x128xf32, #tpu.memory_space<vmem>>, vector<1x128xf32>
    %549 = vector.broadcast %548 : vector<1x128xf32> to vector<64x128xf32>
    %550 = arith.mulf %547, %549 : vector<64x128xf32>
    %c0_118 = arith.constant 0 : index
    %c0_119 = arith.constant 0 : index
    %551 = vector.load %arg8[%c0_118, %c0_119] : memref<1x128xf32, #tpu.memory_space<vmem>>, vector<1x128xf32>
    %552 = vector.broadcast %551 : vector<1x128xf32> to vector<64x128xf32>
    %553 = arith.addf %550, %552 : vector<64x128xf32>
    %cst_120 = arith.constant 0.000000e+00 : f32
    %554 = vector.broadcast %cst_120 : f32 to vector<64x128xf32>
    %555 = arith.maximumf %553, %554 : vector<64x128xf32>
    %c0_121 = arith.constant 0 : index
    %c0_122 = arith.constant 0 : index
    %556 = vector.load %arg9[%c0_121, %c0_122] : memref<128x128xf32, #tpu.memory_space<vmem>>, vector<128x128xf32>
    %cst_123 = arith.constant dense<0.000000e+00> : vector<64x128xf32>
    %557 = tpu.matmul %555, %556, %cst_123 {dimension_numbers = #tpu.dot_dimension_numbers<[1], [0], [0], [1], [0, 0, 1, 1], [], []>} : vector<64x128xf32>, vector<128x128xf32>, vector<64x128xf32> -> vector<64x128xf32>
    %c0_124 = arith.constant 0 : index
    %c0_125 = arith.constant 0 : index
    %558 = vector.load %arg10[%c0_124, %c0_125] : memref<1x128xf32, #tpu.memory_space<vmem>>, vector<1x128xf32>
    %559 = vector.broadcast %558 : vector<1x128xf32> to vector<64x128xf32>
    %560 = arith.addf %557, %559 : vector<64x128xf32>
    %c0_126 = arith.constant 0 : index
    %c0_127 = arith.constant 0 : index
    %561 = vector.load %arg13[%c0_126, %c0_127] : memref<64x128xf32, #tpu.memory_space<vmem>>, vector<64x128xf32>
    tpu.vector_store %arg13[%c0_126, %c0_127], %560 {strides = array<i32>} : memref<64x128xf32, #tpu.memory_space<vmem>>, vector<64x128xf32>,
    return
  }
  func.func @transform_0(%arg0: i32) -> (i32, i32, i32) {
    %c0_i32 = arith.constant 0 : i32
    %c0_i32_0 = arith.constant 0 : i32
    %c0_i32_1 = arith.constant 0 : i32
    %c0_i32_2 = arith.constant 0 : i32
    return %c0_i32, %c0_i32_0, %c0_i32_1 : i32, i32, i32
  }
  func.func @transform_1(%arg0: i32) -> (i32, i32) {
    %c0_i32 = arith.constant 0 : i32
    %c0_i32_0 = arith.constant 0 : i32
    %c0_i32_1 = arith.constant 0 : i32
    return %c0_i32, %c0_i32_0 : i32, i32
  }
  func.func @transform_2(%arg0: i32) -> (i32, i32) {
    %c0_i32 = arith.constant 0 : i32
    %c0_i32_0 = arith.constant 0 : i32
    %c0_i32_1 = arith.constant 0 : i32
    return %c0_i32, %c0_i32_0 : i32, i32
  }
  func.func @transform_3(%arg0: i32) -> (i32, i32) {
    %c0_i32 = arith.constant 0 : i32
    %c0_i32_0 = arith.constant 0 : i32
    %c0_i32_1 = arith.constant 0 : i32
    return %c0_i32, %c0_i32_0 : i32, i32
  }
  func.func @transform_4(%arg0: i32) -> (i32, i32) {
    %c0_i32 = arith.constant 0 : i32
    %c0_i32_0 = arith.constant 0 : i32
    %c0_i32_1 = arith.constant 0 : i32
    return %c0_i32, %c0_i32_0 : i32, i32
  }
  func.func @transform_5(%arg0: i32) -> (i32, i32) {
    %c0_i32 = arith.constant 0 : i32
    %c0_i32_0 = arith.constant 0 : i32
    %c0_i32_1 = arith.constant 0 : i32
    return %c0_i32, %c0_i32_0 : i32, i32
  }
  func.func @transform_6(%arg0: i32) -> (i32, i32) {
    %c0_i32 = arith.constant 0 : i32
    %c0_i32_0 = arith.constant 0 : i32
    %c0_i32_1 = arith.constant 0 : i32
    return %c0_i32, %c0_i32_0 : i32, i32
  }
  func.func @transform_7(%arg0: i32) -> (i32, i32) {
    %c0_i32 = arith.constant 0 : i32
    %c0_i32_0 = arith.constant 0 : i32
    %c0_i32_1 = arith.constant 0 : i32
    return %c0_i32, %c0_i32_0 : i32, i32
  }
  func.func @transform_8(%arg0: i32) -> (i32, i32) {
    %c0_i32 = arith.constant 0 : i32
    %c0_i32_0 = arith.constant 0 : i32
    %c0_i32_1 = arith.constant 0 : i32
    return %c0_i32, %c0_i32_0 : i32, i32
  }
  func.func @transform_9(%arg0: i32) -> (i32, i32) {
    %c0_i32 = arith.constant 0 : i32
    %c0_i32_0 = arith.constant 0 : i32
    %c0_i32_1 = arith.constant 0 : i32
    return %c0_i32, %c0_i32_0 : i32, i32
  }
  func.func @transform_10(%arg0: i32) -> (i32, i32) {
    %c0_i32 = arith.constant 0 : i32
    %c0_i32_0 = arith.constant 0 : i32
    %c0_i32_1 = arith.constant 0 : i32
    return %c0_i32, %c0_i32_0 : i32, i32
  }
  func.func @transform_11(%arg0: i32) -> (i32, i32, i32) {
    %c0_i32 = arith.constant 0 : i32
    %c0_i32_0 = arith.constant 0 : i32
    %c0_i32_1 = arith.constant 0 : i32
    %c0_i32_2 = arith.constant 0 : i32
    return %c0_i32, %c0_i32_0, %c0_i32_1 : i32, i32, i32
  }
  func.func @transform_12(%arg0: i32) -> (i32, i32) {
    %c0_i32 = arith.constant 0 : i32
    %c0_i32_0 = arith.constant 0 : i32
    %c0_i32_1 = arith.constant 0 : i32
    return %c0_i32, %c0_i32_0 : i32, i32
  }
}

</mosaic_0001>

<llo_original>
// kernel: tpu_custom_call.1
$region0: #{tpu_custom_call.1}
  #allocation0 [shape = 'u32[]', space=smem, size = 0x4, offset = 0x4, fixed_abs, tag = 'smem constant byte address 0x4 - core index']
  #allocation1 [shape = 'u32[144,128]{1,0:T(1,128)}', space=vmem, size = 0x12000, scoped, tag = 'internal scratch']
  %s0 = inlined_call_operand.vmem [shape: f32[8,8,128], index: 0, kind: input, shape index: {}]
  %s1 = inlined_call_operand.hbm [shape: f32[256,512], index: 1, kind: input, shape index: {}]
  %s2 = inlined_call_operand.vmem [shape: f32[1,512], index: 2, kind: input, shape index: {}]
  %s3 = inlined_call_operand.hbm [shape: f32[256,512], index: 3, kind: input, shape index: {}]
  %s4 = inlined_call_operand.vmem [shape: f32[1,512], index: 4, kind: input, shape index: {}]
  %s5 = inlined_call_operand.hbm [shape: f32[128,128], index: 5, kind: input, shape index: {}]
  %s6 = inlined_call_operand.vmem [shape: f32[1,128], index: 6, kind: input, shape index: {}]
  %s7 = inlined_call_operand.vmem [shape: f32[1,128], index: 7, kind: input, shape index: {}]
  %s8 = inlined_call_operand.hbm [shape: f32[128,128], index: 8, kind: input, shape index: {}]
  %s9 = inlined_call_operand.vmem [shape: f32[1,128], index: 9, kind: input, shape index: {}]
  %s10 = inlined_call_operand.vmem [shape: f32[64,1], index: 10, kind: input, shape index: {}]
  %s11 = inlined_call_operand.hbm [shape: f32[8,8,128], index: 11, kind: output, shape index: {0}]
  %s12 = inlined_call_operand.hbm [shape: f32[64,128], index: 12, kind: output, shape index: {1}]
  %13 = xla_tuple %s11, %s12
  %s14 = sld [smem:[#allocation0]]
  $region78: #{tpu_custom_call.1} parent=0
    _
  %s16 = ssub.s32 1, %s14
  %s17 = scalar_select 0, %s16, %s14
  $region1: #{tpu_custom_call.1} parent=0
    #allocation2 [shape = 'u8[524288]{0}', space=vmem, size = 0x80000, scoped, tag = 'input window, operand 1, single buffered']
    #allocation3 [shape = 's32[1]{0}', space=sflag, size = 0x4, scoped, tag = 'scoped memory for tpu_custom_call.1']
    #allocation4 [shape = 's32[1]{0}', space=sflag, size = 0x4, scoped, tag = 'scoped memory for tpu_custom_call.1']
    #allocation5 [shape = 'u8[524288]{0}', space=vmem, size = 0x80000, scoped, tag = 'input window, operand 3, single buffered']
    #allocation6 [shape = 's32[1]{0}', space=sflag, size = 0x4, scoped, tag = 'scoped memory for tpu_custom_call.1']
    #allocation7 [shape = 'u8[65536]{0}', space=vmem, size = 0x10000, scoped, tag = 'input window, operand 5, single buffered']
    #allocation8 [shape = 'u8[65536]{0}', space=vmem, size = 0x10000, scoped, tag = 'input window, operand 8, single buffered']
    #allocation9 [shape = 's32[1]{0}', space=sflag, size = 0x4, scoped, tag = 'scoped memory for tpu_custom_call.1']
    #allocation10 [shape = 'u8[32768]{0}', space=vmem, size = 0x8000, scoped, tag = 'output window, operand 0, single buffered']
    #allocation11 [shape = 'u8[32768]{0}', space=vmem, size = 0x8000, scoped, tag = 'output window, operand 1, single buffered']
    #allocation12 [shape = 's32[1]{0}', space=sflag, size = 0x4, scoped, tag = 'scoped memory for tpu_custom_call.1']
    %18 = vsyncpa [#allocation3], 0
    %19 = vsyncpa [#allocation6], 0
    %20 = vsyncpa [#allocation9], 0
    %21 = vsyncpa [#allocation4], 0
    %22 = vsyncpa [#allocation12], 0
    // Predicated region
    $region2: #{tpu_custom_call.1} parent=1 // pred_check
      _
    $region3: #{tpu_custom_call.1} parent=1 // pred_check_branch
      %24 = sbr.rel (0) target = $region5
    $region4: #{tpu_custom_call.1} parent=1 // pred_region
      _
    $region5: #{tpu_custom_call.1} parent=1 // pred_fallthru
      _
    // Predicated region
    $region6: #{tpu_custom_call.1} parent=1 // pred_check
      _
    $region7: #{tpu_custom_call.1} parent=1 // pred_check_branch
      %26 = sbr.rel (0) target = $region9
    $region8: #{tpu_custom_call.1} parent=1 // pred_region
      %s28 = ssub.s32 16384, 16384
      %29 = vsyncadd [#allocation3], %s28
      %s30 = sshll.u32 [#allocation2], 4
      %s31 = int_to_ptr.vmem [resolvable:$true] %s30
      %36 = dma.hbm_to_vmem [thread:$0]  %s1, 16384, %s31, [#allocation3], 512, 512, 32
    $region9: #{tpu_custom_call.1} parent=1 // pred_fallthru
      _
    // Predicated region
    $region10: #{tpu_custom_call.1} parent=1 // pred_check
      _
    $region11: #{tpu_custom_call.1} parent=1 // pred_check_branch
      %38 = sbr.rel (0) target = $region13
    $region12: #{tpu_custom_call.1} parent=1 // pred_region
      _
    $region13: #{tpu_custom_call.1} parent=1 // pred_fallthru
      _
    // Predicated region
    $region14: #{tpu_custom_call.1} parent=1 // pred_check
      _
    $region15: #{tpu_custom_call.1} parent=1 // pred_check_branch
      %40 = sbr.rel (0) target = $region17
    $region16: #{tpu_custom_call.1} parent=1 // pred_region
      %s42 = ssub.s32 16384, 16384
      %43 = vsyncadd [#allocation6], %s42
      %s44 = sshll.u32 [#allocation5], 4
      %s45 = int_to_ptr.vmem [resolvable:$true] %s44
      %50 = dma.hbm_to_vmem [thread:$0]  %s3, 16384, %s45, [#allocation6], 512, 512, 32
    $region17: #{tpu_custom_call.1} parent=1 // pred_fallthru
      _
    // Predicated region
    $region18: #{tpu_custom_call.1} parent=1 // pred_check
      _
    $region19: #{tpu_custom_call.1} parent=1 // pred_check_branch
      %52 = sbr.rel (0) target = $region21
    $region20: #{tpu_custom_call.1} parent=1 // pred_region
      _
    $region21: #{tpu_custom_call.1} parent=1 // pred_fallthru
      _
    // Predicated region
    $region22: #{tpu_custom_call.1} parent=1 // pred_check
      _
    $region23: #{tpu_custom_call.1} parent=1 // pred_check_branch
      %54 = sbr.rel (0) target = $region25
    $region24: #{tpu_custom_call.1} parent=1 // pred_region
      %s56 = ssub.s32 2048, 2048
      %57 = vsyncadd [#allocation6], %s56
      %s58 = sshll.u32 [#allocation7], 4
      %s59 = int_to_ptr.vmem [resolvable:$true] %s58
      %64 = dma.hbm_to_vmem [thread:$0]  %s5, 2048, %s59, [#allocation6], 128, 128, 8
    $region25: #{tpu_custom_call.1} parent=1 // pred_fallthru
      _
    // Predicated region
    $region26: #{tpu_custom_call.1} parent=1 // pred_check
      _
    $region27: #{tpu_custom_call.1} parent=1 // pred_check_branch
      %66 = sbr.rel (0) target = $region29
    $region28: #{tpu_custom_call.1} parent=1 // pred_region
      _
    $region29: #{tpu_custom_call.1} parent=1 // pred_fallthru
      _
    // Predicated region
    $region30: #{tpu_custom_call.1} parent=1 // pred_check
      _
    $region31: #{tpu_custom_call.1} parent=1 // pred_check_branch
      %68 = sbr.rel (0) target = $region33
    $region32: #{tpu_custom_call.1} parent=1 // pred_region
      _
    $region33: #{tpu_custom_call.1} parent=1 // pred_fallthru
      _
    // Predicated region
    $region34: #{tpu_custom_call.1} parent=1 // pred_check
      _
    $region35: #{tpu_custom_call.1} parent=1 // pred_check_branch
      %70 = sbr.rel (0) target = $region37
    $region36: #{tpu_custom_call.1} parent=1 // pred_region
      %s72 = ssub.s32 2048, 2048
      %73 = vsyncadd [#allocation9], %s72
      %s74 = sshll.u32 [#allocation8], 4
      %s75 = int_to_ptr.vmem [resolvable:$true] %s74
      %80 = dma.hbm_to_vmem [thread:$0]  %s8, 2048, %s75, [#allocation9], 128, 128, 8
    $region37: #{tpu_custom_call.1} parent=1 // pred_fallthru
      _
    // Predicated region
    $region38: #{tpu_custom_call.1} parent=1 // pred_check
      _
    $region39: #{tpu_custom_call.1} parent=1 // pred_check_branch
      %82 = sbr.rel (0) target = $region41
    $region40: #{tpu_custom_call.1} parent=1 // pred_region
      _
    $region41: #{tpu_custom_call.1} parent=1 // pred_fallthru
      _
    // Predicated region
    $region42: #{tpu_custom_call.1} parent=1 // pred_check
      _
    $region43: #{tpu_custom_call.1} parent=1 // pred_check_branch
      %84 = sbr.rel (0) target = $region45
    $region44: #{tpu_custom_call.1} parent=1 // pred_region
      _
    $region45: #{tpu_custom_call.1} parent=1 // pred_fallthru
      _
    // Predicated region
    $region46: #{tpu_custom_call.1} parent=1 // pred_check
      _
    $region47: #{tpu_custom_call.1} parent=1 // pred_check_branch
      %86 = sbr.rel (0) target = $region49
    $region48: #{tpu_custom_call.1} parent=1 // pred_region
      %87 = dma.done [#allocation3], 16384
    $region49: #{tpu_custom_call.1} parent=1 // pred_fallthru
      _
    // Predicated region
    $region50: #{tpu_custom_call.1} parent=1 // pred_check
      _
    $region51: #{tpu_custom_call.1} parent=1 // pred_check_branch
      %89 = sbr.rel (0) target = $region53
    $region52: #{tpu_custom_call.1} parent=1 // pred_region
      %90 = dma.done [#allocation6], 16384
    $region53: #{tpu_custom_call.1} parent=1 // pred_fallthru
      _
    // Predicated region
    $region54: #{tpu_custom_call.1} parent=1 // pred_check
      _
    $region55: #{tpu_custom_call.1} parent=1 // pred_check_branch
      %92 = sbr.rel (0) target = $region57
    $region56: #{tpu_custom_call.1} parent=1 // pred_region
      %93 = dma.done [#allocation6], 2048
    $region57: #{tpu_custom_call.1} parent=1 // pred_fallthru
      _
    // Predicated region
    $region58: #{tpu_custom_call.1} parent=1 // pred_check
      _
    $region59: #{tpu_custom_call.1} parent=1 // pred_check_branch
      %95 = sbr.rel (0) target = $region61
    $region60: #{tpu_custom_call.1} parent=1 // pred_region
      %96 = dma.done [#allocation9], 2048
    $region61: #{tpu_custom_call.1} parent=1 // pred_fallthru
      _
    %v97 = vld [vmem:[#allocation2] sm:$0xff]
    %v98 = vld [vmem:[#allocation2 + $0x8] sm:$0xff]
    %v99 = vld [vmem:[#allocation2 + $0x10] sm:$0xff]
    %v100 = vld [vmem:[#allocation2 + $0x18] sm:$0xff]
    %v101 = vld [vmem:[#allocation2 + $0x20] sm:$0xff]
    %v102 = vld [vmem:[#allocation2 + $0x28] sm:$0xff]
    %v103 = vld [vmem:[#allocation2 + $0x30] sm:$0xff]
    %v104 = vld [vmem:[#allocation2 + $0x38] sm:$0xff]
    %v105 = vld [vmem:[#allocation2 + $0x40] sm:$0xff]
    %v106 = vld [vmem:[#allocation2 + $0x48] sm:$0xff]
    %v107 = vld [vmem:[#allocation2 + $0x50] sm:$0xff]
    %v108 = vld [vmem:[#allocation2 + $0x58] sm:$0xff]
    %v109 = vld [vmem:[#allocation2 + $0x60] sm:$0xff]
    %v110 = vld [vmem:[#allocation2 + $0x68] sm:$0xff]
    %v111 = vld [vmem:[#allocation2 + $0x70] sm:$0xff]
    %v112 = vld [vmem:[#allocation2 + $0x78] sm:$0xff]
    %v113 = vld [vmem:[#allocation2 + $0x80] sm:$0xff]
    %v114 = vld [vmem:[#allocation2 + $0x88] sm:$0xff]
    %v115 = vld [vmem:[#allocation2 + $0x90] sm:$0xff]
    %v116 = vld [vmem:[#allocation2 + $0x98] sm:$0xff]
    %v117 = vld [vmem:[#allocation2 + $0xa0] sm:$0xff]
    %v118 = vld [vmem:[#allocation2 + $0xa8] sm:$0xff]
    %v119 = vld [vmem:[#allocation2 + $0xb0] sm:$0xff]
    %v120 = vld [vmem:[#allocation2 + $0xb8] sm:$0xff]
    %v121 = vld [vmem:[#allocation2 + $0xc0] sm:$0xff]
    %v122 = vld [vmem:[#allocation2 + $0xc8] sm:$0xff]
    %v123 = vld [vmem:[#allocation2 + $0xd0] sm:$0xff]
    %v124 = vld [vmem:[#allocation2 + $0xd8] sm:$0xff]
    %v125 = vld [vmem:[#allocation2 + $0xe0] sm:$0xff]
    %v126 = vld [vmem:[#allocation2 + $0xe8] sm:$0xff]
    %v127 = vld [vmem:[#allocation2 + $0xf0] sm:$0xff]
    %v128 = vld [vmem:[#allocation2 + $0xf8] sm:$0xff]
    %v129 = vld [vmem:[#allocation2 + $0x100] sm:$0xff]
    %v130 = vld [vmem:[#allocation2 + $0x108] sm:$0xff]
    %v131 = vld [vmem:[#allocation2 + $0x110] sm:$0xff]
    %v132 = vld [vmem:[#allocation2 + $0x118] sm:$0xff]
    %v133 = vld [vmem:[#allocation2 + $0x120] sm:$0xff]
    %v134 = vld [vmem:[#allocation2 + $0x128] sm:$0xff]
    %v135 = vld [vmem:[#allocation2 + $0x130] sm:$0xff]
    %v136 = vld [vmem:[#allocation2 + $0x138] sm:$0xff]
    %v137 = vld [vmem:[#allocation2 + $0x140] sm:$0xff]
    %v138 = vld [vmem:[#allocation2 + $0x148] sm:$0xff]
    %v139 = vld [vmem:[#allocation2 + $0x150] sm:$0xff]
    %v140 = vld [vmem:[#allocation2 + $0x158] sm:$0xff]
    %v141 = vld [vmem:[#allocation2 + $0x160] sm:$0xff]
    %v142 = vld [vmem:[#allocation2 + $0x168] sm:$0xff]
    %v143 = vld [vmem:[#allocation2 + $0x170] sm:$0xff]
    %v144 = vld [vmem:[#allocation2 + $0x178] sm:$0xff]
    %v145 = vld [vmem:[#allocation2 + $0x180] sm:$0xff]
    %v146 = vld [vmem:[#allocation2 + $0x188] sm:$0xff]
    %v147 = vld [vmem:[#allocation2 + $0x190] sm:$0xff]
    %v148 = vld [vmem:[#allocation2 + $0x198] sm:$0xff]
    %v149 = vld [vmem:[#allocation2 + $0x1a0] sm:$0xff]
    %v150 = vld [vmem:[#allocation2 + $0x1a8] sm:$0xff]
    %v151 = vld [vmem:[#allocation2 + $0x1b0] sm:$0xff]
    %v152 = vld [vmem:[#allocation2 + $0x1b8] sm:$0xff]
    %v153 = vld [vmem:[#allocation2 + $0x1c0] sm:$0xff]
    %v154 = vld [vmem:[#allocation2 + $0x1c8] sm:$0xff]
    %v155 = vld [vmem:[#allocation2 + $0x1d0] sm:$0xff]
    %v156 = vld [vmem:[#allocation2 + $0x1d8] sm:$0xff]
    %v157 = vld [vmem:[#allocation2 + $0x1e0] sm:$0xff]
    %v158 = vld [vmem:[#allocation2 + $0x1e8] sm:$0xff]
    %v159 = vld [vmem:[#allocation2 + $0x1f0] sm:$0xff]
    %v160 = vld [vmem:[#allocation2 + $0x1f8] sm:$0xff]
    %v161 = vld [vmem:[#allocation2 + $0x200] sm:$0xff]
    %v162 = vld [vmem:[#allocation2 + $0x208] sm:$0xff]
    %v163 = vld [vmem:[#allocation2 + $0x210] sm:$0xff]
    %v164 = vld [vmem:[#allocation2 + $0x218] sm:$0xff]
    %v165 = vld [vmem:[#allocation2 + $0x220] sm:$0xff]
    %v166 = vld [vmem:[#allocation2 + $0x228] sm:$0xff]
    %v167 = vld [vmem:[#allocation2 + $0x230] sm:$0xff]
    %v168 = vld [vmem:[#allocation2 + $0x238] sm:$0xff]
    %v169 = vld [vmem:[#allocation2 + $0x240] sm:$0xff]
    %v170 = vld [vmem:[#allocation2 + $0x248] sm:$0xff]
    %v171 = vld [vmem:[#allocation2 + $0x250] sm:$0xff]
    %v172 = vld [vmem:[#allocation2 + $0x258] sm:$0xff]
    %v173 = vld [vmem:[#allocation2 + $0x260] sm:$0xff]
    %v174 = vld [vmem:[#allocation2 + $0x268] sm:$0xff]
    %v175 = vld [vmem:[#allocation2 + $0x270] sm:$0xff]
    %v176 = vld [vmem:[#allocation2 + $0x278] sm:$0xff]
    %v177 = vld [vmem:[#allocation2 + $0x280] sm:$0xff]
    %v178 = vld [vmem:[#allocation2 + $0x288] sm:$0xff]
    %v179 = vld [vmem:[#allocation2 + $0x290] sm:$0xff]
    %v180 = vld [vmem:[#allocation2 + $0x298] sm:$0xff]
    %v181 = vld [vmem:[#allocation2 + $0x2a0] sm:$0xff]
    %v182 = vld [vmem:[#allocation2 + $0x2a8] sm:$0xff]
    %v183 = vld [vmem:[#allocation2 + $0x2b0] sm:$0xff]
    %v184 = vld [vmem:[#allocation2 + $0x2b8] sm:$0xff]
    %v185 = vld [vmem:[#allocation2 + $0x2c0] sm:$0xff]
    %v186 = vld [vmem:[#allocation2 + $0x2c8] sm:$0xff]
    %v187 = vld [vmem:[#allocation2 + $0x2d0] sm:$0xff]
    %v188 = vld [vmem:[#allocation2 + $0x2d8] sm:$0xff]
    %v189 = vld [vmem:[#allocation2 + $0x2e0] sm:$0xff]
    %v190 = vld [vmem:[#allocation2 + $0x2e8] sm:$0xff]
    %v191 = vld [vmem:[#allocation2 + $0x2f0] sm:$0xff]
    %v192 = vld [vmem:[#allocation2 + $0x2f8] sm:$0xff]
    %v193 = vld [vmem:[#allocation2 + $0x300] sm:$0xff]
    %v194 = vld [vmem:[#allocation2 + $0x308] sm:$0xff]
    %v195 = vld [vmem:[#allocation2 + $0x310] sm:$0xff]
    %v196 = vld [vmem:[#allocation2 + $0x318] sm:$0xff]
    %v197 = vld [vmem:[#allocation2 + $0x320] sm:$0xff]
    %v198 = vld [vmem:[#allocation2 + $0x328] sm:$0xff]
    %v199 = vld [vmem:[#allocation2 + $0x330] sm:$0xff]
    %v200 = vld [vmem:[#allocation2 + $0x338] sm:$0xff]
    %v201 = vld [vmem:[#allocation2 + $0x340] sm:$0xff]
    %v202 = vld [vmem:[#allocation2 + $0x348] sm:$0xff]
    %v203 = vld [vmem:[#allocation2 + $0x350] sm:$0xff]
    %v204 = vld [vmem:[#allocation2 + $0x358] sm:$0xff]
    %v205 = vld [vmem:[#allocation2 + $0x360] sm:$0xff]
    %v206 = vld [vmem:[#allocation2 + $0x368] sm:$0xff]
    %v207 = vld [vmem:[#allocation2 + $0x370] sm:$0xff]
    %v208 = vld [vmem:[#allocation2 + $0x378] sm:$0xff]
    %v209 = vld [vmem:[#allocation2 + $0x380] sm:$0xff]
    %v210 = vld [vmem:[#allocation2 + $0x388] sm:$0xff]
    %v211 = vld [vmem:[#allocation2 + $0x390] sm:$0xff]
    %v212 = vld [vmem:[#allocation2 + $0x398] sm:$0xff]
    %v213 = vld [vmem:[#allocation2 + $0x3a0] sm:$0xff]
    %v214 = vld [vmem:[#allocation2 + $0x3a8] sm:$0xff]
    %v215 = vld [vmem:[#allocation2 + $0x3b0] sm:$0xff]
    %v216 = vld [vmem:[#allocation2 + $0x3b8] sm:$0xff]
    %v217 = vld [vmem:[#allocation2 + $0x3c0] sm:$0xff]
    %v218 = vld [vmem:[#allocation2 + $0x3c8] sm:$0xff]
    %v219 = vld [vmem:[#allocation2 + $0x3d0] sm:$0xff]
    %v220 = vld [vmem:[#allocation2 + $0x3d8] sm:$0xff]
    %v221 = vld [vmem:[#allocation2 + $0x3e0] sm:$0xff]
    %v222 = vld [vmem:[#allocation2 + $0x3e8] sm:$0xff]
    %v223 = vld [vmem:[#allocation2 + $0x3f0] sm:$0xff]
    %v224 = vld [vmem:[#allocation2 + $0x3f8] sm:$0xff]
    %v225 = vld [vmem:[#allocation5] sm:$0xff]
    %v226 = vld [vmem:[#allocation5 + $0x8] sm:$0xff]
    %v227 = vld [vmem:[#allocation5 + $0x10] sm:$0xff]
    %v228 = vld [vmem:[#allocation5 + $0x18] sm:$0xff]
    %v229 = vld [vmem:[#allocation5 + $0x20] sm:$0xff]
    %v230 = vld [vmem:[#allocation5 + $0x28] sm:$0xff]
    %v231 = vld [vmem:[#allocation5 + $0x30] sm:$0xff]
    %v232 = vld [vmem:[#allocation5 + $0x38] sm:$0xff]
    %v233 = vld [vmem:[#allocation5 + $0x40] sm:$0xff]
    %v234 = vld [vmem:[#allocation5 + $0x48] sm:$0xff]
    %v235 = vld [vmem:[#allocation5 + $0x50] sm:$0xff]
    %v236 = vld [vmem:[#allocation5 + $0x58] sm:$0xff]
    %v237 = vld [vmem:[#allocation5 + $0x60] sm:$0xff]
    %v238 = vld [vmem:[#allocation5 + $0x68] sm:$0xff]
    %v239 = vld [vmem:[#allocation5 + $0x70] sm:$0xff]
    %v240 = vld [vmem:[#allocation5 + $0x78] sm:$0xff]
    %v241 = vld [vmem:[#allocation5 + $0x80] sm:$0xff]
    %v242 = vld [vmem:[#allocation5 + $0x88] sm:$0xff]
    %v243 = vld [vmem:[#allocation5 + $0x90] sm:$0xff]
    %v244 = vld [vmem:[#allocation5 + $0x98] sm:$0xff]
    %v245 = vld [vmem:[#allocation5 + $0xa0] sm:$0xff]
    %v246 = vld [vmem:[#allocation5 + $0xa8] sm:$0xff]
    %v247 = vld [vmem:[#allocation5 + $0xb0] sm:$0xff]
    %v248 = vld [vmem:[#allocation5 + $0xb8] sm:$0xff]
    %v249 = vld [vmem:[#allocation5 + $0xc0] sm:$0xff]
    %v250 = vld [vmem:[#allocation5 + $0xc8] sm:$0xff]
    %v251 = vld [vmem:[#allocation5 + $0xd0] sm:$0xff]
    %v252 = vld [vmem:[#allocation5 + $0xd8] sm:$0xff]
    %v253 = vld [vmem:[#allocation5 + $0xe0] sm:$0xff]
    %v254 = vld [vmem:[#allocation5 + $0xe8] sm:$0xff]
    %v255 = vld [vmem:[#allocation5 + $0xf0] sm:$0xff]
    %v256 = vld [vmem:[#allocation5 + $0xf8] sm:$0xff]
    %v257 = vld [vmem:[#allocation5 + $0x100] sm:$0xff]
    %v258 = vld [vmem:[#allocation5 + $0x108] sm:$0xff]
    %v259 = vld [vmem:[#allocation5 + $0x110] sm:$0xff]
    %v260 = vld [vmem:[#allocation5 + $0x118] sm:$0xff]
    %v261 = vld [vmem:[#allocation5 + $0x120] sm:$0xff]
    %v262 = vld [vmem:[#allocation5 + $0x128] sm:$0xff]
    %v263 = vld [vmem:[#allocation5 + $0x130] sm:$0xff]
    %v264 = vld [vmem:[#allocation5 + $0x138] sm:$0xff]
    %v265 = vld [vmem:[#allocation5 + $0x140] sm:$0xff]
    %v266 = vld [vmem:[#allocation5 + $0x148] sm:$0xff]
    %v267 = vld [vmem:[#allocation5 + $0x150] sm:$0xff]
    %v268 = vld [vmem:[#allocation5 + $0x158] sm:$0xff]
    %v269 = vld [vmem:[#allocation5 + $0x160] sm:$0xff]
    %v270 = vld [vmem:[#allocation5 + $0x168] sm:$0xff]
    %v271 = vld [vmem:[#allocation5 + $0x170] sm:$0xff]
    %v272 = vld [vmem:[#allocation5 + $0x178] sm:$0xff]
    %v273 = vld [vmem:[#allocation5 + $0x180] sm:$0xff]
    %v274 = vld [vmem:[#allocation5 + $0x188] sm:$0xff]
    %v275 = vld [vmem:[#allocation5 + $0x190] sm:$0xff]
    %v276 = vld [vmem:[#allocation5 + $0x198] sm:$0xff]
    %v277 = vld [vmem:[#allocation5 + $0x1a0] sm:$0xff]
    %v278 = vld [vmem:[#allocation5 + $0x1a8] sm:$0xff]
    %v279 = vld [vmem:[#allocation5 + $0x1b0] sm:$0xff]
    %v280 = vld [vmem:[#allocation5 + $0x1b8] sm:$0xff]
    %v281 = vld [vmem:[#allocation5 + $0x1c0] sm:$0xff]
    %v282 = vld [vmem:[#allocation5 + $0x1c8] sm:$0xff]
    %v283 = vld [vmem:[#allocation5 + $0x1d0] sm:$0xff]
    %v284 = vld [vmem:[#allocation5 + $0x1d8] sm:$0xff]
    %v285 = vld [vmem:[#allocation5 + $0x1e0] sm:$0xff]
    %v286 = vld [vmem:[#allocation5 + $0x1e8] sm:$0xff]
    %v287 = vld [vmem:[#allocation5 + $0x1f0] sm:$0xff]
    %v288 = vld [vmem:[#allocation5 + $0x1f8] sm:$0xff]
    %v289 = vld [vmem:[#allocation5 + $0x200] sm:$0xff]
    %v290 = vld [vmem:[#allocation5 + $0x208] sm:$0xff]
    %v291 = vld [vmem:[#allocation5 + $0x210] sm:$0xff]
    %v292 = vld [vmem:[#allocation5 + $0x218] sm:$0xff]
    %v293 = vld [vmem:[#allocation5 + $0x220] sm:$0xff]
    %v294 = vld [vmem:[#allocation5 + $0x228] sm:$0xff]
    %v295 = vld [vmem:[#allocation5 + $0x230] sm:$0xff]
    %v296 = vld [vmem:[#allocation5 + $0x238] sm:$0xff]
    %v297 = vld [vmem:[#allocation5 + $0x240] sm:$0xff]
    %v298 = vld [vmem:[#allocation5 + $0x248] sm:$0xff]
    %v299 = vld [vmem:[#allocation5 + $0x250] sm:$0xff]
    %v300 = vld [vmem:[#allocation5 + $0x258] sm:$0xff]
    %v301 = vld [vmem:[#allocation5 + $0x260] sm:$0xff]
    %v302 = vld [vmem:[#allocation5 + $0x268] sm:$0xff]
    %v303 = vld [vmem:[#allocation5 + $0x270] sm:$0xff]
    %v304 = vld [vmem:[#allocation5 + $0x278] sm:$0xff]
    %v305 = vld [vmem:[#allocation5 + $0x280] sm:$0xff]
    %v306 = vld [vmem:[#allocation5 + $0x288] sm:$0xff]
    %v307 = vld [vmem:[#allocation5 + $0x290] sm:$0xff]
    %v308 = vld [vmem:[#allocation5 + $0x298] sm:$0xff]
    %v309 = vld [vmem:[#allocation5 + $0x2a0] sm:$0xff]
    %v310 = vld [vmem:[#allocation5 + $0x2a8] sm:$0xff]
    %v311 = vld [vmem:[#allocation5 + $0x2b0] sm:$0xff]
    %v312 = vld [vmem:[#allocation5 + $0x2b8] sm:$0xff]
    %v313 = vld [vmem:[#allocation5 + $0x2c0] sm:$0xff]
    %v314 = vld [vmem:[#allocation5 + $0x2c8] sm:$0xff]
    %v315 = vld [vmem:[#allocation5 + $0x2d0] sm:$0xff]
    %v316 = vld [vmem:[#allocation5 + $0x2d8] sm:$0xff]
    %v317 = vld [vmem:[#allocation5 + $0x2e0] sm:$0xff]
    %v318 = vld [vmem:[#allocation5 + $0x2e8] sm:$0xff]
    %v319 = vld [vmem:[#allocation5 + $0x2f0] sm:$0xff]
    %v320 = vld [vmem:[#allocation5 + $0x2f8] sm:$0xff]
    %v321 = vld [vmem:[#allocation5 + $0x300] sm:$0xff]
    %v322 = vld [vmem:[#allocation5 + $0x308] sm:$0xff]
    %v323 = vld [vmem:[#allocation5 + $0x310] sm:$0xff]
    %v324 = vld [vmem:[#allocation5 + $0x318] sm:$0xff]
    %v325 = vld [vmem:[#allocation5 + $0x320] sm:$0xff]
    %v326 = vld [vmem:[#allocation5 + $0x328] sm:$0xff]
    %v327 = vld [vmem:[#allocation5 + $0x330] sm:$0xff]
    %v328 = vld [vmem:[#allocation5 + $0x338] sm:$0xff]
    %v329 = vld [vmem:[#allocation5 + $0x340] sm:$0xff]
    %v330 = vld [vmem:[#allocation5 + $0x348] sm:$0xff]
    %v331 = vld [vmem:[#allocation5 + $0x350] sm:$0xff]
    %v332 = vld [vmem:[#allocation5 + $0x358] sm:$0xff]
    %v333 = vld [vmem:[#allocation5 + $0x360] sm:$0xff]
    %v334 = vld [vmem:[#allocation5 + $0x368] sm:$0xff]
    %v335 = vld [vmem:[#allocation5 + $0x370] sm:$0xff]
    %v336 = vld [vmem:[#allocation5 + $0x378] sm:$0xff]
    %v337 = vld [vmem:[#allocation5 + $0x380] sm:$0xff]
    %v338 = vld [vmem:[#allocation5 + $0x388] sm:$0xff]
    %v339 = vld [vmem:[#allocation5 + $0x390] sm:$0xff]
    %v340 = vld [vmem:[#allocation5 + $0x398] sm:$0xff]
    %v341 = vld [vmem:[#allocation5 + $0x3a0] sm:$0xff]
    %v342 = vld [vmem:[#allocation5 + $0x3a8] sm:$0xff]
    %v343 = vld [vmem:[#allocation5 + $0x3b0] sm:$0xff]
    %v344 = vld [vmem:[#allocation5 + $0x3b8] sm:$0xff]
    %v345 = vld [vmem:[#allocation5 + $0x3c0] sm:$0xff]
    %v346 = vld [vmem:[#allocation5 + $0x3c8] sm:$0xff]
    %v347 = vld [vmem:[#allocation5 + $0x3d0] sm:$0xff]
    %v348 = vld [vmem:[#allocation5 + $0x3d8] sm:$0xff]
    %v349 = vld [vmem:[#allocation5 + $0x3e0] sm:$0xff]
    %v350 = vld [vmem:[#allocation5 + $0x3e8] sm:$0xff]
    %v351 = vld [vmem:[#allocation5 + $0x3f0] sm:$0xff]
    %v352 = vld [vmem:[#allocation5 + $0x3f8] sm:$0xff]
    %v353 = vld [vmem:[%s2] sm:$0xf]
    %v355 = vlaneseq
    %v356 = vshrl.u32 %v355, 7
    %v357 = vsub.s32 0, %v356
    %v358 = vrot.slane %v353, %v357
    %v359 = vlaneseq
    %v360 = vshrl.u32 %v359, 7
    %v361 = vsub.s32 1, %v360
    %v362 = vrot.slane %v353, %v361
    %v363 = vlaneseq
    %v364 = vshrl.u32 %v363, 7
    %v365 = vsub.s32 2, %v364
    %v366 = vrot.slane %v353, %v365
    %v367 = vlaneseq
    %v368 = vshrl.u32 %v367, 7
    %v369 = vsub.s32 3, %v368
    %v370 = vrot.slane %v353, %v369
    %v375 = vld [vmem:[%s4] sm:$0xf]
    %v377 = vlaneseq
    %v378 = vshrl.u32 %v377, 7
    %v379 = vsub.s32 0, %v378
    %v380 = vrot.slane %v375, %v379
    %v381 = vlaneseq
    %v382 = vshrl.u32 %v381, 7
    %v383 = vsub.s32 1, %v382
    %v384 = vrot.slane %v375, %v383
    %v385 = vlaneseq
    %v386 = vshrl.u32 %v385, 7
    %v387 = vsub.s32 2, %v386
    %v388 = vrot.slane %v375, %v387
    %v389 = vlaneseq
    %v390 = vshrl.u32 %v389, 7
    %v391 = vsub.s32 3, %v390
    %v392 = vrot.slane %v375, %v391
    %v397 = vld [vmem:[%s0] sm:$0xff]
    %398 = vmatprep.subr.mxu0 %v158
    %399 = vmatpush1.msra.mxu0 %v157
    %400 = vmatprep.subr.mxu0 %v154
    %401 = vmatpush1.msra.mxu0 %v153
    %402 = vmatprep.subr.mxu0 %v150
    %403 = vmatpush1.msra.mxu0 %v149
    %404 = vmatprep.subr.mxu0 %v146
    %405 = vmatpush1.msra.mxu0 %v145
    %406 = vmatprep.subr.mxu0 %v142
    %407 = vmatpush1.msra.mxu0 %v141
    %408 = vmatprep.subr.mxu0 %v138
    %409 = vmatpush1.msra.mxu0 %v137
    %410 = vmatprep.subr.mxu0 %v134
    %411 = vmatpush1.msra.mxu0 %v133
    %412 = vmatprep.subr.mxu0 %v130
    %413 = vmatpush1.msra.mxu0 %v129
    %414 = vmatprep.subr.mxu0 %v126
    %415 = vmatpush1.msra.mxu0 %v125
    %416 = vmatprep.subr.mxu0 %v122
    %417 = vmatpush1.msra.mxu0 %v121
    %418 = vmatprep.subr.mxu0 %v118
    %419 = vmatpush1.msra.mxu0 %v117
    %420 = vmatprep.subr.mxu0 %v114
    %421 = vmatpush1.msra.mxu0 %v113
    %422 = vmatprep.subr.mxu0 %v110
    %423 = vmatpush1.msra.mxu0 %v109
    %424 = vmatprep.subr.mxu0 %v106
    %425 = vmatpush1.msra.mxu0 %v105
    %426 = vmatprep.subr.mxu0 %v102
    %427 = vmatpush1.msra.mxu0 %v101
    %428 = vmatprep.subr.mxu0 %v98
    %429 = vmatpush1.msra.mxu0 %v97
    %430 = vmatprep.subr.mxu0 %v222
    %431 = vmatpush2.msra.mxu0 %v221
    %432 = vmatprep.subr.mxu0 %v218
    %433 = vmatpush2.msra.mxu0 %v217
    %434 = vmatprep.subr.mxu0 %v214
    %435 = vmatpush2.msra.mxu0 %v213
    %436 = vmatprep.subr.mxu0 %v210
    %437 = vmatpush2.msra.mxu0 %v209
    %438 = vmatprep.subr.mxu0 %v206
    %439 = vmatpush2.msra.mxu0 %v205
    %440 = vmatprep.subr.mxu0 %v202
    %441 = vmatpush2.msra.mxu0 %v201
    %442 = vmatprep.subr.mxu0 %v198
    %443 = vmatpush2.msra.mxu0 %v197
    %444 = vmatprep.subr.mxu0 %v194
    %445 = vmatpush2.msra.mxu0 %v193
    %446 = vmatprep.subr.mxu0 %v190
    %447 = vmatpush2.msra.mxu0 %v189
    %448 = vmatprep.subr.mxu0 %v186
    %449 = vmatpush2.msra.mxu0 %v185
    %450 = vmatprep.subr.mxu0 %v182
    %451 = vmatpush2.msra.mxu0 %v181
    %452 = vmatprep.subr.mxu0 %v178
    %453 = vmatpush2.msra.mxu0 %v177
    %454 = vmatprep.subr.mxu0 %v174
    %455 = vmatpush2.msra.mxu0 %v173
    %456 = vmatprep.subr.mxu0 %v170
    %457 = vmatpush2.msra.mxu0 %v169
    %458 = vmatprep.subr.mxu0 %v166
    %459 = vmatpush2.msra.mxu0 %v165
    %460 = vmatprep.subr.mxu0 %v162
    %461 = vmatpush2.msra.mxu0 %v161
    %462 = vmatprep.mubr.f32.mxu0 0.0
    %463 = vmatmul.mubr.f32.gmra.mxu0 %v397
    %v464 = vpop.f32.mrf.mxu0
    %v465 = vadd.f32 %v358, %v464
    %v466 = vpop.f32.mrf.mxu0
    %v467 = vadd.f32 %v362, %v466
    %468 = vdwg.mxu0
    %469 = vmatprep.subr.mxu0 %v160
    %470 = vmatpush1.msra.mxu0 %v159
    %471 = vmatprep.subr.mxu0 %v156
    %472 = vmatpush1.msra.mxu0 %v155
    %473 = vmatprep.subr.mxu0 %v152
    %474 = vmatpush1.msra.mxu0 %v151
    %475 = vmatprep.subr.mxu0 %v148
    %476 = vmatpush1.msra.mxu0 %v147
    %477 = vmatprep.subr.mxu0 %v144
    %478 = vmatpush1.msra.mxu0 %v143
    %479 = vmatprep.subr.mxu0 %v140
    %480 = vmatpush1.msra.mxu0 %v139
    %481 = vmatprep.subr.mxu0 %v136
    %482 = vmatpush1.msra.mxu0 %v135
    %483 = vmatprep.subr.mxu0 %v132
    %484 = vmatpush1.msra.mxu0 %v131
    %485 = vmatprep.subr.mxu0 %v128
    %486 = vmatpush1.msra.mxu0 %v127
    %487 = vmatprep.subr.mxu0 %v124
    %488 = vmatpush1.msra.mxu0 %v123
    %489 = vmatprep.subr.mxu0 %v120
    %490 = vmatpush1.msra.mxu0 %v119
    %491 = vmatprep.subr.mxu0 %v116
    %492 = vmatpush1.msra.mxu0 %v115
    %493 = vmatprep.subr.mxu0 %v112
    %494 = vmatpush1.msra.mxu0 %v111
    %495 = vmatprep.subr.mxu0 %v108
    %496 = vmatpush1.msra.mxu0 %v107
    %497 = vmatprep.subr.mxu0 %v104
    %498 = vmatpush1.msra.mxu0 %v103
    %499 = vmatprep.subr.mxu0 %v100
    %500 = vmatpush1.msra.mxu0 %v99
    %501 = vmatprep.subr.mxu0 %v224
    %502 = vmatpush2.msra.mxu0 %v223
    %503 = vmatprep.subr.mxu0 %v220
    %504 = vmatpush2.msra.mxu0 %v219
    %505 = vmatprep.subr.mxu0 %v216
    %506 = vmatpush2.msra.mxu0 %v215
    %507 = vmatprep.subr.mxu0 %v212
    %508 = vmatpush2.msra.mxu0 %v211
    %509 = vmatprep.subr.mxu0 %v208
    %510 = vmatpush2.msra.mxu0 %v207
    %511 = vmatprep.subr.mxu0 %v204
    %512 = vmatpush2.msra.mxu0 %v203
    %513 = vmatprep.subr.mxu0 %v200
    %514 = vmatpush2.msra.mxu0 %v199
    %515 = vmatprep.subr.mxu0 %v196
    %516 = vmatpush2.msra.mxu0 %v195
    %517 = vmatprep.subr.mxu0 %v192
    %518 = vmatpush2.msra.mxu0 %v191
    %519 = vmatprep.subr.mxu0 %v188
    %520 = vmatpush2.msra.mxu0 %v187
    %521 = vmatprep.subr.mxu0 %v184
    %522 = vmatpush2.msra.mxu0 %v183
    %523 = vmatprep.subr.mxu0 %v180
    %524 = vmatpush2.msra.mxu0 %v179
    %525 = vmatprep.subr.mxu0 %v176
    %526 = vmatpush2.msra.mxu0 %v175
    %527 = vmatprep.subr.mxu0 %v172
    %528 = vmatpush2.msra.mxu0 %v171
    %529 = vmatprep.subr.mxu0 %v168
    %530 = vmatpush2.msra.mxu0 %v167
    %531 = vmatprep.subr.mxu0 %v164
    %532 = vmatpush2.msra.mxu0 %v163
    %533 = vmatprep.mubr.f32.mxu0 0.0
    %534 = vmatmul.mubr.f32.gmra.mxu0 %v397
    %v535 = vpop.f32.mrf.mxu0
    %v536 = vadd.f32 %v366, %v535
    %v537 = vpop.f32.mrf.mxu0
    %v538 = vadd.f32 %v370, %v537
    %539 = vdwg.mxu0
    %v540 = vxor.u32 %v465, 2147483648
    %v541 = vmul.f32 %v540, 1.442695
    %v542 = vpow.pop %v541
    %v543 = vadd.f32 %v542, 1.0
    %v544 = vrcp.pop %v543
    %v545 = vmul.f32 1.0, %v544
    %v546 = vxor.u32 %v467, 2147483648
    %v547 = vmul.f32 %v546, 1.442695
    %v548 = vpow.pop %v547
    %v549 = vadd.f32 %v548, 1.0
    %v550 = vrcp.pop %v549
    %v551 = vmul.f32 1.0, %v550
    %v552 = vtanh.pop %v536
    %v553 = vxor.u32 %v538, 2147483648
    %v554 = vmul.f32 %v553, 1.442695
    %v555 = vpow.pop %v554
    %v556 = vadd.f32 %v555, 1.0
    %v557 = vrcp.pop %v556
    %v558 = vmul.f32 1.0, %v557
    %v559 = vmul.f32 %v551, 0.0
    %v560 = vmul.f32 %v545, %v552
    %v561 = vadd.f32 %v559, %v560
    %v562 = vtanh.pop %v561
    %v563 = vmul.f32 %v558, %v562
    %564 = vmatprep.subr.mxu0 %v286
    %565 = vmatpush1.msra.mxu0 %v285
    %566 = vmatprep.subr.mxu0 %v282
    %567 = vmatpush1.msra.mxu0 %v281
    %568 = vmatprep.subr.mxu0 %v278
    %569 = vmatpush1.msra.mxu0 %v277
    %570 = vmatprep.subr.mxu0 %v274
    %571 = vmatpush1.msra.mxu0 %v273
    %572 = vmatprep.subr.mxu0 %v270
    %573 = vmatpush1.msra.mxu0 %v269
    %574 = vmatprep.subr.mxu0 %v266
    %575 = vmatpush1.msra.mxu0 %v265
    %576 = vmatprep.subr.mxu0 %v262
    %577 = vmatpush1.msra.mxu0 %v261
    %578 = vmatprep.subr.mxu0 %v258
    %579 = vmatpush1.msra.mxu0 %v257
    %580 = vmatprep.subr.mxu0 %v254
    %581 = vmatpush1.msra.mxu0 %v253
    %582 = vmatprep.subr.mxu0 %v250
    %583 = vmatpush1.msra.mxu0 %v249
    %584 = vmatprep.subr.mxu0 %v246
    %585 = vmatpush1.msra.mxu0 %v245
    %586 = vmatprep.subr.mxu0 %v242
    %587 = vmatpush1.msra.mxu0 %v241
    %588 = vmatprep.subr.mxu0 %v238
    %589 = vmatpush1.msra.mxu0 %v237
    %590 = vmatprep.subr.mxu0 %v234
    %591 = vmatpush1.msra.mxu0 %v233
    %592 = vmatprep.subr.mxu0 %v230
    %593 = vmatpush1.msra.mxu0 %v229
    %594 = vmatprep.subr.mxu0 %v226
    %595 = vmatpush1.msra.mxu0 %v225
    %596 = vmatprep.subr.mxu0 %v350
    %597 = vmatpush2.msra.mxu0 %v349
    %598 = vmatprep.subr.mxu0 %v346
    %599 = vmatpush2.msra.mxu0 %v345
    %600 = vmatprep.subr.mxu0 %v342
    %601 = vmatpush2.msra.mxu0 %v341
    %602 = vmatprep.subr.mxu0 %v338
    %603 = vmatpush2.msra.mxu0 %v337
    %604 = vmatprep.subr.mxu0 %v334
    %605 = vmatpush2.msra.mxu0 %v333
    %606 = vmatprep.subr.mxu0 %v330
    %607 = vmatpush2.msra.mxu0 %v329
    %608 = vmatprep.subr.mxu0 %v326
    %609 = vmatpush2.msra.mxu0 %v325
    %610 = vmatprep.subr.mxu0 %v322
    %611 = vmatpush2.msra.mxu0 %v321
    %612 = vmatprep.subr.mxu0 %v318
    %613 = vmatpush2.msra.mxu0 %v317
    %614 = vmatprep.subr.mxu0 %v314
    %615 = vmatpush2.msra.mxu0 %v313
    %616 = vmatprep.subr.mxu0 %v310
    %617 = vmatpush2.msra.mxu0 %v309
    %618 = vmatprep.subr.mxu0 %v306
    %619 = vmatpush2.msra.mxu0 %v305
    %620 = vmatprep.subr.mxu0 %v302
    %621 = vmatpush2.msra.mxu0 %v301
    %622 = vmatprep.subr.mxu0 %v298
    %623 = vmatpush2.msra.mxu0 %v297
    %624 = vmatprep.subr.mxu0 %v294
    %625 = vmatpush2.msra.mxu0 %v293
    %626 = vmatprep.subr.mxu0 %v290
    %627 = vmatpush2.msra.mxu0 %v289
    %628 = vmatprep.mubr.f32.mxu0 0.0
    %629 = vmatmul.mubr.f32.gmra.mxu0 %v563
    %v630 = vpop.f32.mrf.mxu0
    %v631 = vadd.f32 %v380, %v630
    %v632 = vpop.f32.mrf.mxu0
    %v633 = vadd.f32 %v384, %v632
    %634 = vdwg.mxu0
    %635 = vmatprep.subr.mxu0 %v288
    %636 = vmatpush1.msra.mxu0 %v287
    %637 = vmatprep.subr.mxu0 %v284
    %638 = vmatpush1.msra.mxu0 %v283
    %639 = vmatprep.subr.mxu0 %v280
    %640 = vmatpush1.msra.mxu0 %v279
    %641 = vmatprep.subr.mxu0 %v276
    %642 = vmatpush1.msra.mxu0 %v275
    %643 = vmatprep.subr.mxu0 %v272
    %644 = vmatpush1.msra.mxu0 %v271
    %645 = vmatprep.subr.mxu0 %v268
    %646 = vmatpush1.msra.mxu0 %v267
    %647 = vmatprep.subr.mxu0 %v264
    %648 = vmatpush1.msra.mxu0 %v263
    %649 = vmatprep.subr.mxu0 %v260
    %650 = vmatpush1.msra.mxu0 %v259
    %651 = vmatprep.subr.mxu0 %v256
    %652 = vmatpush1.msra.mxu0 %v255
    %653 = vmatprep.subr.mxu0 %v252
    %654 = vmatpush1.msra.mxu0 %v251
    %655 = vmatprep.subr.mxu0 %v248
    %656 = vmatpush1.msra.mxu0 %v247
    %657 = vmatprep.subr.mxu0 %v244
    %658 = vmatpush1.msra.mxu0 %v243
    %659 = vmatprep.subr.mxu0 %v240
    %660 = vmatpush1.msra.mxu0 %v239
    %661 = vmatprep.subr.mxu0 %v236
    %662 = vmatpush1.msra.mxu0 %v235
    %663 = vmatprep.subr.mxu0 %v232
    %664 = vmatpush1.msra.mxu0 %v231
    %665 = vmatprep.subr.mxu0 %v228
    %666 = vmatpush1.msra.mxu0 %v227
    %667 = vmatprep.subr.mxu0 %v352
    %668 = vmatpush2.msra.mxu0 %v351
    %669 = vmatprep.subr.mxu0 %v348
    %670 = vmatpush2.msra.mxu0 %v347
    %671 = vmatprep.subr.mxu0 %v344
    %672 = vmatpush2.msra.mxu0 %v343
    %673 = vmatprep.subr.mxu0 %v340
    %674 = vmatpush2.msra.mxu0 %v339
    %675 = vmatprep.subr.mxu0 %v336
    %676 = vmatpush2.msra.mxu0 %v335
    %677 = vmatprep.subr.mxu0 %v332
    %678 = vmatpush2.msra.mxu0 %v331
    %679 = vmatprep.subr.mxu0 %v328
    %680 = vmatpush2.msra.mxu0 %v327
    %681 = vmatprep.subr.mxu0 %v324
    %682 = vmatpush2.msra.mxu0 %v323
    %683 = vmatprep.subr.mxu0 %v320
    %684 = vmatpush2.msra.mxu0 %v319
    %685 = vmatprep.subr.mxu0 %v316
    %686 = vmatpush2.msra.mxu0 %v315
    %687 = vmatprep.subr.mxu0 %v312
    %688 = vmatpush2.msra.mxu0 %v311
    %689 = vmatprep.subr.mxu0 %v308
    %690 = vmatpush2.msra.mxu0 %v307
    %691 = vmatprep.subr.mxu0 %v304
    %692 = vmatpush2.msra.mxu0 %v303
    %693 = vmatprep.subr.mxu0 %v300
    %694 = vmatpush2.msra.mxu0 %v299
    %695 = vmatprep.subr.mxu0 %v296
    %696 = vmatpush2.msra.mxu0 %v295
    %697 = vmatprep.subr.mxu0 %v292
    %698 = vmatpush2.msra.mxu0 %v291
    %699 = vmatprep.mubr.f32.mxu0 0.0
    %700 = vmatmul.mubr.f32.gmra.mxu0 %v563
    %v701 = vpop.f32.mrf.mxu0
    %v702 = vadd.f32 %v388, %v701
    %v703 = vpop.f32.mrf.mxu0
    %v704 = vadd.f32 %v392, %v703
    %705 = vdwg.mxu0
    %v706 = vxor.u32 %v631, 2147483648
    %v707 = vmul.f32 %v706, 1.442695
    %v708 = vpow.pop %v707
    %v709 = vadd.f32 %v708, 1.0
    %v710 = vrcp.pop %v709
    %v711 = vmul.f32 1.0, %v710
    %v712 = vxor.u32 %v633, 2147483648
    %v713 = vmul.f32 %v712, 1.442695
    %v714 = vpow.pop %v713
    %v715 = vadd.f32 %v714, 1.0
    %v716 = vrcp.pop %v715
    %v717 = vmul.f32 1.0, %v716
    %v718 = vtanh.pop %v702
    %v719 = vxor.u32 %v704, 2147483648
    %v720 = vmul.f32 %v719, 1.442695
    %v721 = vpow.pop %v720
    %v722 = vadd.f32 %v721, 1.0
    %v723 = vrcp.pop %v722
    %v724 = vmul.f32 1.0, %v723
    %v725 = vmul.f32 %v717, 0.0
    %v726 = vmul.f32 %v711, %v718
    %v727 = vadd.f32 %v725, %v726
    %v728 = vtanh.pop %v727
    %v729 = vmul.f32 %v724, %v728
    %v730 = vadd.f32 %v563, %v729
    %731 = vst [vmem:[#allocation10] sm:$0xff] %v730
    %s732 = scalar_lea.vmem %s0, 8
    %v733 = vld [vmem:[%s732] sm:$0xff]
    %734 = vmatprep.subr.mxu0 %v158
    %735 = vmatpush1.msra.mxu0 %v157
    %736 = vmatprep.subr.mxu0 %v154
    %737 = vmatpush1.msra.mxu0 %v153
    %738 = vmatprep.subr.mxu0 %v150
    %739 = vmatpush1.msra.mxu0 %v149
    %740 = vmatprep.subr.mxu0 %v146
    %741 = vmatpush1.msra.mxu0 %v145
    %742 = vmatprep.subr.mxu0 %v142
    %743 = vmatpush1.msra.mxu0 %v141
    %744 = vmatprep.subr.mxu0 %v138
    %745 = vmatpush1.msra.mxu0 %v137
    %746 = vmatprep.subr.mxu0 %v134
    %747 = vmatpush1.msra.mxu0 %v133
    %748 = vmatprep.subr.mxu0 %v130
    %749 = vmatpush1.msra.mxu0 %v129
    %750 = vmatprep.subr.mxu0 %v126
    %751 = vmatpush1.msra.mxu0 %v125
    %752 = vmatprep.subr.mxu0 %v122
    %753 = vmatpush1.msra.mxu0 %v121
    %754 = vmatprep.subr.mxu0 %v118
    %755 = vmatpush1.msra.mxu0 %v117
    %756 = vmatprep.subr.mxu0 %v114
    %757 = vmatpush1.msra.mxu0 %v113
    %758 = vmatprep.subr.mxu0 %v110
    %759 = vmatpush1.msra.mxu0 %v109
    %760 = vmatprep.subr.mxu0 %v106
    %761 = vmatpush1.msra.mxu0 %v105
    %762 = vmatprep.subr.mxu0 %v102
    %763 = vmatpush1.msra.mxu0 %v101
    %764 = vmatprep.subr.mxu0 %v98
    %765 = vmatpush1.msra.mxu0 %v97
    %766 = vmatprep.subr.mxu0 %v222
    %767 = vmatpush2.msra.mxu0 %v221
    %768 = vmatprep.subr.mxu0 %v218
    %769 = vmatpush2.msra.mxu0 %v217
    %770 = vmatprep.subr.mxu0 %v214
    %771 = vmatpush2.msra.mxu0 %v213
    %772 = vmatprep.subr.mxu0 %v210
    %773 = vmatpush2.msra.mxu0 %v209
    %774 = vmatprep.subr.mxu0 %v206
    %775 = vmatpush2.msra.mxu0 %v205
    %776 = vmatprep.subr.mxu0 %v202
    %777 = vmatpush2.msra.mxu0 %v201
    %778 = vmatprep.subr.mxu0 %v198
    %779 = vmatpush2.msra.mxu0 %v197
    %780 = vmatprep.subr.mxu0 %v194
    %781 = vmatpush2.msra.mxu0 %v193
    %782 = vmatprep.subr.mxu0 %v190
    %783 = vmatpush2.msra.mxu0 %v189
    %784 = vmatprep.subr.mxu0 %v186
    %785 = vmatpush2.msra.mxu0 %v185
    %786 = vmatprep.subr.mxu0 %v182
    %787 = vmatpush2.msra.mxu0 %v181
    %788 = vmatprep.subr.mxu0 %v178
    %789 = vmatpush2.msra.mxu0 %v177
    %790 = vmatprep.subr.mxu0 %v174
    %791 = vmatpush2.msra.mxu0 %v173
    %792 = vmatprep.subr.mxu0 %v170
    %793 = vmatpush2.msra.mxu0 %v169
    %794 = vmatprep.subr.mxu0 %v166
    %795 = vmatpush2.msra.mxu0 %v165
    %796 = vmatprep.subr.mxu0 %v162
    %797 = vmatpush2.msra.mxu0 %v161
    %798 = vmatprep.mubr.f32.mxu0 %v563
    %799 = vmatmul.mubr.f32.gmra.mxu0 %v733
    %v800 = vpop.f32.mrf.mxu0
    %v801 = vadd.f32 %v358, %v800
    %v802 = vpop.f32.mrf.mxu0
    %v803 = vadd.f32 %v362, %v802
    %804 = vdwg.mxu0
    %805 = vmatprep.subr.mxu0 %v160
    %806 = vmatpush1.msra.mxu0 %v159
    %807 = vmatprep.subr.mxu0 %v156
    %808 = vmatpush1.msra.mxu0 %v155
    %809 = vmatprep.subr.mxu0 %v152
    %810 = vmatpush1.msra.mxu0 %v151
    %811 = vmatprep.subr.mxu0 %v148
    %812 = vmatpush1.msra.mxu0 %v147
    %813 = vmatprep.subr.mxu0 %v144
    %814 = vmatpush1.msra.mxu0 %v143
    %815 = vmatprep.subr.mxu0 %v140
    %816 = vmatpush1.msra.mxu0 %v139
    %817 = vmatprep.subr.mxu0 %v136
    %818 = vmatpush1.msra.mxu0 %v135
    %819 = vmatprep.subr.mxu0 %v132
    %820 = vmatpush1.msra.mxu0 %v131
    %821 = vmatprep.subr.mxu0 %v128
    %822 = vmatpush1.msra.mxu0 %v127
    %823 = vmatprep.subr.mxu0 %v124
    %824 = vmatpush1.msra.mxu0 %v123
    %825 = vmatprep.subr.mxu0 %v120
    %826 = vmatpush1.msra.mxu0 %v119
    %827 = vmatprep.subr.mxu0 %v116
    %828 = vmatpush1.msra.mxu0 %v115
    %829 = vmatprep.subr.mxu0 %v112
    %830 = vmatpush1.msra.mxu0 %v111
    %831 = vmatprep.subr.mxu0 %v108
    %832 = vmatpush1.msra.mxu0 %v107
    %833 = vmatprep.subr.mxu0 %v104
    %834 = vmatpush1.msra.mxu0 %v103
    %835 = vmatprep.subr.mxu0 %v100
    %836 = vmatpush1.msra.mxu0 %v99
    %837 = vmatprep.subr.mxu0 %v224
    %838 = vmatpush2.msra.mxu0 %v223
    %839 = vmatprep.subr.mxu0 %v220
    %840 = vmatpush2.msra.mxu0 %v219
    %841 = vmatprep.subr.mxu0 %v216
    %842 = vmatpush2.msra.mxu0 %v215
    %843 = vmatprep.subr.mxu0 %v212
    %844 = vmatpush2.msra.mxu0 %v211
    %845 = vmatprep.subr.mxu0 %v208
    %846 = vmatpush2.msra.mxu0 %v207
    %847 = vmatprep.subr.mxu0 %v204
    %848 = vmatpush2.msra.mxu0 %v203
    %849 = vmatprep.subr.mxu0 %v200
    %850 = vmatpush2.msra.mxu0 %v199
    %851 = vmatprep.subr.mxu0 %v196
    %852 = vmatpush2.msra.mxu0 %v195
    %853 = vmatprep.subr.mxu0 %v192
    %854 = vmatpush2.msra.mxu0 %v191
    %855 = vmatprep.subr.mxu0 %v188
    %856 = vmatpush2.msra.mxu0 %v187
    %857 = vmatprep.subr.mxu0 %v184
    %858 = vmatpush2.msra.mxu0 %v183
    %859 = vmatprep.subr.mxu0 %v180
    %860 = vmatpush2.msra.mxu0 %v179
    %861 = vmatprep.subr.mxu0 %v176
    %862 = vmatpush2.msra.mxu0 %v175
    %863 = vmatprep.subr.mxu0 %v172
    %864 = vmatpush2.msra.mxu0 %v171
    %865 = vmatprep.subr.mxu0 %v168
    %866 = vmatpush2.msra.mxu0 %v167
    %867 = vmatprep.subr.mxu0 %v164
    %868 = vmatpush2.msra.mxu0 %v163
    %869 = vmatprep.mubr.f32.mxu0 %v563
    %870 = vmatmul.mubr.f32.gmra.mxu0 %v733
    %v871 = vpop.f32.mrf.mxu0
    %v872 = vadd.f32 %v366, %v871
    %v873 = vpop.f32.mrf.mxu0
    %v874 = vadd.f32 %v370, %v873
    %875 = vdwg.mxu0
    %v876 = vxor.u32 %v801, 2147483648
    %v877 = vmul.f32 %v876, 1.442695
    %v878 = vpow.pop %v877
    %v879 = vadd.f32 %v878, 1.0
    %v880 = vrcp.pop %v879
    %v881 = vmul.f32 1.0, %v880
    %v882 = vxor.u32 %v803, 2147483648
    %v883 = vmul.f32 %v882, 1.442695
    %v884 = vpow.pop %v883
    %v885 = vadd.f32 %v884, 1.0
    %v886 = vrcp.pop %v885
    %v887 = vmul.f32 1.0, %v886
    %v888 = vtanh.pop %v872
    %v889 = vxor.u32 %v874, 2147483648
    %v890 = vmul.f32 %v889, 1.442695
    %v891 = vpow.pop %v890
    %v892 = vadd.f32 %v891, 1.0
    %v893 = vrcp.pop %v892
    %v894 = vmul.f32 1.0, %v893
    %v895 = vmul.f32 %v887, %v561
    %v896 = vmul.f32 %v881, %v888
    %v897 = vadd.f32 %v895, %v896
    %v898 = vtanh.pop %v897
    %v899 = vmul.f32 %v894, %v898
    %900 = vmatprep.subr.mxu0 %v286
    %901 = vmatpush1.msra.mxu0 %v285
    %902 = vmatprep.subr.mxu0 %v282
    %903 = vmatpush1.msra.mxu0 %v281
    %904 = vmatprep.subr.mxu0 %v278
    %905 = vmatpush1.msra.mxu0 %v277
    %906 = vmatprep.subr.mxu0 %v274
    %907 = vmatpush1.msra.mxu0 %v273
    %908 = vmatprep.subr.mxu0 %v270
    %909 = vmatpush1.msra.mxu0 %v269
    %910 = vmatprep.subr.mxu0 %v266
    %911 = vmatpush1.msra.mxu0 %v265
    %912 = vmatprep.subr.mxu0 %v262
    %913 = vmatpush1.msra.mxu0 %v261
    %914 = vmatprep.subr.mxu0 %v258
    %915 = vmatpush1.msra.mxu0 %v257
    %916 = vmatprep.subr.mxu0 %v254
    %917 = vmatpush1.msra.mxu0 %v253
    %918 = vmatprep.subr.mxu0 %v250
    %919 = vmatpush1.msra.mxu0 %v249
    %920 = vmatprep.subr.mxu0 %v246
    %921 = vmatpush1.msra.mxu0 %v245
    %922 = vmatprep.subr.mxu0 %v242
    %923 = vmatpush1.msra.mxu0 %v241
    %924 = vmatprep.subr.mxu0 %v238
    %925 = vmatpush1.msra.mxu0 %v237
    %926 = vmatprep.subr.mxu0 %v234
    %927 = vmatpush1.msra.mxu0 %v233
    %928 = vmatprep.subr.mxu0 %v230
    %929 = vmatpush1.msra.mxu0 %v229
    %930 = vmatprep.subr.mxu0 %v226
    %931 = vmatpush1.msra.mxu0 %v225
    %932 = vmatprep.subr.mxu0 %v350
    %933 = vmatpush2.msra.mxu0 %v349
    %934 = vmatprep.subr.mxu0 %v346
    %935 = vmatpush2.msra.mxu0 %v345
    %936 = vmatprep.subr.mxu0 %v342
    %937 = vmatpush2.msra.mxu0 %v341
    %938 = vmatprep.subr.mxu0 %v338
    %939 = vmatpush2.msra.mxu0 %v337
    %940 = vmatprep.subr.mxu0 %v334
    %941 = vmatpush2.msra.mxu0 %v333
    %942 = vmatprep.subr.mxu0 %v330
    %943 = vmatpush2.msra.mxu0 %v329
    %944 = vmatprep.subr.mxu0 %v326
    %945 = vmatpush2.msra.mxu0 %v325
    %946 = vmatprep.subr.mxu0 %v322
    %947 = vmatpush2.msra.mxu0 %v321
    %948 = vmatprep.subr.mxu0 %v318
    %949 = vmatpush2.msra.mxu0 %v317
    %950 = vmatprep.subr.mxu0 %v314
    %951 = vmatpush2.msra.mxu0 %v313
    %952 = vmatprep.subr.mxu0 %v310
    %953 = vmatpush2.msra.mxu0 %v309
    %954 = vmatprep.subr.mxu0 %v306
    %955 = vmatpush2.msra.mxu0 %v305
    %956 = vmatprep.subr.mxu0 %v302
    %957 = vmatpush2.msra.mxu0 %v301
    %958 = vmatprep.subr.mxu0 %v298
    %959 = vmatpush2.msra.mxu0 %v297
    %960 = vmatprep.subr.mxu0 %v294
    %961 = vmatpush2.msra.mxu0 %v293
    %962 = vmatprep.subr.mxu0 %v290
    %963 = vmatpush2.msra.mxu0 %v289
    %964 = vmatprep.mubr.f32.mxu0 %v729
    %965 = vmatmul.mubr.f32.gmra.mxu0 %v899
    %v966 = vpop.f32.mrf.mxu0
    %v967 = vadd.f32 %v380, %v966
    %v968 = vpop.f32.mrf.mxu0
    %v969 = vadd.f32 %v384, %v968
    %970 = vdwg.mxu0
    %971 = vmatprep.subr.mxu0 %v288
    %972 = vmatpush1.msra.mxu0 %v287
    %973 = vmatprep.subr.mxu0 %v284
    %974 = vmatpush1.msra.mxu0 %v283
    %975 = vmatprep.subr.mxu0 %v280
    %976 = vmatpush1.msra.mxu0 %v279
    %977 = vmatprep.subr.mxu0 %v276
    %978 = vmatpush1.msra.mxu0 %v275
    %979 = vmatprep.subr.mxu0 %v272
    %980 = vmatpush1.msra.mxu0 %v271
    %981 = vmatprep.subr.mxu0 %v268
    %982 = vmatpush1.msra.mxu0 %v267
    %983 = vmatprep.subr.mxu0 %v264
    %984 = vmatpush1.msra.mxu0 %v263
    %985 = vmatprep.subr.mxu0 %v260
    %986 = vmatpush1.msra.mxu0 %v259
    %987 = vmatprep.subr.mxu0 %v256
    %988 = vmatpush1.msra.mxu0 %v255
    %989 = vmatprep.subr.mxu0 %v252
    %990 = vmatpush1.msra.mxu0 %v251
    %991 = vmatprep.subr.mxu0 %v248
    %992 = vmatpush1.msra.mxu0 %v247
    %993 = vmatprep.subr.mxu0 %v244
    %994 = vmatpush1.msra.mxu0 %v243
    %995 = vmatprep.subr.mxu0 %v240
    %996 = vmatpush1.msra.mxu0 %v239
    %997 = vmatprep.subr.mxu0 %v236
    %998 = vmatpush1.msra.mxu0 %v235
    %999 = vmatprep.subr.mxu0 %v232
    %1000 = vmatpush1.msra.mxu0 %v231
    %1001 = vmatprep.subr.mxu0 %v228
    %1002 = vmatpush1.msra.mxu0 %v227
    %1003 = vmatprep.subr.mxu0 %v352
    %1004 = vmatpush2.msra.mxu0 %v351
    %1005 = vmatprep.subr.mxu0 %v348
    %1006 = vmatpush2.msra.mxu0 %v347
    %1007 = vmatprep.subr.mxu0 %v344
    %1008 = vmatpush2.msra.mxu0 %v343
    %1009 = vmatprep.subr.mxu0 %v340
    %1010 = vmatpush2.msra.mxu0 %v339
    %1011 = vmatprep.subr.mxu0 %v336
    %1012 = vmatpush2.msra.mxu0 %v335
    %1013 = vmatprep.subr.mxu0 %v332
    %1014 = vmatpush2.msra.mxu0 %v331
    %1015 = vmatprep.subr.mxu0 %v328
    %1016 = vmatpush2.msra.mxu0 %v327
    %1017 = vmatprep.subr.mxu0 %v324
    %1018 = vmatpush2.msra.mxu0 %v323
    %1019 = vmatprep.subr.mxu0 %v320
    %1020 = vmatpush2.msra.mxu0 %v319
    %1021 = vmatprep.subr.mxu0 %v316
    %1022 = vmatpush2.msra.mxu0 %v315
    %1023 = vmatprep.subr.mxu0 %v312
    %1024 = vmatpush2.msra.mxu0 %v311
    %1025 = vmatprep.subr.mxu0 %v308
    %1026 = vmatpush2.msra.mxu0 %v307
    %1027 = vmatprep.subr.mxu0 %v304
    %1028 = vmatpush2.msra.mxu0 %v303
    %1029 = vmatprep.subr.mxu0 %v300
    %1030 = vmatpush2.msra.mxu0 %v299
    %1031 = vmatprep.subr.mxu0 %v296
    %1032 = vmatpush2.msra.mxu0 %v295
    %1033 = vmatprep.subr.mxu0 %v292
    %1034 = vmatpush2.msra.mxu0 %v291
    %1035 = vmatprep.mubr.f32.mxu0 %v729
    %1036 = vmatmul.mubr.f32.gmra.mxu0 %v899
    %v1037 = vpop.f32.mrf.mxu0
    %v1038 = vadd.f32 %v388, %v1037
    %v1039 = vpop.f32.mrf.mxu0
    %v1040 = vadd.f32 %v392, %v1039
    %1041 = vdwg.mxu0
    %v1042 = vxor.u32 %v967, 2147483648
    %v1043 = vmul.f32 %v1042, 1.442695
    %v1044 = vpow.pop %v1043
    %v1045 = vadd.f32 %v1044, 1.0
    %v1046 = vrcp.pop %v1045
    %v1047 = vmul.f32 1.0, %v1046
    %v1048 = vxor.u32 %v969, 2147483648
    %v1049 = vmul.f32 %v1048, 1.442695
    %v1050 = vpow.pop %v1049
    %v1051 = vadd.f32 %v1050, 1.0
    %v1052 = vrcp.pop %v1051
    %v1053 = vmul.f32 1.0, %v1052
    %v1054 = vtanh.pop %v1038
    %v1055 = vxor.u32 %v1040, 2147483648
    %v1056 = vmul.f32 %v1055, 1.442695
    %v1057 = vpow.pop %v1056
    %v1058 = vadd.f32 %v1057, 1.0
    %v1059 = vrcp.pop %v1058
    %v1060 = vmul.f32 1.0, %v1059
    %v1061 = vmul.f32 %v1053, %v727
    %v1062 = vmul.f32 %v1047, %v1054
    %v1063 = vadd.f32 %v1061, %v1062
    %v1064 = vtanh.pop %v1063
    %v1065 = vmul.f32 %v1060, %v1064
    %v1066 = vadd.f32 %v899, %v1065
    %s1067 = scalar_lea.vmem [#allocation10], 8
    %1068 = vst [vmem:[%s1067] sm:$0xff] %v1066
    %s1069 = scalar_lea.vmem %s0, 16
    %v1070 = vld [vmem:[%s1069] sm:$0xff]
    %1071 = vmatprep.subr.mxu0 %v158
    %1072 = vmatpush1.msra.mxu0 %v157
    %1073 = vmatprep.subr.mxu0 %v154
    %1074 = vmatpush1.msra.mxu0 %v153
    %1075 = vmatprep.subr.mxu0 %v150
    %1076 = vmatpush1.msra.mxu0 %v149
    %1077 = vmatprep.subr.mxu0 %v146
    %1078 = vmatpush1.msra.mxu0 %v145
    %1079 = vmatprep.subr.mxu0 %v142
    %1080 = vmatpush1.msra.mxu0 %v141
    %1081 = vmatprep.subr.mxu0 %v138
    %1082 = vmatpush1.msra.mxu0 %v137
    %1083 = vmatprep.subr.mxu0 %v134
    %1084 = vmatpush1.msra.mxu0 %v133
    %1085 = vmatprep.subr.mxu0 %v130
    %1086 = vmatpush1.msra.mxu0 %v129
    %1087 = vmatprep.subr.mxu0 %v126
    %1088 = vmatpush1.msra.mxu0 %v125
    %1089 = vmatprep.subr.mxu0 %v122
    %1090 = vmatpush1.msra.mxu0 %v121
    %1091 = vmatprep.subr.mxu0 %v118
    %1092 = vmatpush1.msra.mxu0 %v117
    %1093 = vmatprep.subr.mxu0 %v114
    %1094 = vmatpush1.msra.mxu0 %v113
    %1095 = vmatprep.subr.mxu0 %v110
    %1096 = vmatpush1.msra.mxu0 %v109
    %1097 = vmatprep.subr.mxu0 %v106
    %1098 = vmatpush1.msra.mxu0 %v105
    %1099 = vmatprep.subr.mxu0 %v102
    %1100 = vmatpush1.msra.mxu0 %v101
    %1101 = vmatprep.subr.mxu0 %v98
    %1102 = vmatpush1.msra.mxu0 %v97
    %1103 = vmatprep.subr.mxu0 %v222
    %1104 = vmatpush2.msra.mxu0 %v221
    %1105 = vmatprep.subr.mxu0 %v218
    %1106 = vmatpush2.msra.mxu0 %v217
    %1107 = vmatprep.subr.mxu0 %v214
    %1108 = vmatpush2.msra.mxu0 %v213
    %1109 = vmatprep.subr.mxu0 %v210
    %1110 = vmatpush2.msra.mxu0 %v209
    %1111 = vmatprep.subr.mxu0 %v206
    %1112 = vmatpush2.msra.mxu0 %v205
    %1113 = vmatprep.subr.mxu0 %v202
    %1114 = vmatpush2.msra.mxu0 %v201
    %1115 = vmatprep.subr.mxu0 %v198
    %1116 = vmatpush2.msra.mxu0 %v197
    %1117 = vmatprep.subr.mxu0 %v194
    %1118 = vmatpush2.msra.mxu0 %v193
    %1119 = vmatprep.subr.mxu0 %v190
    %1120 = vmatpush2.msra.mxu0 %v189
    %1121 = vmatprep.subr.mxu0 %v186
    %1122 = vmatpush2.msra.mxu0 %v185
    %1123 = vmatprep.subr.mxu0 %v182
    %1124 = vmatpush2.msra.mxu0 %v181
    %1125 = vmatprep.subr.mxu0 %v178
    %1126 = vmatpush2.msra.mxu0 %v177
    %1127 = vmatprep.subr.mxu0 %v174
    %1128 = vmatpush2.msra.mxu0 %v173
    %1129 = vmatprep.subr.mxu0 %v170
    %1130 = vmatpush2.msra.mxu0 %v169
    %1131 = vmatprep.subr.mxu0 %v166
    %1132 = vmatpush2.msra.mxu0 %v165
    %1133 = vmatprep.subr.mxu0 %v162
    %1134 = vmatpush2.msra.mxu0 %v161
    %1135 = vmatprep.mubr.f32.mxu0 %v899
    %1136 = vmatmul.mubr.f32.gmra.mxu0 %v1070
    %v1137 = vpop.f32.mrf.mxu0
    %v1138 = vadd.f32 %v358, %v1137
    %v1139 = vpop.f32.mrf.mxu0
    %v1140 = vadd.f32 %v362, %v1139
    %1141 = vdwg.mxu0
    %1142 = vmatprep.subr.mxu0 %v160
    %1143 = vmatpush1.msra.mxu0 %v159
    %1144 = vmatprep.subr.mxu0 %v156
    %1145 = vmatpush1.msra.mxu0 %v155
    %1146 = vmatprep.subr.mxu0 %v152
    %1147 = vmatpush1.msra.mxu0 %v151
    %1148 = vmatprep.subr.mxu0 %v148
    %1149 = vmatpush1.msra.mxu0 %v147
    %1150 = vmatprep.subr.mxu0 %v144
    %1151 = vmatpush1.msra.mxu0 %v143
    %1152 = vmatprep.subr.mxu0 %v140
    %1153 = vmatpush1.msra.mxu0 %v139
    %1154 = vmatprep.subr.mxu0 %v136
    %1155 = vmatpush1.msra.mxu0 %v135
    %1156 = vmatprep.subr.mxu0 %v132
    %1157 = vmatpush1.msra.mxu0 %v131
    %1158 = vmatprep.subr.mxu0 %v128
    %1159 = vmatpush1.msra.mxu0 %v127
    %1160 = vmatprep.subr.mxu0 %v124
    %1161 = vmatpush1.msra.mxu0 %v123
    %1162 = vmatprep.subr.mxu0 %v120
    %1163 = vmatpush1.msra.mxu0 %v119
    %1164 = vmatprep.subr.mxu0 %v116
    %1165 = vmatpush1.msra.mxu0 %v115
    %1166 = vmatprep.subr.mxu0 %v112
    %1167 = vmatpush1.msra.mxu0 %v111
    %1168 = vmatprep.subr.mxu0 %v108
    %1169 = vmatpush1.msra.mxu0 %v107
    %1170 = vmatprep.subr.mxu0 %v104
    %1171 = vmatpush1.msra.mxu0 %v103
    %1172 = vmatprep.subr.mxu0 %v100
    %1173 = vmatpush1.msra.mxu0 %v99
    %1174 = vmatprep.subr.mxu0 %v224
    %1175 = vmatpush2.msra.mxu0 %v223
    %1176 = vmatprep.subr.mxu0 %v220
    %1177 = vmatpush2.msra.mxu0 %v219
    %1178 = vmatprep.subr.mxu0 %v216
    %1179 = vmatpush2.msra.mxu0 %v215
    %1180 = vmatprep.subr.mxu0 %v212
    %1181 = vmatpush2.msra.mxu0 %v211
    %1182 = vmatprep.subr.mxu0 %v208
    %1183 = vmatpush2.msra.mxu0 %v207
    %1184 = vmatprep.subr.mxu0 %v204
    %1185 = vmatpush2.msra.mxu0 %v203
    %1186 = vmatprep.subr.mxu0 %v200
    %1187 = vmatpush2.msra.mxu0 %v199
    %1188 = vmatprep.subr.mxu0 %v196
    %1189 = vmatpush2.msra.mxu0 %v195
    %1190 = vmatprep.subr.mxu0 %v192
    %1191 = vmatpush2.msra.mxu0 %v191
    %1192 = vmatprep.subr.mxu0 %v188
    %1193 = vmatpush2.msra.mxu0 %v187
    %1194 = vmatprep.subr.mxu0 %v184
    %1195 = vmatpush2.msra.mxu0 %v183
    %1196 = vmatprep.subr.mxu0 %v180
    %1197 = vmatpush2.msra.mxu0 %v179
    %1198 = vmatprep.subr.mxu0 %v176
    %1199 = vmatpush2.msra.mxu0 %v175
    %1200 = vmatprep.subr.mxu0 %v172
    %1201 = vmatpush2.msra.mxu0 %v171
    %1202 = vmatprep.subr.mxu0 %v168
    %1203 = vmatpush2.msra.mxu0 %v167
    %1204 = vmatprep.subr.mxu0 %v164
    %1205 = vmatpush2.msra.mxu0 %v163
    %1206 = vmatprep.mubr.f32.mxu0 %v899
    %1207 = vmatmul.mubr.f32.gmra.mxu0 %v1070
    %v1208 = vpop.f32.mrf.mxu0
    %v1209 = vadd.f32 %v366, %v1208
    %v1210 = vpop.f32.mrf.mxu0
    %v1211 = vadd.f32 %v370, %v1210
    %1212 = vdwg.mxu0
    %v1213 = vxor.u32 %v1138, 2147483648
    %v1214 = vmul.f32 %v1213, 1.442695
    %v1215 = vpow.pop %v1214
    %v1216 = vadd.f32 %v1215, 1.0
    %v1217 = vrcp.pop %v1216
    %v1218 = vmul.f32 1.0, %v1217
    %v1219 = vxor.u32 %v1140, 2147483648
    %v1220 = vmul.f32 %v1219, 1.442695
    %v1221 = vpow.pop %v1220
    %v1222 = vadd.f32 %v1221, 1.0
    %v1223 = vrcp.pop %v1222
    %v1224 = vmul.f32 1.0, %v1223
    %v1225 = vtanh.pop %v1209
    %v1226 = vxor.u32 %v1211, 2147483648
    %v1227 = vmul.f32 %v1226, 1.442695
    %v1228 = vpow.pop %v1227
    %v1229 = vadd.f32 %v1228, 1.0
    %v1230 = vrcp.pop %v1229
    %v1231 = vmul.f32 1.0, %v1230
    %v1232 = vmul.f32 %v1224, %v897
    %v1233 = vmul.f32 %v1218, %v1225
    %v1234 = vadd.f32 %v1232, %v1233
    %v1235 = vtanh.pop %v1234
    %v1236 = vmul.f32 %v1231, %v1235
    %1237 = vmatprep.subr.mxu0 %v286
    %1238 = vmatpush1.msra.mxu0 %v285
    %1239 = vmatprep.subr.mxu0 %v282
    %1240 = vmatpush1.msra.mxu0 %v281
    %1241 = vmatprep.subr.mxu0 %v278
    %1242 = vmatpush1.msra.mxu0 %v277
    %1243 = vmatprep.subr.mxu0 %v274
    %1244 = vmatpush1.msra.mxu0 %v273
    %1245 = vmatprep.subr.mxu0 %v270
    %1246 = vmatpush1.msra.mxu0 %v269
    %1247 = vmatprep.subr.mxu0 %v266
    %1248 = vmatpush1.msra.mxu0 %v265
    %1249 = vmatprep.subr.mxu0 %v262
    %1250 = vmatpush1.msra.mxu0 %v261
    %1251 = vmatprep.subr.mxu0 %v258
    %1252 = vmatpush1.msra.mxu0 %v257
    %1253 = vmatprep.subr.mxu0 %v254
    %1254 = vmatpush1.msra.mxu0 %v253
    %1255 = vmatprep.subr.mxu0 %v250
    %1256 = vmatpush1.msra.mxu0 %v249
    %1257 = vmatprep.subr.mxu0 %v246
    %1258 = vmatpush1.msra.mxu0 %v245
    %1259 = vmatprep.subr.mxu0 %v242
    %1260 = vmatpush1.msra.mxu0 %v241
    %1261 = vmatprep.subr.mxu0 %v238
    %1262 = vmatpush1.msra.mxu0 %v237
    %1263 = vmatprep.subr.mxu0 %v234
    %1264 = vmatpush1.msra.mxu0 %v233
    %1265 = vmatprep.subr.mxu0 %v230
    %1266 = vmatpush1.msra.mxu0 %v229
    %1267 = vmatprep.subr.mxu0 %v226
    %1268 = vmatpush1.msra.mxu0 %v225
    %1269 = vmatprep.subr.mxu0 %v350
    %1270 = vmatpush2.msra.mxu0 %v349
    %1271 = vmatprep.subr.mxu0 %v346
    %1272 = vmatpush2.msra.mxu0 %v345
    %1273 = vmatprep.subr.mxu0 %v342
    %1274 = vmatpush2.msra.mxu0 %v341
    %1275 = vmatprep.subr.mxu0 %v338
    %1276 = vmatpush2.msra.mxu0 %v337
    %1277 = vmatprep.subr.mxu0 %v334
    %1278 = vmatpush2.msra.mxu0 %v333
    %1279 = vmatprep.subr.mxu0 %v330
    %1280 = vmatpush2.msra.mxu0 %v329
    %1281 = vmatprep.subr.mxu0 %v326
    %1282 = vmatpush2.msra.mxu0 %v325
    %1283 = vmatprep.subr.mxu0 %v322
    %1284 = vmatpush2.msra.mxu0 %v321
    %1285 = vmatprep.subr.mxu0 %v318
    %1286 = vmatpush2.msra.mxu0 %v317
    %1287 = vmatprep.subr.mxu0 %v314
    %1288 = vmatpush2.msra.mxu0 %v313
    %1289 = vmatprep.subr.mxu0 %v310
    %1290 = vmatpush2.msra.mxu0 %v309
    %1291 = vmatprep.subr.mxu0 %v306
    %1292 = vmatpush2.msra.mxu0 %v305
    %1293 = vmatprep.subr.mxu0 %v302
    %1294 = vmatpush2.msra.mxu0 %v301
    %1295 = vmatprep.subr.mxu0 %v298
    %1296 = vmatpush2.msra.mxu0 %v297
    %1297 = vmatprep.subr.mxu0 %v294
    %1298 = vmatpush2.msra.mxu0 %v293
    %1299 = vmatprep.subr.mxu0 %v290
    %1300 = vmatpush2.msra.mxu0 %v289
    %1301 = vmatprep.mubr.f32.mxu0 %v1065
    %1302 = vmatmul.mubr.f32.gmra.mxu0 %v1236
    %v1303 = vpop.f32.mrf.mxu0
    %v1304 = vadd.f32 %v380, %v1303
    %v1305 = vpop.f32.mrf.mxu0
    %v1306 = vadd.f32 %v384, %v1305
    %1307 = vdwg.mxu0
    %1308 = vmatprep.subr.mxu0 %v288
    %1309 = vmatpush1.msra.mxu0 %v287
    %1310 = vmatprep.subr.mxu0 %v284
    %1311 = vmatpush1.msra.mxu0 %v283
    %1312 = vmatprep.subr.mxu0 %v280
    %1313 = vmatpush1.msra.mxu0 %v279
    %1314 = vmatprep.subr.mxu0 %v276
    %1315 = vmatpush1.msra.mxu0 %v275
    %1316 = vmatprep.subr.mxu0 %v272
    %1317 = vmatpush1.msra.mxu0 %v271
    %1318 = vmatprep.subr.mxu0 %v268
    %1319 = vmatpush1.msra.mxu0 %v267
    %1320 = vmatprep.subr.mxu0 %v264
    %1321 = vmatpush1.msra.mxu0 %v263
    %1322 = vmatprep.subr.mxu0 %v260
    %1323 = vmatpush1.msra.mxu0 %v259
    %1324 = vmatprep.subr.mxu0 %v256
    %1325 = vmatpush1.msra.mxu0 %v255
    %1326 = vmatprep.subr.mxu0 %v252
    %1327 = vmatpush1.msra.mxu0 %v251
    %1328 = vmatprep.subr.mxu0 %v248
    %1329 = vmatpush1.msra.mxu0 %v247
    %1330 = vmatprep.subr.mxu0 %v244
    %1331 = vmatpush1.msra.mxu0 %v243
    %1332 = vmatprep.subr.mxu0 %v240
    %1333 = vmatpush1.msra.mxu0 %v239
    %1334 = vmatprep.subr.mxu0 %v236
    %1335 = vmatpush1.msra.mxu0 %v235
    %1336 = vmatprep.subr.mxu0 %v232
    %1337 = vmatpush1.msra.mxu0 %v231
    %1338 = vmatprep.subr.mxu0 %v228
    %1339 = vmatpush1.msra.mxu0 %v227
    %1340 = vmatprep.subr.mxu0 %v352
    %1341 = vmatpush2.msra.mxu0 %v351
    %1342 = vmatprep.subr.mxu0 %v348
    %1343 = vmatpush2.msra.mxu0 %v347
    %1344 = vmatprep.subr.mxu0 %v344
    %1345 = vmatpush2.msra.mxu0 %v343
    %1346 = vmatprep.subr.mxu0 %v340
    %1347 = vmatpush2.msra.mxu0 %v339
    %1348 = vmatprep.subr.mxu0 %v336
    %1349 = vmatpush2.msra.mxu0 %v335
    %1350 = vmatprep.subr.mxu0 %v332
    %1351 = vmatpush2.msra.mxu0 %v331
    %1352 = vmatprep.subr.mxu0 %v328
    %1353 = vmatpush2.msra.mxu0 %v327
    %1354 = vmatprep.subr.mxu0 %v324
    %1355 = vmatpush2.msra.mxu0 %v323
    %1356 = vmatprep.subr.mxu0 %v320
    %1357 = vmatpush2.msra.mxu0 %v319
    %1358 = vmatprep.subr.mxu0 %v316
    %1359 = vmatpush2.msra.mxu0 %v315
    %1360 = vmatprep.subr.mxu0 %v312
    %1361 = vmatpush2.msra.mxu0 %v311
    %1362 = vmatprep.subr.mxu0 %v308
    %1363 = vmatpush2.msra.mxu0 %v307
    %1364 = vmatprep.subr.mxu0 %v304
    %1365 = vmatpush2.msra.mxu0 %v303
    %1366 = vmatprep.subr.mxu0 %v300
    %1367 = vmatpush2.msra.mxu0 %v299
    %1368 = vmatprep.subr.mxu0 %v296
    %1369 = vmatpush2.msra.mxu0 %v295
    %1370 = vmatprep.subr.mxu0 %v292
    %1371 = vmatpush2.msra.mxu0 %v291
    %1372 = vmatprep.mubr.f32.mxu0 %v1065
    %1373 = vmatmul.mubr.f32.gmra.mxu0 %v1236
    %v1374 = vpop.f32.mrf.mxu0
    %v1375 = vadd.f32 %v388, %v1374
    %v1376 = vpop.f32.mrf.mxu0
    %v1377 = vadd.f32 %v392, %v1376
    %1378 = vdwg.mxu0
    %v1379 = vxor.u32 %v1304, 2147483648
    %v1380 = vmul.f32 %v1379, 1.442695
    %v1381 = vpow.pop %v1380
    %v1382 = vadd.f32 %v1381, 1.0
    %v1383 = vrcp.pop %v1382
    %v1384 = vmul.f32 1.0, %v1383
    %v1385 = vxor.u32 %v1306, 2147483648
    %v1386 = vmul.f32 %v1385, 1.442695
    %v1387 = vpow.pop %v1386
    %v1388 = vadd.f32 %v1387, 1.0
    %v1389 = vrcp.pop %v1388
    %v1390 = vmul.f32 1.0, %v1389
    %v1391 = vtanh.pop %v1375
    %v1392 = vxor.u32 %v1377, 2147483648
    %v1393 = vmul.f32 %v1392, 1.442695
    %v1394 = vpow.pop %v1393
    %v1395 = vadd.f32 %v1394, 1.0
    %v1396 = vrcp.pop %v1395
    %v1397 = vmul.f32 1.0, %v1396
    %v1398 = vmul.f32 %v1390, %v1063
    %v1399 = vmul.f32 %v1384, %v1391
    %v1400 = vadd.f32 %v1398, %v1399
    %v1401 = vtanh.pop %v1400
    %v1402 = vmul.f32 %v1397, %v1401
    %v1403 = vadd.f32 %v1236, %v1402
    %s1404 = scalar_lea.vmem [#allocation10], 16
    %1405 = vst [vmem:[%s1404] sm:$0xff] %v1403
    %s1406 = scalar_lea.vmem %s0, 24
    %v1407 = vld [vmem:[%s1406] sm:$0xff]
    %1408 = vmatprep.subr.mxu0 %v158
    %1409 = vmatpush1.msra.mxu0 %v157
    %1410 = vmatprep.subr.mxu0 %v154
    %1411 = vmatpush1.msra.mxu0 %v153
    %1412 = vmatprep.subr.mxu0 %v150
    %1413 = vmatpush1.msra.mxu0 %v149
    %1414 = vmatprep.subr.mxu0 %v146
    %1415 = vmatpush1.msra.mxu0 %v145
    %1416 = vmatprep.subr.mxu0 %v142
    %1417 = vmatpush1.msra.mxu0 %v141
    %1418 = vmatprep.subr.mxu0 %v138
    %1419 = vmatpush1.msra.mxu0 %v137
    %1420 = vmatprep.subr.mxu0 %v134
    %1421 = vmatpush1.msra.mxu0 %v133
    %1422 = vmatprep.subr.mxu0 %v130
    %1423 = vmatpush1.msra.mxu0 %v129
    %1424 = vmatprep.subr.mxu0 %v126
    %1425 = vmatpush1.msra.mxu0 %v125
    %1426 = vmatprep.subr.mxu0 %v122
    %1427 = vmatpush1.msra.mxu0 %v121
    %1428 = vmatprep.subr.mxu0 %v118
    %1429 = vmatpush1.msra.mxu0 %v117
    %1430 = vmatprep.subr.mxu0 %v114
    %1431 = vmatpush1.msra.mxu0 %v113
    %1432 = vmatprep.subr.mxu0 %v110
    %1433 = vmatpush1.msra.mxu0 %v109
    %1434 = vmatprep.subr.mxu0 %v106
    %1435 = vmatpush1.msra.mxu0 %v105
    %1436 = vmatprep.subr.mxu0 %v102
    %1437 = vmatpush1.msra.mxu0 %v101
    %1438 = vmatprep.subr.mxu0 %v98
    %1439 = vmatpush1.msra.mxu0 %v97
    %1440 = vmatprep.subr.mxu0 %v222
    %1441 = vmatpush2.msra.mxu0 %v221
    %1442 = vmatprep.subr.mxu0 %v218
    %1443 = vmatpush2.msra.mxu0 %v217
    %1444 = vmatprep.subr.mxu0 %v214
    %1445 = vmatpush2.msra.mxu0 %v213
    %1446 = vmatprep.subr.mxu0 %v210
    %1447 = vmatpush2.msra.mxu0 %v209
    %1448 = vmatprep.subr.mxu0 %v206
    %1449 = vmatpush2.msra.mxu0 %v205
    %1450 = vmatprep.subr.mxu0 %v202
    %1451 = vmatpush2.msra.mxu0 %v201
    %1452 = vmatprep.subr.mxu0 %v198
    %1453 = vmatpush2.msra.mxu0 %v197
    %1454 = vmatprep.subr.mxu0 %v194
    %1455 = vmatpush2.msra.mxu0 %v193
    %1456 = vmatprep.subr.mxu0 %v190
    %1457 = vmatpush2.msra.mxu0 %v189
    %1458 = vmatprep.subr.mxu0 %v186
    %1459 = vmatpush2.msra.mxu0 %v185
    %1460 = vmatprep.subr.mxu0 %v182
    %1461 = vmatpush2.msra.mxu0 %v181
    %1462 = vmatprep.subr.mxu0 %v178
    %1463 = vmatpush2.msra.mxu0 %v177
    %1464 = vmatprep.subr.mxu0 %v174
    %1465 = vmatpush2.msra.mxu0 %v173
    %1466 = vmatprep.subr.mxu0 %v170
    %1467 = vmatpush2.msra.mxu0 %v169
    %1468 = vmatprep.subr.mxu0 %v166
    %1469 = vmatpush2.msra.mxu0 %v165
    %1470 = vmatprep.subr.mxu0 %v162
    %1471 = vmatpush2.msra.mxu0 %v161
    %1472 = vmatprep.mubr.f32.mxu0 %v1236
    %1473 = vmatmul.mubr.f32.gmra.mxu0 %v1407
    %v1474 = vpop.f32.mrf.mxu0
    %v1475 = vadd.f32 %v358, %v1474
    %v1476 = vpop.f32.mrf.mxu0
    %v1477 = vadd.f32 %v362, %v1476
    %1478 = vdwg.mxu0
    %1479 = vmatprep.subr.mxu0 %v160
    %1480 = vmatpush1.msra.mxu0 %v159
    %1481 = vmatprep.subr.mxu0 %v156
    %1482 = vmatpush1.msra.mxu0 %v155
    %1483 = vmatprep.subr.mxu0 %v152
    %1484 = vmatpush1.msra.mxu0 %v151
    %1485 = vmatprep.subr.mxu0 %v148
    %1486 = vmatpush1.msra.mxu0 %v147
    %1487 = vmatprep.subr.mxu0 %v144
    %1488 = vmatpush1.msra.mxu0 %v143
    %1489 = vmatprep.subr.mxu0 %v140
    %1490 = vmatpush1.msra.mxu0 %v139
    %1491 = vmatprep.subr.mxu0 %v136
    %1492 = vmatpush1.msra.mxu0 %v135
    %1493 = vmatprep.subr.mxu0 %v132
    %1494 = vmatpush1.msra.mxu0 %v131
    %1495 = vmatprep.subr.mxu0 %v128
    %1496 = vmatpush1.msra.mxu0 %v127
    %1497 = vmatprep.subr.mxu0 %v124
    %1498 = vmatpush1.msra.mxu0 %v123
    %1499 = vmatprep.subr.mxu0 %v120
    %1500 = vmatpush1.msra.mxu0 %v119
    %1501 = vmatprep.subr.mxu0 %v116
    %1502 = vmatpush1.msra.mxu0 %v115
    %1503 = vmatprep.subr.mxu0 %v112
    %1504 = vmatpush1.msra.mxu0 %v111
    %1505 = vmatprep.subr.mxu0 %v108
    %1506 = vmatpush1.msra.mxu0 %v107
    %1507 = vmatprep.subr.mxu0 %v104
    %1508 = vmatpush1.msra.mxu0 %v103
    %1509 = vmatprep.subr.mxu0 %v100
    %1510 = vmatpush1.msra.mxu0 %v99
    %1511 = vmatprep.subr.mxu0 %v224
    %1512 = vmatpush2.msra.mxu0 %v223
    %1513 = vmatprep.subr.mxu0 %v220
    %1514 = vmatpush2.msra.mxu0 %v219
    %1515 = vmatprep.subr.mxu0 %v216
    %1516 = vmatpush2.msra.mxu0 %v215
    %1517 = vmatprep.subr.mxu0 %v212
    %1518 = vmatpush2.msra.mxu0 %v211
    %1519 = vmatprep.subr.mxu0 %v208
    %1520 = vmatpush2.msra.mxu0 %v207
    %1521 = vmatprep.subr.mxu0 %v204
    %1522 = vmatpush2.msra.mxu0 %v203
    %1523 = vmatprep.subr.mxu0 %v200
    %1524 = vmatpush2.msra.mxu0 %v199
    %1525 = vmatprep.subr.mxu0 %v196
    %1526 = vmatpush2.msra.mxu0 %v195
    %1527 = vmatprep.subr.mxu0 %v192
    %1528 = vmatpush2.msra.mxu0 %v191
    %1529 = vmatprep.subr.mxu0 %v188
    %1530 = vmatpush2.msra.mxu0 %v187
    %1531 = vmatprep.subr.mxu0 %v184
    %1532 = vmatpush2.msra.mxu0 %v183
    %1533 = vmatprep.subr.mxu0 %v180
    %1534 = vmatpush2.msra.mxu0 %v179
    %1535 = vmatprep.subr.mxu0 %v176
    %1536 = vmatpush2.msra.mxu0 %v175
    %1537 = vmatprep.subr.mxu0 %v172
    %1538 = vmatpush2.msra.mxu0 %v171
    %1539 = vmatprep.subr.mxu0 %v168
    %1540 = vmatpush2.msra.mxu0 %v167
    %1541 = vmatprep.subr.mxu0 %v164
    %1542 = vmatpush2.msra.mxu0 %v163
    %1543 = vmatprep.mubr.f32.mxu0 %v1236
    %1544 = vmatmul.mubr.f32.gmra.mxu0 %v1407
    %v1545 = vpop.f32.mrf.mxu0
    %v1546 = vadd.f32 %v366, %v1545
    %v1547 = vpop.f32.mrf.mxu0
    %v1548 = vadd.f32 %v370, %v1547
    %1549 = vdwg.mxu0
    %v1550 = vxor.u32 %v1475, 2147483648
    %v1551 = vmul.f32 %v1550, 1.442695
    %v1552 = vpow.pop %v1551
    %v1553 = vadd.f32 %v1552, 1.0
    %v1554 = vrcp.pop %v1553
    %v1555 = vmul.f32 1.0, %v1554
    %v1556 = vxor.u32 %v1477, 2147483648
    %v1557 = vmul.f32 %v1556, 1.442695
    %v1558 = vpow.pop %v1557
    %v1559 = vadd.f32 %v1558, 1.0
    %v1560 = vrcp.pop %v1559
    %v1561 = vmul.f32 1.0, %v1560
    %v1562 = vtanh.pop %v1546
    %v1563 = vxor.u32 %v1548, 2147483648
    %v1564 = vmul.f32 %v1563, 1.442695
    %v1565 = vpow.pop %v1564
    %v1566 = vadd.f32 %v1565, 1.0
    %v1567 = vrcp.pop %v1566
    %v1568 = vmul.f32 1.0, %v1567
    %v1569 = vmul.f32 %v1561, %v1234
    %v1570 = vmul.f32 %v1555, %v1562
    %v1571 = vadd.f32 %v1569, %v1570
    %v1572 = vtanh.pop %v1571
    %v1573 = vmul.f32 %v1568, %v1572
    %1574 = vmatprep.subr.mxu0 %v286
    %1575 = vmatpush1.msra.mxu0 %v285
    %1576 = vmatprep.subr.mxu0 %v282
    %1577 = vmatpush1.msra.mxu0 %v281
    %1578 = vmatprep.subr.mxu0 %v278
    %1579 = vmatpush1.msra.mxu0 %v277
    %1580 = vmatprep.subr.mxu0 %v274
    %1581 = vmatpush1.msra.mxu0 %v273
    %1582 = vmatprep.subr.mxu0 %v270
    %1583 = vmatpush1.msra.mxu0 %v269
    %1584 = vmatprep.subr.mxu0 %v266
    %1585 = vmatpush1.msra.mxu0 %v265
    %1586 = vmatprep.subr.mxu0 %v262
    %1587 = vmatpush1.msra.mxu0 %v261
    %1588 = vmatprep.subr.mxu0 %v258
    %1589 = vmatpush1.msra.mxu0 %v257
    %1590 = vmatprep.subr.mxu0 %v254
    %1591 = vmatpush1.msra.mxu0 %v253
    %1592 = vmatprep.subr.mxu0 %v250
    %1593 = vmatpush1.msra.mxu0 %v249
    %1594 = vmatprep.subr.mxu0 %v246
    %1595 = vmatpush1.msra.mxu0 %v245
    %1596 = vmatprep.subr.mxu0 %v242
    %1597 = vmatpush1.msra.mxu0 %v241
    %1598 = vmatprep.subr.mxu0 %v238
    %1599 = vmatpush1.msra.mxu0 %v237
    %1600 = vmatprep.subr.mxu0 %v234
    %1601 = vmatpush1.msra.mxu0 %v233
    %1602 = vmatprep.subr.mxu0 %v230
    %1603 = vmatpush1.msra.mxu0 %v229
    %1604 = vmatprep.subr.mxu0 %v226
    %1605 = vmatpush1.msra.mxu0 %v225
    %1606 = vmatprep.subr.mxu0 %v350
    %1607 = vmatpush2.msra.mxu0 %v349
    %1608 = vmatprep.subr.mxu0 %v346
    %1609 = vmatpush2.msra.mxu0 %v345
    %1610 = vmatprep.subr.mxu0 %v342
    %1611 = vmatpush2.msra.mxu0 %v341
    %1612 = vmatprep.subr.mxu0 %v338
    %1613 = vmatpush2.msra.mxu0 %v337
    %1614 = vmatprep.subr.mxu0 %v334
    %1615 = vmatpush2.msra.mxu0 %v333
    %1616 = vmatprep.subr.mxu0 %v330
    %1617 = vmatpush2.msra.mxu0 %v329
    %1618 = vmatprep.subr.mxu0 %v326
    %1619 = vmatpush2.msra.mxu0 %v325
    %1620 = vmatprep.subr.mxu0 %v322
    %1621 = vmatpush2.msra.mxu0 %v321
    %1622 = vmatprep.subr.mxu0 %v318
    %1623 = vmatpush2.msra.mxu0 %v317
    %1624 = vmatprep.subr.mxu0 %v314
    %1625 = vmatpush2.msra.mxu0 %v313
    %1626 = vmatprep.subr.mxu0 %v310
    %1627 = vmatpush2.msra.mxu0 %v309
    %1628 = vmatprep.subr.mxu0 %v306
    %1629 = vmatpush2.msra.mxu0 %v305
    %1630 = vmatprep.subr.mxu0 %v302
    %1631 = vmatpush2.msra.mxu0 %v301
    %1632 = vmatprep.subr.mxu0 %v298
    %1633 = vmatpush2.msra.mxu0 %v297
    %1634 = vmatprep.subr.mxu0 %v294
    %1635 = vmatpush2.msra.mxu0 %v293
    %1636 = vmatprep.subr.mxu0 %v290
    %1637 = vmatpush2.msra.mxu0 %v289
    %1638 = vmatprep.mubr.f32.mxu0 %v1402
    %1639 = vmatmul.mubr.f32.gmra.mxu0 %v1573
    %v1640 = vpop.f32.mrf.mxu0
    %v1641 = vadd.f32 %v380, %v1640
    %v1642 = vpop.f32.mrf.mxu0
    %v1643 = vadd.f32 %v384, %v1642
    %1644 = vdwg.mxu0
    %1645 = vmatprep.subr.mxu0 %v288
    %1646 = vmatpush1.msra.mxu0 %v287
    %1647 = vmatprep.subr.mxu0 %v284
    %1648 = vmatpush1.msra.mxu0 %v283
    %1649 = vmatprep.subr.mxu0 %v280
    %1650 = vmatpush1.msra.mxu0 %v279
    %1651 = vmatprep.subr.mxu0 %v276
    %1652 = vmatpush1.msra.mxu0 %v275
    %1653 = vmatprep.subr.mxu0 %v272
    %1654 = vmatpush1.msra.mxu0 %v271
    %1655 = vmatprep.subr.mxu0 %v268
    %1656 = vmatpush1.msra.mxu0 %v267
    %1657 = vmatprep.subr.mxu0 %v264
    %1658 = vmatpush1.msra.mxu0 %v263
    %1659 = vmatprep.subr.mxu0 %v260
    %1660 = vmatpush1.msra.mxu0 %v259
    %1661 = vmatprep.subr.mxu0 %v256
    %1662 = vmatpush1.msra.mxu0 %v255
    %1663 = vmatprep.subr.mxu0 %v252
    %1664 = vmatpush1.msra.mxu0 %v251
    %1665 = vmatprep.subr.mxu0 %v248
    %1666 = vmatpush1.msra.mxu0 %v247
    %1667 = vmatprep.subr.mxu0 %v244
    %1668 = vmatpush1.msra.mxu0 %v243
    %1669 = vmatprep.subr.mxu0 %v240
    %1670 = vmatpush1.msra.mxu0 %v239
    %1671 = vmatprep.subr.mxu0 %v236
    %1672 = vmatpush1.msra.mxu0 %v235
    %1673 = vmatprep.subr.mxu0 %v232
    %1674 = vmatpush1.msra.mxu0 %v231
    %1675 = vmatprep.subr.mxu0 %v228
    %1676 = vmatpush1.msra.mxu0 %v227
    %1677 = vmatprep.subr.mxu0 %v352
    %1678 = vmatpush2.msra.mxu0 %v351
    %1679 = vmatprep.subr.mxu0 %v348
    %1680 = vmatpush2.msra.mxu0 %v347
    %1681 = vmatprep.subr.mxu0 %v344
    %1682 = vmatpush2.msra.mxu0 %v343
    %1683 = vmatprep.subr.mxu0 %v340
    %1684 = vmatpush2.msra.mxu0 %v339
    %1685 = vmatprep.subr.mxu0 %v336
    %1686 = vmatpush2.msra.mxu0 %v335
    %1687 = vmatprep.subr.mxu0 %v332
    %1688 = vmatpush2.msra.mxu0 %v331
    %1689 = vmatprep.subr.mxu0 %v328
    %1690 = vmatpush2.msra.mxu0 %v327
    %1691 = vmatprep.subr.mxu0 %v324
    %1692 = vmatpush2.msra.mxu0 %v323
    %1693 = vmatprep.subr.mxu0 %v320
    %1694 = vmatpush2.msra.mxu0 %v319
    %1695 = vmatprep.subr.mxu0 %v316
    %1696 = vmatpush2.msra.mxu0 %v315
    %1697 = vmatprep.subr.mxu0 %v312
    %1698 = vmatpush2.msra.mxu0 %v311
    %1699 = vmatprep.subr.mxu0 %v308
    %1700 = vmatpush2.msra.mxu0 %v307
    %1701 = vmatprep.subr.mxu0 %v304
    %1702 = vmatpush2.msra.mxu0 %v303
    %1703 = vmatprep.subr.mxu0 %v300
    %1704 = vmatpush2.msra.mxu0 %v299
    %1705 = vmatprep.subr.mxu0 %v296
    %1706 = vmatpush2.msra.mxu0 %v295
    %1707 = vmatprep.subr.mxu0 %v292
    %1708 = vmatpush2.msra.mxu0 %v291
    %1709 = vmatprep.mubr.f32.mxu0 %v1402
    %1710 = vmatmul.mubr.f32.gmra.mxu0 %v1573
    %v1711 = vpop.f32.mrf.mxu0
    %v1712 = vadd.f32 %v388, %v1711
    %v1713 = vpop.f32.mrf.mxu0
    %v1714 = vadd.f32 %v392, %v1713
    %1715 = vdwg.mxu0
    %v1716 = vxor.u32 %v1641, 2147483648
    %v1717 = vmul.f32 %v1716, 1.442695
    %v1718 = vpow.pop %v1717
    %v1719 = vadd.f32 %v1718, 1.0
    %v1720 = vrcp.pop %v1719
    %v1721 = vmul.f32 1.0, %v1720
    %v1722 = vxor.u32 %v1643, 2147483648
    %v1723 = vmul.f32 %v1722, 1.442695
    %v1724 = vpow.pop %v1723
    %v1725 = vadd.f32 %v1724, 1.0
    %v1726 = vrcp.pop %v1725
    %v1727 = vmul.f32 1.0, %v1726
    %v1728 = vtanh.pop %v1712
    %v1729 = vxor.u32 %v1714, 2147483648
    %v1730 = vmul.f32 %v1729, 1.442695
    %v1731 = vpow.pop %v1730
    %v1732 = vadd.f32 %v1731, 1.0
    %v1733 = vrcp.pop %v1732
    %v1734 = vmul.f32 1.0, %v1733
    %v1735 = vmul.f32 %v1727, %v1400
    %v1736 = vmul.f32 %v1721, %v1728
    %v1737 = vadd.f32 %v1735, %v1736
    %v1738 = vtanh.pop %v1737
    %v1739 = vmul.f32 %v1734, %v1738
    %v1740 = vadd.f32 %v1573, %v1739
    %s1741 = scalar_lea.vmem [#allocation10], 24
    %1742 = vst [vmem:[%s1741] sm:$0xff] %v1740
    %s1743 = scalar_lea.vmem %s0, 32
    %v1744 = vld [vmem:[%s1743] sm:$0xff]
    %1745 = vmatprep.subr.mxu0 %v158
    %1746 = vmatpush1.msra.mxu0 %v157
    %1747 = vmatprep.subr.mxu0 %v154
    %1748 = vmatpush1.msra.mxu0 %v153
    %1749 = vmatprep.subr.mxu0 %v150
    %1750 = vmatpush1.msra.mxu0 %v149
    %1751 = vmatprep.subr.mxu0 %v146
    %1752 = vmatpush1.msra.mxu0 %v145
    %1753 = vmatprep.subr.mxu0 %v142
    %1754 = vmatpush1.msra.mxu0 %v141
    %1755 = vmatprep.subr.mxu0 %v138
    %1756 = vmatpush1.msra.mxu0 %v137
    %1757 = vmatprep.subr.mxu0 %v134
    %1758 = vmatpush1.msra.mxu0 %v133
    %1759 = vmatprep.subr.mxu0 %v130
    %1760 = vmatpush1.msra.mxu0 %v129
    %1761 = vmatprep.subr.mxu0 %v126
    %1762 = vmatpush1.msra.mxu0 %v125
    %1763 = vmatprep.subr.mxu0 %v122
    %1764 = vmatpush1.msra.mxu0 %v121
    %1765 = vmatprep.subr.mxu0 %v118
    %1766 = vmatpush1.msra.mxu0 %v117
    %1767 = vmatprep.subr.mxu0 %v114
    %1768 = vmatpush1.msra.mxu0 %v113
    %1769 = vmatprep.subr.mxu0 %v110
    %1770 = vmatpush1.msra.mxu0 %v109
    %1771 = vmatprep.subr.mxu0 %v106
    %1772 = vmatpush1.msra.mxu0 %v105
    %1773 = vmatprep.subr.mxu0 %v102
    %1774 = vmatpush1.msra.mxu0 %v101
    %1775 = vmatprep.subr.mxu0 %v98
    %1776 = vmatpush1.msra.mxu0 %v97
    %1777 = vmatprep.subr.mxu0 %v222
    %1778 = vmatpush2.msra.mxu0 %v221
    %1779 = vmatprep.subr.mxu0 %v218
    %1780 = vmatpush2.msra.mxu0 %v217
    %1781 = vmatprep.subr.mxu0 %v214
    %1782 = vmatpush2.msra.mxu0 %v213
    %1783 = vmatprep.subr.mxu0 %v210
    %1784 = vmatpush2.msra.mxu0 %v209
    %1785 = vmatprep.subr.mxu0 %v206
    %1786 = vmatpush2.msra.mxu0 %v205
    %1787 = vmatprep.subr.mxu0 %v202
    %1788 = vmatpush2.msra.mxu0 %v201
    %1789 = vmatprep.subr.mxu0 %v198
    %1790 = vmatpush2.msra.mxu0 %v197
    %1791 = vmatprep.subr.mxu0 %v194
    %1792 = vmatpush2.msra.mxu0 %v193
    %1793 = vmatprep.subr.mxu0 %v190
    %1794 = vmatpush2.msra.mxu0 %v189
    %1795 = vmatprep.subr.mxu0 %v186
    %1796 = vmatpush2.msra.mxu0 %v185
    %1797 = vmatprep.subr.mxu0 %v182
    %1798 = vmatpush2.msra.mxu0 %v181
    %1799 = vmatprep.subr.mxu0 %v178
    %1800 = vmatpush2.msra.mxu0 %v177
    %1801 = vmatprep.subr.mxu0 %v174
    %1802 = vmatpush2.msra.mxu0 %v173
    %1803 = vmatprep.subr.mxu0 %v170
    %1804 = vmatpush2.msra.mxu0 %v169
    %1805 = vmatprep.subr.mxu0 %v166
    %1806 = vmatpush2.msra.mxu0 %v165
    %1807 = vmatprep.subr.mxu0 %v162
    %1808 = vmatpush2.msra.mxu0 %v161
    %1809 = vmatprep.mubr.f32.mxu0 %v1573
    %1810 = vmatmul.mubr.f32.gmra.mxu0 %v1744
    %v1811 = vpop.f32.mrf.mxu0
    %v1812 = vadd.f32 %v358, %v1811
    %v1813 = vpop.f32.mrf.mxu0
    %v1814 = vadd.f32 %v362, %v1813
    %1815 = vdwg.mxu0
    %1816 = vmatprep.subr.mxu0 %v160
    %1817 = vmatpush1.msra.mxu0 %v159
    %1818 = vmatprep.subr.mxu0 %v156
    %1819 = vmatpush1.msra.mxu0 %v155
    %1820 = vmatprep.subr.mxu0 %v152
    %1821 = vmatpush1.msra.mxu0 %v151
    %1822 = vmatprep.subr.mxu0 %v148
    %1823 = vmatpush1.msra.mxu0 %v147
    %1824 = vmatprep.subr.mxu0 %v144
    %1825 = vmatpush1.msra.mxu0 %v143
    %1826 = vmatprep.subr.mxu0 %v140
    %1827 = vmatpush1.msra.mxu0 %v139
    %1828 = vmatprep.subr.mxu0 %v136
    %1829 = vmatpush1.msra.mxu0 %v135
    %1830 = vmatprep.subr.mxu0 %v132
    %1831 = vmatpush1.msra.mxu0 %v131
    %1832 = vmatprep.subr.mxu0 %v128
    %1833 = vmatpush1.msra.mxu0 %v127
    %1834 = vmatprep.subr.mxu0 %v124
    %1835 = vmatpush1.msra.mxu0 %v123
    %1836 = vmatprep.subr.mxu0 %v120
    %1837 = vmatpush1.msra.mxu0 %v119
    %1838 = vmatprep.subr.mxu0 %v116
    %1839 = vmatpush1.msra.mxu0 %v115
    %1840 = vmatprep.subr.mxu0 %v112
    %1841 = vmatpush1.msra.mxu0 %v111
    %1842 = vmatprep.subr.mxu0 %v108
    %1843 = vmatpush1.msra.mxu0 %v107
    %1844 = vmatprep.subr.mxu0 %v104
    %1845 = vmatpush1.msra.mxu0 %v103
    %1846 = vmatprep.subr.mxu0 %v100
    %1847 = vmatpush1.msra.mxu0 %v99
    %1848 = vmatprep.subr.mxu0 %v224
    %1849 = vmatpush2.msra.mxu0 %v223
    %1850 = vmatprep.subr.mxu0 %v220
    %1851 = vmatpush2.msra.mxu0 %v219
    %1852 = vmatprep.subr.mxu0 %v216
    %1853 = vmatpush2.msra.mxu0 %v215
    %1854 = vmatprep.subr.mxu0 %v212
    %1855 = vmatpush2.msra.mxu0 %v211
    %1856 = vmatprep.subr.mxu0 %v208
    %1857 = vmatpush2.msra.mxu0 %v207
    %1858 = vmatprep.subr.mxu0 %v204
    %1859 = vmatpush2.msra.mxu0 %v203
    %1860 = vmatprep.subr.mxu0 %v200
    %1861 = vmatpush2.msra.mxu0 %v199
    %1862 = vmatprep.subr.mxu0 %v196
    %1863 = vmatpush2.msra.mxu0 %v195
    %1864 = vmatprep.subr.mxu0 %v192
    %1865 = vmatpush2.msra.mxu0 %v191
    %1866 = vmatprep.subr.mxu0 %v188
    %1867 = vmatpush2.msra.mxu0 %v187
    %1868 = vmatprep.subr.mxu0 %v184
    %1869 = vmatpush2.msra.mxu0 %v183
    %1870 = vmatprep.subr.mxu0 %v180
    %1871 = vmatpush2.msra.mxu0 %v179
    %1872 = vmatprep.subr.mxu0 %v176
    %1873 = vmatpush2.msra.mxu0 %v175
    %1874 = vmatprep.subr.mxu0 %v172
    %1875 = vmatpush2.msra.mxu0 %v171
    %1876 = vmatprep.subr.mxu0 %v168
    %1877 = vmatpush2.msra.mxu0 %v167
    %1878 = vmatprep.subr.mxu0 %v164
    %1879 = vmatpush2.msra.mxu0 %v163
    %1880 = vmatprep.mubr.f32.mxu0 %v1573
    %1881 = vmatmul.mubr.f32.gmra.mxu0 %v1744
    %v1882 = vpop.f32.mrf.mxu0
    %v1883 = vadd.f32 %v366, %v1882
    %v1884 = vpop.f32.mrf.mxu0
    %v1885 = vadd.f32 %v370, %v1884
    %1886 = vdwg.mxu0
    %v1887 = vxor.u32 %v1812, 2147483648
    %v1888 = vmul.f32 %v1887, 1.442695
    %v1889 = vpow.pop %v1888
    %v1890 = vadd.f32 %v1889, 1.0
    %v1891 = vrcp.pop %v1890
    %v1892 = vmul.f32 1.0, %v1891
    %v1893 = vxor.u32 %v1814, 2147483648
    %v1894 = vmul.f32 %v1893, 1.442695
    %v1895 = vpow.pop %v1894
    %v1896 = vadd.f32 %v1895, 1.0
    %v1897 = vrcp.pop %v1896
    %v1898 = vmul.f32 1.0, %v1897
    %v1899 = vtanh.pop %v1883
    %v1900 = vxor.u32 %v1885, 2147483648
    %v1901 = vmul.f32 %v1900, 1.442695
    %v1902 = vpow.pop %v1901
    %v1903 = vadd.f32 %v1902, 1.0
    %v1904 = vrcp.pop %v1903
    %v1905 = vmul.f32 1.0, %v1904
    %v1906 = vmul.f32 %v1898, %v1571
    %v1907 = vmul.f32 %v1892, %v1899
    %v1908 = vadd.f32 %v1906, %v1907
    %v1909 = vtanh.pop %v1908
    %v1910 = vmul.f32 %v1905, %v1909
    %1911 = vmatprep.subr.mxu0 %v286
    %1912 = vmatpush1.msra.mxu0 %v285
    %1913 = vmatprep.subr.mxu0 %v282
    %1914 = vmatpush1.msra.mxu0 %v281
    %1915 = vmatprep.subr.mxu0 %v278
    %1916 = vmatpush1.msra.mxu0 %v277
    %1917 = vmatprep.subr.mxu0 %v274
    %1918 = vmatpush1.msra.mxu0 %v273
    %1919 = vmatprep.subr.mxu0 %v270
    %1920 = vmatpush1.msra.mxu0 %v269
    %1921 = vmatprep.subr.mxu0 %v266
    %1922 = vmatpush1.msra.mxu0 %v265
    %1923 = vmatprep.subr.mxu0 %v262
    %1924 = vmatpush1.msra.mxu0 %v261
    %1925 = vmatprep.subr.mxu0 %v258
    %1926 = vmatpush1.msra.mxu0 %v257
    %1927 = vmatprep.subr.mxu0 %v254
    %1928 = vmatpush1.msra.mxu0 %v253
    %1929 = vmatprep.subr.mxu0 %v250
    %1930 = vmatpush1.msra.mxu0 %v249
    %1931 = vmatprep.subr.mxu0 %v246
    %1932 = vmatpush1.msra.mxu0 %v245
    %1933 = vmatprep.subr.mxu0 %v242
    %1934 = vmatpush1.msra.mxu0 %v241
    %1935 = vmatprep.subr.mxu0 %v238
    %1936 = vmatpush1.msra.mxu0 %v237
    %1937 = vmatprep.subr.mxu0 %v234
    %1938 = vmatpush1.msra.mxu0 %v233
    %1939 = vmatprep.subr.mxu0 %v230
    %1940 = vmatpush1.msra.mxu0 %v229
    %1941 = vmatprep.subr.mxu0 %v226
    %1942 = vmatpush1.msra.mxu0 %v225
    %1943 = vmatprep.subr.mxu0 %v350
    %1944 = vmatpush2.msra.mxu0 %v349
    %1945 = vmatprep.subr.mxu0 %v346
    %1946 = vmatpush2.msra.mxu0 %v345
    %1947 = vmatprep.subr.mxu0 %v342
    %1948 = vmatpush2.msra.mxu0 %v341
    %1949 = vmatprep.subr.mxu0 %v338
    %1950 = vmatpush2.msra.mxu0 %v337
    %1951 = vmatprep.subr.mxu0 %v334
    %1952 = vmatpush2.msra.mxu0 %v333
    %1953 = vmatprep.subr.mxu0 %v330
    %1954 = vmatpush2.msra.mxu0 %v329
    %1955 = vmatprep.subr.mxu0 %v326
    %1956 = vmatpush2.msra.mxu0 %v325
    %1957 = vmatprep.subr.mxu0 %v322
    %1958 = vmatpush2.msra.mxu0 %v321
    %1959 = vmatprep.subr.mxu0 %v318
    %1960 = vmatpush2.msra.mxu0 %v317
    %1961 = vmatprep.subr.mxu0 %v314
    %1962 = vmatpush2.msra.mxu0 %v313
    %1963 = vmatprep.subr.mxu0 %v310
    %1964 = vmatpush2.msra.mxu0 %v309
    %1965 = vmatprep.subr.mxu0 %v306
    %1966 = vmatpush2.msra.mxu0 %v305
    %1967 = vmatprep.subr.mxu0 %v302
    %1968 = vmatpush2.msra.mxu0 %v301
    %1969 = vmatprep.subr.mxu0 %v298
    %1970 = vmatpush2.msra.mxu0 %v297
    %1971 = vmatprep.subr.mxu0 %v294
    %1972 = vmatpush2.msra.mxu0 %v293
    %1973 = vmatprep.subr.mxu0 %v290
    %1974 = vmatpush2.msra.mxu0 %v289
    %1975 = vmatprep.mubr.f32.mxu0 %v1739
    %1976 = vmatmul.mubr.f32.gmra.mxu0 %v1910
    %v1977 = vpop.f32.mrf.mxu0
    %v1978 = vadd.f32 %v380, %v1977
    %v1979 = vpop.f32.mrf.mxu0
    %v1980 = vadd.f32 %v384, %v1979
    %1981 = vdwg.mxu0
    %1982 = vmatprep.subr.mxu0 %v288
    %1983 = vmatpush1.msra.mxu0 %v287
    %1984 = vmatprep.subr.mxu0 %v284
    %1985 = vmatpush1.msra.mxu0 %v283
    %1986 = vmatprep.subr.mxu0 %v280
    %1987 = vmatpush1.msra.mxu0 %v279
    %1988 = vmatprep.subr.mxu0 %v276
    %1989 = vmatpush1.msra.mxu0 %v275
    %1990 = vmatprep.subr.mxu0 %v272
    %1991 = vmatpush1.msra.mxu0 %v271
    %1992 = vmatprep.subr.mxu0 %v268
    %1993 = vmatpush1.msra.mxu0 %v267
    %1994 = vmatprep.subr.mxu0 %v264
    %1995 = vmatpush1.msra.mxu0 %v263
    %1996 = vmatprep.subr.mxu0 %v260
    %1997 = vmatpush1.msra.mxu0 %v259
    %1998 = vmatprep.subr.mxu0 %v256
    %1999 = vmatpush1.msra.mxu0 %v255
    %2000 = vmatprep.subr.mxu0 %v252
    %2001 = vmatpush1.msra.mxu0 %v251
    %2002 = vmatprep.subr.mxu0 %v248
    %2003 = vmatpush1.msra.mxu0 %v247
    %2004 = vmatprep.subr.mxu0 %v244
    %2005 = vmatpush1.msra.mxu0 %v243
    %2006 = vmatprep.subr.mxu0 %v240
    %2007 = vmatpush1.msra.mxu0 %v239
    %2008 = vmatprep.subr.mxu0 %v236
    %2009 = vmatpush1.msra.mxu0 %v235
    %2010 = vmatprep.subr.mxu0 %v232
    %2011 = vmatpush1.msra.mxu0 %v231
    %2012 = vmatprep.subr.mxu0 %v228
    %2013 = vmatpush1.msra.mxu0 %v227
    %2014 = vmatprep.subr.mxu0 %v352
    %2015 = vmatpush2.msra.mxu0 %v351
    %2016 = vmatprep.subr.mxu0 %v348
    %2017 = vmatpush2.msra.mxu0 %v347
    %2018 = vmatprep.subr.mxu0 %v344
    %2019 = vmatpush2.msra.mxu0 %v343
    %2020 = vmatprep.subr.mxu0 %v340
    %2021 = vmatpush2.msra.mxu0 %v339
    %2022 = vmatprep.subr.mxu0 %v336
    %2023 = vmatpush2.msra.mxu0 %v335
    %2024 = vmatprep.subr.mxu0 %v332
    %2025 = vmatpush2.msra.mxu0 %v331
    %2026 = vmatprep.subr.mxu0 %v328
    %2027 = vmatpush2.msra.mxu0 %v327
    %2028 = vmatprep.subr.mxu0 %v324
    %2029 = vmatpush2.msra.mxu0 %v323
    %2030 = vmatprep.subr.mxu0 %v320
    %2031 = vmatpush2.msra.mxu0 %v319
    %2032 = vmatprep.subr.mxu0 %v316
    %2033 = vmatpush2.msra.mxu0 %v315
    %2034 = vmatprep.subr.mxu0 %v312
    %2035 = vmatpush2.msra.mxu0 %v311
    %2036 = vmatprep.subr.mxu0 %v308
    %2037 = vmatpush2.msra.mxu0 %v307
    %2038 = vmatprep.subr.mxu0 %v304
    %2039 = vmatpush2.msra.mxu0 %v303
    %2040 = vmatprep.subr.mxu0 %v300
    %2041 = vmatpush2.msra.mxu0 %v299
    %2042 = vmatprep.subr.mxu0 %v296
    %2043 = vmatpush2.msra.mxu0 %v295
    %2044 = vmatprep.subr.mxu0 %v292
    %2045 = vmatpush2.msra.mxu0 %v291
    %2046 = vmatprep.mubr.f32.mxu0 %v1739
    %2047 = vmatmul.mubr.f32.gmra.mxu0 %v1910
    %v2048 = vpop.f32.mrf.mxu0
    %v2049 = vadd.f32 %v388, %v2048
    %v2050 = vpop.f32.mrf.mxu0
    %v2051 = vadd.f32 %v392, %v2050
    %2052 = vdwg.mxu0
    %v2053 = vxor.u32 %v1978, 2147483648
    %v2054 = vmul.f32 %v2053, 1.442695
    %v2055 = vpow.pop %v2054
    %v2056 = vadd.f32 %v2055, 1.0
    %v2057 = vrcp.pop %v2056
    %v2058 = vmul.f32 1.0, %v2057
    %v2059 = vxor.u32 %v1980, 2147483648
    %v2060 = vmul.f32 %v2059, 1.442695
    %v2061 = vpow.pop %v2060
    %v2062 = vadd.f32 %v2061, 1.0
    %v2063 = vrcp.pop %v2062
    %v2064 = vmul.f32 1.0, %v2063
    %v2065 = vtanh.pop %v2049
    %v2066 = vxor.u32 %v2051, 2147483648
    %v2067 = vmul.f32 %v2066, 1.442695
    %v2068 = vpow.pop %v2067
    %v2069 = vadd.f32 %v2068, 1.0
    %v2070 = vrcp.pop %v2069
    %v2071 = vmul.f32 1.0, %v2070
    %v2072 = vmul.f32 %v2064, %v1737
    %v2073 = vmul.f32 %v2058, %v2065
    %v2074 = vadd.f32 %v2072, %v2073
    %v2075 = vtanh.pop %v2074
    %v2076 = vmul.f32 %v2071, %v2075
    %v2077 = vadd.f32 %v1910, %v2076
    %s2078 = scalar_lea.vmem [#allocation10], 32
    %2079 = vst [vmem:[%s2078] sm:$0xff] %v2077
    %s2080 = scalar_lea.vmem %s0, 40
    %v2081 = vld [vmem:[%s2080] sm:$0xff]
    %2082 = vmatprep.subr.mxu0 %v158
    %2083 = vmatpush1.msra.mxu0 %v157
    %2084 = vmatprep.subr.mxu0 %v154
    %2085 = vmatpush1.msra.mxu0 %v153
    %2086 = vmatprep.subr.mxu0 %v150
    %2087 = vmatpush1.msra.mxu0 %v149
    %2088 = vmatprep.subr.mxu0 %v146
    %2089 = vmatpush1.msra.mxu0 %v145
    %2090 = vmatprep.subr.mxu0 %v142
    %2091 = vmatpush1.msra.mxu0 %v141
    %2092 = vmatprep.subr.mxu0 %v138
    %2093 = vmatpush1.msra.mxu0 %v137
    %2094 = vmatprep.subr.mxu0 %v134
    %2095 = vmatpush1.msra.mxu0 %v133
    %2096 = vmatprep.subr.mxu0 %v130
    %2097 = vmatpush1.msra.mxu0 %v129
    %2098 = vmatprep.subr.mxu0 %v126
    %2099 = vmatpush1.msra.mxu0 %v125
    %2100 = vmatprep.subr.mxu0 %v122
    %2101 = vmatpush1.msra.mxu0 %v121
    %2102 = vmatprep.subr.mxu0 %v118
    %2103 = vmatpush1.msra.mxu0 %v117
    %2104 = vmatprep.subr.mxu0 %v114
    %2105 = vmatpush1.msra.mxu0 %v113
    %2106 = vmatprep.subr.mxu0 %v110
    %2107 = vmatpush1.msra.mxu0 %v109
    %2108 = vmatprep.subr.mxu0 %v106
    %2109 = vmatpush1.msra.mxu0 %v105
    %2110 = vmatprep.subr.mxu0 %v102
    %2111 = vmatpush1.msra.mxu0 %v101
    %2112 = vmatprep.subr.mxu0 %v98
    %2113 = vmatpush1.msra.mxu0 %v97
    %2114 = vmatprep.subr.mxu0 %v222
    %2115 = vmatpush2.msra.mxu0 %v221
    %2116 = vmatprep.subr.mxu0 %v218
    %2117 = vmatpush2.msra.mxu0 %v217
    %2118 = vmatprep.subr.mxu0 %v214
    %2119 = vmatpush2.msra.mxu0 %v213
    %2120 = vmatprep.subr.mxu0 %v210
    %2121 = vmatpush2.msra.mxu0 %v209
    %2122 = vmatprep.subr.mxu0 %v206
    %2123 = vmatpush2.msra.mxu0 %v205
    %2124 = vmatprep.subr.mxu0 %v202
    %2125 = vmatpush2.msra.mxu0 %v201
    %2126 = vmatprep.subr.mxu0 %v198
    %2127 = vmatpush2.msra.mxu0 %v197
    %2128 = vmatprep.subr.mxu0 %v194
    %2129 = vmatpush2.msra.mxu0 %v193
    %2130 = vmatprep.subr.mxu0 %v190
    %2131 = vmatpush2.msra.mxu0 %v189
    %2132 = vmatprep.subr.mxu0 %v186
    %2133 = vmatpush2.msra.mxu0 %v185
    %2134 = vmatprep.subr.mxu0 %v182
    %2135 = vmatpush2.msra.mxu0 %v181
    %2136 = vmatprep.subr.mxu0 %v178
    %2137 = vmatpush2.msra.mxu0 %v177
    %2138 = vmatprep.subr.mxu0 %v174
    %2139 = vmatpush2.msra.mxu0 %v173
    %2140 = vmatprep.subr.mxu0 %v170
    %2141 = vmatpush2.msra.mxu0 %v169
    %2142 = vmatprep.subr.mxu0 %v166
    %2143 = vmatpush2.msra.mxu0 %v165
    %2144 = vmatprep.subr.mxu0 %v162
    %2145 = vmatpush2.msra.mxu0 %v161
    %2146 = vmatprep.mubr.f32.mxu0 %v1910
    %2147 = vmatmul.mubr.f32.gmra.mxu0 %v2081
    %v2148 = vpop.f32.mrf.mxu0
    %v2149 = vadd.f32 %v358, %v2148
    %v2150 = vpop.f32.mrf.mxu0
    %v2151 = vadd.f32 %v362, %v2150
    %2152 = vdwg.mxu0
    %2153 = vmatprep.subr.mxu0 %v160
    %2154 = vmatpush1.msra.mxu0 %v159
    %2155 = vmatprep.subr.mxu0 %v156
    %2156 = vmatpush1.msra.mxu0 %v155
    %2157 = vmatprep.subr.mxu0 %v152
    %2158 = vmatpush1.msra.mxu0 %v151
    %2159 = vmatprep.subr.mxu0 %v148
    %2160 = vmatpush1.msra.mxu0 %v147
    %2161 = vmatprep.subr.mxu0 %v144
    %2162 = vmatpush1.msra.mxu0 %v143
    %2163 = vmatprep.subr.mxu0 %v140
    %2164 = vmatpush1.msra.mxu0 %v139
    %2165 = vmatprep.subr.mxu0 %v136
    %2166 = vmatpush1.msra.mxu0 %v135
    %2167 = vmatprep.subr.mxu0 %v132
    %2168 = vmatpush1.msra.mxu0 %v131
    %2169 = vmatprep.subr.mxu0 %v128
    %2170 = vmatpush1.msra.mxu0 %v127
    %2171 = vmatprep.subr.mxu0 %v124
    %2172 = vmatpush1.msra.mxu0 %v123
    %2173 = vmatprep.subr.mxu0 %v120
    %2174 = vmatpush1.msra.mxu0 %v119
    %2175 = vmatprep.subr.mxu0 %v116
    %2176 = vmatpush1.msra.mxu0 %v115
    %2177 = vmatprep.subr.mxu0 %v112
    %2178 = vmatpush1.msra.mxu0 %v111
    %2179 = vmatprep.subr.mxu0 %v108
    %2180 = vmatpush1.msra.mxu0 %v107
    %2181 = vmatprep.subr.mxu0 %v104
    %2182 = vmatpush1.msra.mxu0 %v103
    %2183 = vmatprep.subr.mxu0 %v100
    %2184 = vmatpush1.msra.mxu0 %v99
    %2185 = vmatprep.subr.mxu0 %v224
    %2186 = vmatpush2.msra.mxu0 %v223
    %2187 = vmatprep.subr.mxu0 %v220
    %2188 = vmatpush2.msra.mxu0 %v219
    %2189 = vmatprep.subr.mxu0 %v216
    %2190 = vmatpush2.msra.mxu0 %v215
    %2191 = vmatprep.subr.mxu0 %v212
    %2192 = vmatpush2.msra.mxu0 %v211
    %2193 = vmatprep.subr.mxu0 %v208
    %2194 = vmatpush2.msra.mxu0 %v207
    %2195 = vmatprep.subr.mxu0 %v204
    %2196 = vmatpush2.msra.mxu0 %v203
    %2197 = vmatprep.subr.mxu0 %v200
    %2198 = vmatpush2.msra.mxu0 %v199
    %2199 = vmatprep.subr.mxu0 %v196
    %2200 = vmatpush2.msra.mxu0 %v195
    %2201 = vmatprep.subr.mxu0 %v192
    %2202 = vmatpush2.msra.mxu0 %v191
    %2203 = vmatprep.subr.mxu0 %v188
    %2204 = vmatpush2.msra.mxu0 %v187
    %2205 = vmatprep.subr.mxu0 %v184
    %2206 = vmatpush2.msra.mxu0 %v183
    %2207 = vmatprep.subr.mxu0 %v180
    %2208 = vmatpush2.msra.mxu0 %v179
    %2209 = vmatprep.subr.mxu0 %v176
    %2210 = vmatpush2.msra.mxu0 %v175
    %2211 = vmatprep.subr.mxu0 %v172
    %2212 = vmatpush2.msra.mxu0 %v171
    %2213 = vmatprep.subr.mxu0 %v168
    %2214 = vmatpush2.msra.mxu0 %v167
    %2215 = vmatprep.subr.mxu0 %v164
    %2216 = vmatpush2.msra.mxu0 %v163
    %2217 = vmatprep.mubr.f32.mxu0 %v1910
    %2218 = vmatmul.mubr.f32.gmra.mxu0 %v2081
    %v2219 = vpop.f32.mrf.mxu0
    %v2220 = vadd.f32 %v366, %v2219
    %v2221 = vpop.f32.mrf.mxu0
    %v2222 = vadd.f32 %v370, %v2221
    %2223 = vdwg.mxu0
    %v2224 = vxor.u32 %v2149, 2147483648
    %v2225 = vmul.f32 %v2224, 1.442695
    %v2226 = vpow.pop %v2225
    %v2227 = vadd.f32 %v2226, 1.0
    %v2228 = vrcp.pop %v2227
    %v2229 = vmul.f32 1.0, %v2228
    %v2230 = vxor.u32 %v2151, 2147483648
    %v2231 = vmul.f32 %v2230, 1.442695
    %v2232 = vpow.pop %v2231
    %v2233 = vadd.f32 %v2232, 1.0
    %v2234 = vrcp.pop %v2233
    %v2235 = vmul.f32 1.0, %v2234
    %v2236 = vtanh.pop %v2220
    %v2237 = vxor.u32 %v2222, 2147483648
    %v2238 = vmul.f32 %v2237, 1.442695
    %v2239 = vpow.pop %v2238
    %v2240 = vadd.f32 %v2239, 1.0
    %v2241 = vrcp.pop %v2240
    %v2242 = vmul.f32 1.0, %v2241
    %v2243 = vmul.f32 %v2235, %v1908
    %v2244 = vmul.f32 %v2229, %v2236
    %v2245 = vadd.f32 %v2243, %v2244
    %v2246 = vtanh.pop %v2245
    %v2247 = vmul.f32 %v2242, %v2246
    %2248 = vmatprep.subr.mxu0 %v286
    %2249 = vmatpush1.msra.mxu0 %v285
    %2250 = vmatprep.subr.mxu0 %v282
    %2251 = vmatpush1.msra.mxu0 %v281
    %2252 = vmatprep.subr.mxu0 %v278
    %2253 = vmatpush1.msra.mxu0 %v277
    %2254 = vmatprep.subr.mxu0 %v274
    %2255 = vmatpush1.msra.mxu0 %v273
    %2256 = vmatprep.subr.mxu0 %v270
    %2257 = vmatpush1.msra.mxu0 %v269
    %2258 = vmatprep.subr.mxu0 %v266
    %2259 = vmatpush1.msra.mxu0 %v265
    %2260 = vmatprep.subr.mxu0 %v262
    %2261 = vmatpush1.msra.mxu0 %v261
    %2262 = vmatprep.subr.mxu0 %v258
    %2263 = vmatpush1.msra.mxu0 %v257
    %2264 = vmatprep.subr.mxu0 %v254
    %2265 = vmatpush1.msra.mxu0 %v253
    %2266 = vmatprep.subr.mxu0 %v250
    %2267 = vmatpush1.msra.mxu0 %v249
    %2268 = vmatprep.subr.mxu0 %v246
    %2269 = vmatpush1.msra.mxu0 %v245
    %2270 = vmatprep.subr.mxu0 %v242
    %2271 = vmatpush1.msra.mxu0 %v241
    %2272 = vmatprep.subr.mxu0 %v238
    %2273 = vmatpush1.msra.mxu0 %v237
    %2274 = vmatprep.subr.mxu0 %v234
    %2275 = vmatpush1.msra.mxu0 %v233
    %2276 = vmatprep.subr.mxu0 %v230
    %2277 = vmatpush1.msra.mxu0 %v229
    %2278 = vmatprep.subr.mxu0 %v226
    %2279 = vmatpush1.msra.mxu0 %v225
    %2280 = vmatprep.subr.mxu0 %v350
    %2281 = vmatpush2.msra.mxu0 %v349
    %2282 = vmatprep.subr.mxu0 %v346
    %2283 = vmatpush2.msra.mxu0 %v345
    %2284 = vmatprep.subr.mxu0 %v342
    %2285 = vmatpush2.msra.mxu0 %v341
    %2286 = vmatprep.subr.mxu0 %v338
    %2287 = vmatpush2.msra.mxu0 %v337
    %2288 = vmatprep.subr.mxu0 %v334
    %2289 = vmatpush2.msra.mxu0 %v333
    %2290 = vmatprep.subr.mxu0 %v330
    %2291 = vmatpush2.msra.mxu0 %v329
    %2292 = vmatprep.subr.mxu0 %v326
    %2293 = vmatpush2.msra.mxu0 %v325
    %2294 = vmatprep.subr.mxu0 %v322
    %2295 = vmatpush2.msra.mxu0 %v321
    %2296 = vmatprep.subr.mxu0 %v318
    %2297 = vmatpush2.msra.mxu0 %v317
    %2298 = vmatprep.subr.mxu0 %v314
    %2299 = vmatpush2.msra.mxu0 %v313
    %2300 = vmatprep.subr.mxu0 %v310
    %2301 = vmatpush2.msra.mxu0 %v309
    %2302 = vmatprep.subr.mxu0 %v306
    %2303 = vmatpush2.msra.mxu0 %v305
    %2304 = vmatprep.subr.mxu0 %v302
    %2305 = vmatpush2.msra.mxu0 %v301
    %2306 = vmatprep.subr.mxu0 %v298
    %2307 = vmatpush2.msra.mxu0 %v297
    %2308 = vmatprep.subr.mxu0 %v294
    %2309 = vmatpush2.msra.mxu0 %v293
    %2310 = vmatprep.subr.mxu0 %v290
    %2311 = vmatpush2.msra.mxu0 %v289
    %2312 = vmatprep.mubr.f32.mxu0 %v2076
    %2313 = vmatmul.mubr.f32.gmra.mxu0 %v2247
    %v2314 = vpop.f32.mrf.mxu0
    %v2315 = vadd.f32 %v380, %v2314
    %v2316 = vpop.f32.mrf.mxu0
    %v2317 = vadd.f32 %v384, %v2316
    %2318 = vdwg.mxu0
    %2319 = vmatprep.subr.mxu0 %v288
    %2320 = vmatpush1.msra.mxu0 %v287
    %2321 = vmatprep.subr.mxu0 %v284
    %2322 = vmatpush1.msra.mxu0 %v283
    %2323 = vmatprep.subr.mxu0 %v280
    %2324 = vmatpush1.msra.mxu0 %v279
    %2325 = vmatprep.subr.mxu0 %v276
    %2326 = vmatpush1.msra.mxu0 %v275
    %2327 = vmatprep.subr.mxu0 %v272
    %2328 = vmatpush1.msra.mxu0 %v271
    %2329 = vmatprep.subr.mxu0 %v268
    %2330 = vmatpush1.msra.mxu0 %v267
    %2331 = vmatprep.subr.mxu0 %v264
    %2332 = vmatpush1.msra.mxu0 %v263
    %2333 = vmatprep.subr.mxu0 %v260
    %2334 = vmatpush1.msra.mxu0 %v259
    %2335 = vmatprep.subr.mxu0 %v256
    %2336 = vmatpush1.msra.mxu0 %v255
    %2337 = vmatprep.subr.mxu0 %v252
    %2338 = vmatpush1.msra.mxu0 %v251
    %2339 = vmatprep.subr.mxu0 %v248
    %2340 = vmatpush1.msra.mxu0 %v247
    %2341 = vmatprep.subr.mxu0 %v244
    %2342 = vmatpush1.msra.mxu0 %v243
    %2343 = vmatprep.subr.mxu0 %v240
    %2344 = vmatpush1.msra.mxu0 %v239
    %2345 = vmatprep.subr.mxu0 %v236
    %2346 = vmatpush1.msra.mxu0 %v235
    %2347 = vmatprep.subr.mxu0 %v232
    %2348 = vmatpush1.msra.mxu0 %v231
    %2349 = vmatprep.subr.mxu0 %v228
    %2350 = vmatpush1.msra.mxu0 %v227
    %2351 = vmatprep.subr.mxu0 %v352
    %2352 = vmatpush2.msra.mxu0 %v351
    %2353 = vmatprep.subr.mxu0 %v348
    %2354 = vmatpush2.msra.mxu0 %v347
    %2355 = vmatprep.subr.mxu0 %v344
    %2356 = vmatpush2.msra.mxu0 %v343
    %2357 = vmatprep.subr.mxu0 %v340
    %2358 = vmatpush2.msra.mxu0 %v339
    %2359 = vmatprep.subr.mxu0 %v336
    %2360 = vmatpush2.msra.mxu0 %v335
    %2361 = vmatprep.subr.mxu0 %v332
    %2362 = vmatpush2.msra.mxu0 %v331
    %2363 = vmatprep.subr.mxu0 %v328
    %2364 = vmatpush2.msra.mxu0 %v327
    %2365 = vmatprep.subr.mxu0 %v324
    %2366 = vmatpush2.msra.mxu0 %v323
    %2367 = vmatprep.subr.mxu0 %v320
    %2368 = vmatpush2.msra.mxu0 %v319
    %2369 = vmatprep.subr.mxu0 %v316
    %2370 = vmatpush2.msra.mxu0 %v315
    %2371 = vmatprep.subr.mxu0 %v312
    %2372 = vmatpush2.msra.mxu0 %v311
    %2373 = vmatprep.subr.mxu0 %v308
    %2374 = vmatpush2.msra.mxu0 %v307
    %2375 = vmatprep.subr.mxu0 %v304
    %2376 = vmatpush2.msra.mxu0 %v303
    %2377 = vmatprep.subr.mxu0 %v300
    %2378 = vmatpush2.msra.mxu0 %v299
    %2379 = vmatprep.subr.mxu0 %v296
    %2380 = vmatpush2.msra.mxu0 %v295
    %2381 = vmatprep.subr.mxu0 %v292
    %2382 = vmatpush2.msra.mxu0 %v291
    %2383 = vmatprep.mubr.f32.mxu0 %v2076
    %2384 = vmatmul.mubr.f32.gmra.mxu0 %v2247
    %v2385 = vpop.f32.mrf.mxu0
    %v2386 = vadd.f32 %v388, %v2385
    %v2387 = vpop.f32.mrf.mxu0
    %v2388 = vadd.f32 %v392, %v2387
    %2389 = vdwg.mxu0
    %v2390 = vxor.u32 %v2315, 2147483648
    %v2391 = vmul.f32 %v2390, 1.442695
    %v2392 = vpow.pop %v2391
    %v2393 = vadd.f32 %v2392, 1.0
    %v2394 = vrcp.pop %v2393
    %v2395 = vmul.f32 1.0, %v2394
    %v2396 = vxor.u32 %v2317, 2147483648
    %v2397 = vmul.f32 %v2396, 1.442695
    %v2398 = vpow.pop %v2397
    %v2399 = vadd.f32 %v2398, 1.0
    %v2400 = vrcp.pop %v2399
    %v2401 = vmul.f32 1.0, %v2400
    %v2402 = vtanh.pop %v2386
    %v2403 = vxor.u32 %v2388, 2147483648
    %v2404 = vmul.f32 %v2403, 1.442695
    %v2405 = vpow.pop %v2404
    %v2406 = vadd.f32 %v2405, 1.0
    %v2407 = vrcp.pop %v2406
    %v2408 = vmul.f32 1.0, %v2407
    %v2409 = vmul.f32 %v2401, %v2074
    %v2410 = vmul.f32 %v2395, %v2402
    %v2411 = vadd.f32 %v2409, %v2410
    %v2412 = vtanh.pop %v2411
    %v2413 = vmul.f32 %v2408, %v2412
    %v2414 = vadd.f32 %v2247, %v2413
    %s2415 = scalar_lea.vmem [#allocation10], 40
    %2416 = vst [vmem:[%s2415] sm:$0xff] %v2414
    %s2417 = scalar_lea.vmem %s0, 48
    %v2418 = vld [vmem:[%s2417] sm:$0xff]
    %2419 = vmatprep.subr.mxu0 %v158
    %2420 = vmatpush1.msra.mxu0 %v157
    %2421 = vmatprep.subr.mxu0 %v154
    %2422 = vmatpush1.msra.mxu0 %v153
    %2423 = vmatprep.subr.mxu0 %v150
    %2424 = vmatpush1.msra.mxu0 %v149
    %2425 = vmatprep.subr.mxu0 %v146
    %2426 = vmatpush1.msra.mxu0 %v145
    %2427 = vmatprep.subr.mxu0 %v142
    %2428 = vmatpush1.msra.mxu0 %v141
    %2429 = vmatprep.subr.mxu0 %v138
    %2430 = vmatpush1.msra.mxu0 %v137
    %2431 = vmatprep.subr.mxu0 %v134
    %2432 = vmatpush1.msra.mxu0 %v133
    %2433 = vmatprep.subr.mxu0 %v130
    %2434 = vmatpush1.msra.mxu0 %v129
    %2435 = vmatprep.subr.mxu0 %v126
    %2436 = vmatpush1.msra.mxu0 %v125
    %2437 = vmatprep.subr.mxu0 %v122
    %2438 = vmatpush1.msra.mxu0 %v121
    %2439 = vmatprep.subr.mxu0 %v118
    %2440 = vmatpush1.msra.mxu0 %v117
    %2441 = vmatprep.subr.mxu0 %v114
    %2442 = vmatpush1.msra.mxu0 %v113
    %2443 = vmatprep.subr.mxu0 %v110
    %2444 = vmatpush1.msra.mxu0 %v109
    %2445 = vmatprep.subr.mxu0 %v106
    %2446 = vmatpush1.msra.mxu0 %v105
    %2447 = vmatprep.subr.mxu0 %v102
    %2448 = vmatpush1.msra.mxu0 %v101
    %2449 = vmatprep.subr.mxu0 %v98
    %2450 = vmatpush1.msra.mxu0 %v97
    %2451 = vmatprep.subr.mxu0 %v222
    %2452 = vmatpush2.msra.mxu0 %v221
    %2453 = vmatprep.subr.mxu0 %v218
    %2454 = vmatpush2.msra.mxu0 %v217
    %2455 = vmatprep.subr.mxu0 %v214
    %2456 = vmatpush2.msra.mxu0 %v213
    %2457 = vmatprep.subr.mxu0 %v210
    %2458 = vmatpush2.msra.mxu0 %v209
    %2459 = vmatprep.subr.mxu0 %v206
    %2460 = vmatpush2.msra.mxu0 %v205
    %2461 = vmatprep.subr.mxu0 %v202
    %2462 = vmatpush2.msra.mxu0 %v201
    %2463 = vmatprep.subr.mxu0 %v198
    %2464 = vmatpush2.msra.mxu0 %v197
    %2465 = vmatprep.subr.mxu0 %v194
    %2466 = vmatpush2.msra.mxu0 %v193
    %2467 = vmatprep.subr.mxu0 %v190
    %2468 = vmatpush2.msra.mxu0 %v189
    %2469 = vmatprep.subr.mxu0 %v186
    %2470 = vmatpush2.msra.mxu0 %v185
    %2471 = vmatprep.subr.mxu0 %v182
    %2472 = vmatpush2.msra.mxu0 %v181
    %2473 = vmatprep.subr.mxu0 %v178
    %2474 = vmatpush2.msra.mxu0 %v177
    %2475 = vmatprep.subr.mxu0 %v174
    %2476 = vmatpush2.msra.mxu0 %v173
    %2477 = vmatprep.subr.mxu0 %v170
    %2478 = vmatpush2.msra.mxu0 %v169
    %2479 = vmatprep.subr.mxu0 %v166
    %2480 = vmatpush2.msra.mxu0 %v165
    %2481 = vmatprep.subr.mxu0 %v162
    %2482 = vmatpush2.msra.mxu0 %v161
    %2483 = vmatprep.mubr.f32.mxu0 %v2247
    %2484 = vmatmul.mubr.f32.gmra.mxu0 %v2418
    %v2485 = vpop.f32.mrf.mxu0
    %v2486 = vadd.f32 %v358, %v2485
    %v2487 = vpop.f32.mrf.mxu0
    %v2488 = vadd.f32 %v362, %v2487
    %2489 = vdwg.mxu0
    %2490 = vmatprep.subr.mxu0 %v160
    %2491 = vmatpush1.msra.mxu0 %v159
    %2492 = vmatprep.subr.mxu0 %v156
    %2493 = vmatpush1.msra.mxu0 %v155
    %2494 = vmatprep.subr.mxu0 %v152
    %2495 = vmatpush1.msra.mxu0 %v151
    %2496 = vmatprep.subr.mxu0 %v148
    %2497 = vmatpush1.msra.mxu0 %v147
    %2498 = vmatprep.subr.mxu0 %v144
    %2499 = vmatpush1.msra.mxu0 %v143
    %2500 = vmatprep.subr.mxu0 %v140
    %2501 = vmatpush1.msra.mxu0 %v139
    %2502 = vmatprep.subr.mxu0 %v136
    %2503 = vmatpush1.msra.mxu0 %v135
    %2504 = vmatprep.subr.mxu0 %v132
    %2505 = vmatpush1.msra.mxu0 %v131
    %2506 = vmatprep.subr.mxu0 %v128
    %2507 = vmatpush1.msra.mxu0 %v127
    %2508 = vmatprep.subr.mxu0 %v124
    %2509 = vmatpush1.msra.mxu0 %v123
    %2510 = vmatprep.subr.mxu0 %v120
    %2511 = vmatpush1.msra.mxu0 %v119
    %2512 = vmatprep.subr.mxu0 %v116
    %2513 = vmatpush1.msra.mxu0 %v115
    %2514 = vmatprep.subr.mxu0 %v112
    %2515 = vmatpush1.msra.mxu0 %v111
    %2516 = vmatprep.subr.mxu0 %v108
    %2517 = vmatpush1.msra.mxu0 %v107
    %2518 = vmatprep.subr.mxu0 %v104
    %2519 = vmatpush1.msra.mxu0 %v103
    %2520 = vmatprep.subr.mxu0 %v100
    %2521 = vmatpush1.msra.mxu0 %v99
    %2522 = vmatprep.subr.mxu0 %v224
    %2523 = vmatpush2.msra.mxu0 %v223
    %2524 = vmatprep.subr.mxu0 %v220
    %2525 = vmatpush2.msra.mxu0 %v219
    %2526 = vmatprep.subr.mxu0 %v216
    %2527 = vmatpush2.msra.mxu0 %v215
    %2528 = vmatprep.subr.mxu0 %v212
    %2529 = vmatpush2.msra.mxu0 %v211
    %2530 = vmatprep.subr.mxu0 %v208
    %2531 = vmatpush2.msra.mxu0 %v207
    %2532 = vmatprep.subr.mxu0 %v204
    %2533 = vmatpush2.msra.mxu0 %v203
    %2534 = vmatprep.subr.mxu0 %v200
    %2535 = vmatpush2.msra.mxu0 %v199
    %2536 = vmatprep.subr.mxu0 %v196
    %2537 = vmatpush2.msra.mxu0 %v195
    %2538 = vmatprep.subr.mxu0 %v192
    %2539 = vmatpush2.msra.mxu0 %v191
    %2540 = vmatprep.subr.mxu0 %v188
    %2541 = vmatpush2.msra.mxu0 %v187
    %2542 = vmatprep.subr.mxu0 %v184
    %2543 = vmatpush2.msra.mxu0 %v183
    %2544 = vmatprep.subr.mxu0 %v180
    %2545 = vmatpush2.msra.mxu0 %v179
    %2546 = vmatprep.subr.mxu0 %v176
    %2547 = vmatpush2.msra.mxu0 %v175
    %2548 = vmatprep.subr.mxu0 %v172
    %2549 = vmatpush2.msra.mxu0 %v171
    %2550 = vmatprep.subr.mxu0 %v168
    %2551 = vmatpush2.msra.mxu0 %v167
    %2552 = vmatprep.subr.mxu0 %v164
    %2553 = vmatpush2.msra.mxu0 %v163
    %2554 = vmatprep.mubr.f32.mxu0 %v2247
    %2555 = vmatmul.mubr.f32.gmra.mxu0 %v2418
    %v2556 = vpop.f32.mrf.mxu0
    %v2557 = vadd.f32 %v366, %v2556
    %v2558 = vpop.f32.mrf.mxu0
    %v2559 = vadd.f32 %v370, %v2558
    %2560 = vdwg.mxu0
    %v2561 = vxor.u32 %v2486, 2147483648
    %v2562 = vmul.f32 %v2561, 1.442695
    %v2563 = vpow.pop %v2562
    %v2564 = vadd.f32 %v2563, 1.0
    %v2565 = vrcp.pop %v2564
    %v2566 = vmul.f32 1.0, %v2565
    %v2567 = vxor.u32 %v2488, 2147483648
    %v2568 = vmul.f32 %v2567, 1.442695
    %v2569 = vpow.pop %v2568
    %v2570 = vadd.f32 %v2569, 1.0
    %v2571 = vrcp.pop %v2570
    %v2572 = vmul.f32 1.0, %v2571
    %v2573 = vtanh.pop %v2557
    %v2574 = vxor.u32 %v2559, 2147483648
    %v2575 = vmul.f32 %v2574, 1.442695
    %v2576 = vpow.pop %v2575
    %v2577 = vadd.f32 %v2576, 1.0
    %v2578 = vrcp.pop %v2577
    %v2579 = vmul.f32 1.0, %v2578
    %v2580 = vmul.f32 %v2572, %v2245
    %v2581 = vmul.f32 %v2566, %v2573
    %v2582 = vadd.f32 %v2580, %v2581
    %v2583 = vtanh.pop %v2582
    %v2584 = vmul.f32 %v2579, %v2583
    %2585 = vmatprep.subr.mxu0 %v286
    %2586 = vmatpush1.msra.mxu0 %v285
    %2587 = vmatprep.subr.mxu0 %v282
    %2588 = vmatpush1.msra.mxu0 %v281
    %2589 = vmatprep.subr.mxu0 %v278
    %2590 = vmatpush1.msra.mxu0 %v277
    %2591 = vmatprep.subr.mxu0 %v274
    %2592 = vmatpush1.msra.mxu0 %v273
    %2593 = vmatprep.subr.mxu0 %v270
    %2594 = vmatpush1.msra.mxu0 %v269
    %2595 = vmatprep.subr.mxu0 %v266
    %2596 = vmatpush1.msra.mxu0 %v265
    %2597 = vmatprep.subr.mxu0 %v262
    %2598 = vmatpush1.msra.mxu0 %v261
    %2599 = vmatprep.subr.mxu0 %v258
    %2600 = vmatpush1.msra.mxu0 %v257
    %2601 = vmatprep.subr.mxu0 %v254
    %2602 = vmatpush1.msra.mxu0 %v253
    %2603 = vmatprep.subr.mxu0 %v250
    %2604 = vmatpush1.msra.mxu0 %v249
    %2605 = vmatprep.subr.mxu0 %v246
    %2606 = vmatpush1.msra.mxu0 %v245
    %2607 = vmatprep.subr.mxu0 %v242
    %2608 = vmatpush1.msra.mxu0 %v241
    %2609 = vmatprep.subr.mxu0 %v238
    %2610 = vmatpush1.msra.mxu0 %v237
    %2611 = vmatprep.subr.mxu0 %v234
    %2612 = vmatpush1.msra.mxu0 %v233
    %2613 = vmatprep.subr.mxu0 %v230
    %2614 = vmatpush1.msra.mxu0 %v229
    %2615 = vmatprep.subr.mxu0 %v226
    %2616 = vmatpush1.msra.mxu0 %v225
    %2617 = vmatprep.subr.mxu0 %v350
    %2618 = vmatpush2.msra.mxu0 %v349
    %2619 = vmatprep.subr.mxu0 %v346
    %2620 = vmatpush2.msra.mxu0 %v345
    %2621 = vmatprep.subr.mxu0 %v342
    %2622 = vmatpush2.msra.mxu0 %v341
    %2623 = vmatprep.subr.mxu0 %v338
    %2624 = vmatpush2.msra.mxu0 %v337
    %2625 = vmatprep.subr.mxu0 %v334
    %2626 = vmatpush2.msra.mxu0 %v333
    %2627 = vmatprep.subr.mxu0 %v330
    %2628 = vmatpush2.msra.mxu0 %v329
    %2629 = vmatprep.subr.mxu0 %v326
    %2630 = vmatpush2.msra.mxu0 %v325
    %2631 = vmatprep.subr.mxu0 %v322
    %2632 = vmatpush2.msra.mxu0 %v321
    %2633 = vmatprep.subr.mxu0 %v318
    %2634 = vmatpush2.msra.mxu0 %v317
    %2635 = vmatprep.subr.mxu0 %v314
    %2636 = vmatpush2.msra.mxu0 %v313
    %2637 = vmatprep.subr.mxu0 %v310
    %2638 = vmatpush2.msra.mxu0 %v309
    %2639 = vmatprep.subr.mxu0 %v306
    %2640 = vmatpush2.msra.mxu0 %v305
    %2641 = vmatprep.subr.mxu0 %v302
    %2642 = vmatpush2.msra.mxu0 %v301
    %2643 = vmatprep.subr.mxu0 %v298
    %2644 = vmatpush2.msra.mxu0 %v297
    %2645 = vmatprep.subr.mxu0 %v294
    %2646 = vmatpush2.msra.mxu0 %v293
    %2647 = vmatprep.subr.mxu0 %v290
    %2648 = vmatpush2.msra.mxu0 %v289
    %2649 = vmatprep.mubr.f32.mxu0 %v2413
    %2650 = vmatmul.mubr.f32.gmra.mxu0 %v2584
    %v2651 = vpop.f32.mrf.mxu0
    %v2652 = vadd.f32 %v380, %v2651
    %v2653 = vpop.f32.mrf.mxu0
    %v2654 = vadd.f32 %v384, %v2653
    %2655 = vdwg.mxu0
    %2656 = vmatprep.subr.mxu0 %v288
    %2657 = vmatpush1.msra.mxu0 %v287
    %2658 = vmatprep.subr.mxu0 %v284
    %2659 = vmatpush1.msra.mxu0 %v283
    %2660 = vmatprep.subr.mxu0 %v280
    %2661 = vmatpush1.msra.mxu0 %v279
    %2662 = vmatprep.subr.mxu0 %v276
    %2663 = vmatpush1.msra.mxu0 %v275
    %2664 = vmatprep.subr.mxu0 %v272
    %2665 = vmatpush1.msra.mxu0 %v271
    %2666 = vmatprep.subr.mxu0 %v268
    %2667 = vmatpush1.msra.mxu0 %v267
    %2668 = vmatprep.subr.mxu0 %v264
    %2669 = vmatpush1.msra.mxu0 %v263
    %2670 = vmatprep.subr.mxu0 %v260
    %2671 = vmatpush1.msra.mxu0 %v259
    %2672 = vmatprep.subr.mxu0 %v256
    %2673 = vmatpush1.msra.mxu0 %v255
    %2674 = vmatprep.subr.mxu0 %v252
    %2675 = vmatpush1.msra.mxu0 %v251
    %2676 = vmatprep.subr.mxu0 %v248
    %2677 = vmatpush1.msra.mxu0 %v247
    %2678 = vmatprep.subr.mxu0 %v244
    %2679 = vmatpush1.msra.mxu0 %v243
    %2680 = vmatprep.subr.mxu0 %v240
    %2681 = vmatpush1.msra.mxu0 %v239
    %2682 = vmatprep.subr.mxu0 %v236
    %2683 = vmatpush1.msra.mxu0 %v235
    %2684 = vmatprep.subr.mxu0 %v232
    %2685 = vmatpush1.msra.mxu0 %v231
    %2686 = vmatprep.subr.mxu0 %v228
    %2687 = vmatpush1.msra.mxu0 %v227
    %2688 = vmatprep.subr.mxu0 %v352
    %2689 = vmatpush2.msra.mxu0 %v351
    %2690 = vmatprep.subr.mxu0 %v348
    %2691 = vmatpush2.msra.mxu0 %v347
    %2692 = vmatprep.subr.mxu0 %v344
    %2693 = vmatpush2.msra.mxu0 %v343
    %2694 = vmatprep.subr.mxu0 %v340
    %2695 = vmatpush2.msra.mxu0 %v339
    %2696 = vmatprep.subr.mxu0 %v336
    %2697 = vmatpush2.msra.mxu0 %v335
    %2698 = vmatprep.subr.mxu0 %v332
    %2699 = vmatpush2.msra.mxu0 %v331
    %2700 = vmatprep.subr.mxu0 %v328
    %2701 = vmatpush2.msra.mxu0 %v327
    %2702 = vmatprep.subr.mxu0 %v324
    %2703 = vmatpush2.msra.mxu0 %v323
    %2704 = vmatprep.subr.mxu0 %v320
    %2705 = vmatpush2.msra.mxu0 %v319
    %2706 = vmatprep.subr.mxu0 %v316
    %2707 = vmatpush2.msra.mxu0 %v315
    %2708 = vmatprep.subr.mxu0 %v312
    %2709 = vmatpush2.msra.mxu0 %v311
    %2710 = vmatprep.subr.mxu0 %v308
    %2711 = vmatpush2.msra.mxu0 %v307
    %2712 = vmatprep.subr.mxu0 %v304
    %2713 = vmatpush2.msra.mxu0 %v303
    %2714 = vmatprep.subr.mxu0 %v300
    %2715 = vmatpush2.msra.mxu0 %v299
    %2716 = vmatprep.subr.mxu0 %v296
    %2717 = vmatpush2.msra.mxu0 %v295
    %2718 = vmatprep.subr.mxu0 %v292
    %2719 = vmatpush2.msra.mxu0 %v291
    %2720 = vmatprep.mubr.f32.mxu0 %v2413
    %2721 = vmatmul.mubr.f32.gmra.mxu0 %v2584
    %v2722 = vpop.f32.mrf.mxu0
    %v2723 = vadd.f32 %v388, %v2722
    %v2724 = vpop.f32.mrf.mxu0
    %v2725 = vadd.f32 %v392, %v2724
    %2726 = vdwg.mxu0
    %v2727 = vxor.u32 %v2652, 2147483648
    %v2728 = vmul.f32 %v2727, 1.442695
    %v2729 = vpow.pop %v2728
    %v2730 = vadd.f32 %v2729, 1.0
    %v2731 = vrcp.pop %v2730
    %v2732 = vmul.f32 1.0, %v2731
    %v2733 = vxor.u32 %v2654, 2147483648
    %v2734 = vmul.f32 %v2733, 1.442695
    %v2735 = vpow.pop %v2734
    %v2736 = vadd.f32 %v2735, 1.0
    %v2737 = vrcp.pop %v2736
    %v2738 = vmul.f32 1.0, %v2737
    %v2739 = vtanh.pop %v2723
    %v2740 = vxor.u32 %v2725, 2147483648
    %v2741 = vmul.f32 %v2740, 1.442695
    %v2742 = vpow.pop %v2741
    %v2743 = vadd.f32 %v2742, 1.0
    %v2744 = vrcp.pop %v2743
    %v2745 = vmul.f32 1.0, %v2744
    %v2746 = vmul.f32 %v2738, %v2411
    %v2747 = vmul.f32 %v2732, %v2739
    %v2748 = vadd.f32 %v2746, %v2747
    %v2749 = vtanh.pop %v2748
    %v2750 = vmul.f32 %v2745, %v2749
    %v2751 = vadd.f32 %v2584, %v2750
    %s2752 = scalar_lea.vmem [#allocation10], 48
    %2753 = vst [vmem:[%s2752] sm:$0xff] %v2751
    %s2754 = scalar_lea.vmem %s0, 56
    %v2755 = vld [vmem:[%s2754] sm:$0xff]
    %2756 = vmatprep.subr.mxu0 %v158
    %2757 = vmatpush1.msra.mxu0 %v157
    %2758 = vmatprep.subr.mxu0 %v154
    %2759 = vmatpush1.msra.mxu0 %v153
    %2760 = vmatprep.subr.mxu0 %v150
    %2761 = vmatpush1.msra.mxu0 %v149
    %2762 = vmatprep.subr.mxu0 %v146
    %2763 = vmatpush1.msra.mxu0 %v145
    %2764 = vmatprep.subr.mxu0 %v142
    %2765 = vmatpush1.msra.mxu0 %v141
    %2766 = vmatprep.subr.mxu0 %v138
    %2767 = vmatpush1.msra.mxu0 %v137
    %2768 = vmatprep.subr.mxu0 %v134
    %2769 = vmatpush1.msra.mxu0 %v133
    %2770 = vmatprep.subr.mxu0 %v130
    %2771 = vmatpush1.msra.mxu0 %v129
    %2772 = vmatprep.subr.mxu0 %v126
    %2773 = vmatpush1.msra.mxu0 %v125
    %2774 = vmatprep.subr.mxu0 %v122
    %2775 = vmatpush1.msra.mxu0 %v121
    %2776 = vmatprep.subr.mxu0 %v118
    %2777 = vmatpush1.msra.mxu0 %v117
    %2778 = vmatprep.subr.mxu0 %v114
    %2779 = vmatpush1.msra.mxu0 %v113
    %2780 = vmatprep.subr.mxu0 %v110
    %2781 = vmatpush1.msra.mxu0 %v109
    %2782 = vmatprep.subr.mxu0 %v106
    %2783 = vmatpush1.msra.mxu0 %v105
    %2784 = vmatprep.subr.mxu0 %v102
    %2785 = vmatpush1.msra.mxu0 %v101
    %2786 = vmatprep.subr.mxu0 %v98
    %2787 = vmatpush1.msra.mxu0 %v97
    %2788 = vmatprep.subr.mxu0 %v222
    %2789 = vmatpush2.msra.mxu0 %v221
    %2790 = vmatprep.subr.mxu0 %v218
    %2791 = vmatpush2.msra.mxu0 %v217
    %2792 = vmatprep.subr.mxu0 %v214
    %2793 = vmatpush2.msra.mxu0 %v213
    %2794 = vmatprep.subr.mxu0 %v210
    %2795 = vmatpush2.msra.mxu0 %v209
    %2796 = vmatprep.subr.mxu0 %v206
    %2797 = vmatpush2.msra.mxu0 %v205
    %2798 = vmatprep.subr.mxu0 %v202
    %2799 = vmatpush2.msra.mxu0 %v201
    %2800 = vmatprep.subr.mxu0 %v198
    %2801 = vmatpush2.msra.mxu0 %v197
    %2802 = vmatprep.subr.mxu0 %v194
    %2803 = vmatpush2.msra.mxu0 %v193
    %2804 = vmatprep.subr.mxu0 %v190
    %2805 = vmatpush2.msra.mxu0 %v189
    %2806 = vmatprep.subr.mxu0 %v186
    %2807 = vmatpush2.msra.mxu0 %v185
    %2808 = vmatprep.subr.mxu0 %v182
    %2809 = vmatpush2.msra.mxu0 %v181
    %2810 = vmatprep.subr.mxu0 %v178
    %2811 = vmatpush2.msra.mxu0 %v177
    %2812 = vmatprep.subr.mxu0 %v174
    %2813 = vmatpush2.msra.mxu0 %v173
    %2814 = vmatprep.subr.mxu0 %v170
    %2815 = vmatpush2.msra.mxu0 %v169
    %2816 = vmatprep.subr.mxu0 %v166
    %2817 = vmatpush2.msra.mxu0 %v165
    %2818 = vmatprep.subr.mxu0 %v162
    %2819 = vmatpush2.msra.mxu0 %v161
    %2820 = vmatprep.mubr.f32.mxu0 %v2584
    %2821 = vmatmul.mubr.f32.gmra.mxu0 %v2755
    %v2822 = vpop.f32.mrf.mxu0
    %v2823 = vadd.f32 %v358, %v2822
    %v2824 = vpop.f32.mrf.mxu0
    %v2825 = vadd.f32 %v362, %v2824
    %2826 = vdwg.mxu0
    %2827 = vmatprep.subr.mxu0 %v160
    %2828 = vmatpush1.msra.mxu0 %v159
    %2829 = vmatprep.subr.mxu0 %v156
    %2830 = vmatpush1.msra.mxu0 %v155
    %2831 = vmatprep.subr.mxu0 %v152
    %2832 = vmatpush1.msra.mxu0 %v151
    %2833 = vmatprep.subr.mxu0 %v148
    %2834 = vmatpush1.msra.mxu0 %v147
    %2835 = vmatprep.subr.mxu0 %v144
    %2836 = vmatpush1.msra.mxu0 %v143
    %2837 = vmatprep.subr.mxu0 %v140
    %2838 = vmatpush1.msra.mxu0 %v139
    %2839 = vmatprep.subr.mxu0 %v136
    %2840 = vmatpush1.msra.mxu0 %v135
    %2841 = vmatprep.subr.mxu0 %v132
    %2842 = vmatpush1.msra.mxu0 %v131
    %2843 = vmatprep.subr.mxu0 %v128
    %2844 = vmatpush1.msra.mxu0 %v127
    %2845 = vmatprep.subr.mxu0 %v124
    %2846 = vmatpush1.msra.mxu0 %v123
    %2847 = vmatprep.subr.mxu0 %v120
    %2848 = vmatpush1.msra.mxu0 %v119
    %2849 = vmatprep.subr.mxu0 %v116
    %2850 = vmatpush1.msra.mxu0 %v115
    %2851 = vmatprep.subr.mxu0 %v112
    %2852 = vmatpush1.msra.mxu0 %v111
    %2853 = vmatprep.subr.mxu0 %v108
    %2854 = vmatpush1.msra.mxu0 %v107
    %2855 = vmatprep.subr.mxu0 %v104
    %2856 = vmatpush1.msra.mxu0 %v103
    %2857 = vmatprep.subr.mxu0 %v100
    %2858 = vmatpush1.msra.mxu0 %v99
    %2859 = vmatprep.subr.mxu0 %v224
    %2860 = vmatpush2.msra.mxu0 %v223
    %2861 = vmatprep.subr.mxu0 %v220
    %2862 = vmatpush2.msra.mxu0 %v219
    %2863 = vmatprep.subr.mxu0 %v216
    %2864 = vmatpush2.msra.mxu0 %v215
    %2865 = vmatprep.subr.mxu0 %v212
    %2866 = vmatpush2.msra.mxu0 %v211
    %2867 = vmatprep.subr.mxu0 %v208
    %2868 = vmatpush2.msra.mxu0 %v207
    %2869 = vmatprep.subr.mxu0 %v204
    %2870 = vmatpush2.msra.mxu0 %v203
    %2871 = vmatprep.subr.mxu0 %v200
    %2872 = vmatpush2.msra.mxu0 %v199
    %2873 = vmatprep.subr.mxu0 %v196
    %2874 = vmatpush2.msra.mxu0 %v195
    %2875 = vmatprep.subr.mxu0 %v192
    %2876 = vmatpush2.msra.mxu0 %v191
    %2877 = vmatprep.subr.mxu0 %v188
    %2878 = vmatpush2.msra.mxu0 %v187
    %2879 = vmatprep.subr.mxu0 %v184
    %2880 = vmatpush2.msra.mxu0 %v183
    %2881 = vmatprep.subr.mxu0 %v180
    %2882 = vmatpush2.msra.mxu0 %v179
    %2883 = vmatprep.subr.mxu0 %v176
    %2884 = vmatpush2.msra.mxu0 %v175
    %2885 = vmatprep.subr.mxu0 %v172
    %2886 = vmatpush2.msra.mxu0 %v171
    %2887 = vmatprep.subr.mxu0 %v168
    %2888 = vmatpush2.msra.mxu0 %v167
    %2889 = vmatprep.subr.mxu0 %v164
    %2890 = vmatpush2.msra.mxu0 %v163
    %2891 = vmatprep.mubr.f32.mxu0 %v2584
    %2892 = vmatmul.mubr.f32.gmra.mxu0 %v2755
    %v2893 = vpop.f32.mrf.mxu0
    %v2894 = vadd.f32 %v366, %v2893
    %v2895 = vpop.f32.mrf.mxu0
    %v2896 = vadd.f32 %v370, %v2895
    %2897 = vdwg.mxu0
    %v2898 = vxor.u32 %v2823, 2147483648
    %v2899 = vmul.f32 %v2898, 1.442695
    %v2900 = vpow.pop %v2899
    %v2901 = vadd.f32 %v2900, 1.0
    %v2902 = vrcp.pop %v2901
    %v2903 = vmul.f32 1.0, %v2902
    %v2904 = vxor.u32 %v2825, 2147483648
    %v2905 = vmul.f32 %v2904, 1.442695
    %v2906 = vpow.pop %v2905
    %v2907 = vadd.f32 %v2906, 1.0
    %v2908 = vrcp.pop %v2907
    %v2909 = vmul.f32 1.0, %v2908
    %v2910 = vtanh.pop %v2894
    %v2911 = vxor.u32 %v2896, 2147483648
    %v2912 = vmul.f32 %v2911, 1.442695
    %v2913 = vpow.pop %v2912
    %v2914 = vadd.f32 %v2913, 1.0
    %v2915 = vrcp.pop %v2914
    %v2916 = vmul.f32 1.0, %v2915
    %v2917 = vmul.f32 %v2909, %v2582
    %v2918 = vmul.f32 %v2903, %v2910
    %v2919 = vadd.f32 %v2917, %v2918
    %v2920 = vtanh.pop %v2919
    %v2921 = vmul.f32 %v2916, %v2920
    %2922 = vmatprep.subr.mxu0 %v286
    %2923 = vmatpush1.msra.mxu0 %v285
    %2924 = vmatprep.subr.mxu0 %v282
    %2925 = vmatpush1.msra.mxu0 %v281
    %2926 = vmatprep.subr.mxu0 %v278
    %2927 = vmatpush1.msra.mxu0 %v277
    %2928 = vmatprep.subr.mxu0 %v274
    %2929 = vmatpush1.msra.mxu0 %v273
    %2930 = vmatprep.subr.mxu0 %v270
    %2931 = vmatpush1.msra.mxu0 %v269
    %2932 = vmatprep.subr.mxu0 %v266
    %2933 = vmatpush1.msra.mxu0 %v265
    %2934 = vmatprep.subr.mxu0 %v262
    %2935 = vmatpush1.msra.mxu0 %v261
    %2936 = vmatprep.subr.mxu0 %v258
    %2937 = vmatpush1.msra.mxu0 %v257
    %2938 = vmatprep.subr.mxu0 %v254
    %2939 = vmatpush1.msra.mxu0 %v253
    %2940 = vmatprep.subr.mxu0 %v250
    %2941 = vmatpush1.msra.mxu0 %v249
    %2942 = vmatprep.subr.mxu0 %v246
    %2943 = vmatpush1.msra.mxu0 %v245
    %2944 = vmatprep.subr.mxu0 %v242
    %2945 = vmatpush1.msra.mxu0 %v241
    %2946 = vmatprep.subr.mxu0 %v238
    %2947 = vmatpush1.msra.mxu0 %v237
    %2948 = vmatprep.subr.mxu0 %v234
    %2949 = vmatpush1.msra.mxu0 %v233
    %2950 = vmatprep.subr.mxu0 %v230
    %2951 = vmatpush1.msra.mxu0 %v229
    %2952 = vmatprep.subr.mxu0 %v226
    %2953 = vmatpush1.msra.mxu0 %v225
    %2954 = vmatprep.subr.mxu0 %v350
    %2955 = vmatpush2.msra.mxu0 %v349
    %2956 = vmatprep.subr.mxu0 %v346
    %2957 = vmatpush2.msra.mxu0 %v345
    %2958 = vmatprep.subr.mxu0 %v342
    %2959 = vmatpush2.msra.mxu0 %v341
    %2960 = vmatprep.subr.mxu0 %v338
    %2961 = vmatpush2.msra.mxu0 %v337
    %2962 = vmatprep.subr.mxu0 %v334
    %2963 = vmatpush2.msra.mxu0 %v333
    %2964 = vmatprep.subr.mxu0 %v330
    %2965 = vmatpush2.msra.mxu0 %v329
    %2966 = vmatprep.subr.mxu0 %v326
    %2967 = vmatpush2.msra.mxu0 %v325
    %2968 = vmatprep.subr.mxu0 %v322
    %2969 = vmatpush2.msra.mxu0 %v321
    %2970 = vmatprep.subr.mxu0 %v318
    %2971 = vmatpush2.msra.mxu0 %v317
    %2972 = vmatprep.subr.mxu0 %v314
    %2973 = vmatpush2.msra.mxu0 %v313
    %2974 = vmatprep.subr.mxu0 %v310
    %2975 = vmatpush2.msra.mxu0 %v309
    %2976 = vmatprep.subr.mxu0 %v306
    %2977 = vmatpush2.msra.mxu0 %v305
    %2978 = vmatprep.subr.mxu0 %v302
    %2979 = vmatpush2.msra.mxu0 %v301
    %2980 = vmatprep.subr.mxu0 %v298
    %2981 = vmatpush2.msra.mxu0 %v297
    %2982 = vmatprep.subr.mxu0 %v294
    %2983 = vmatpush2.msra.mxu0 %v293
    %2984 = vmatprep.subr.mxu0 %v290
    %2985 = vmatpush2.msra.mxu0 %v289
    %2986 = vmatprep.mubr.f32.mxu0 %v2750
    %2987 = vmatmul.mubr.f32.gmra.mxu0 %v2921
    %v2988 = vpop.f32.mrf.mxu0
    %v2989 = vadd.f32 %v380, %v2988
    %v2990 = vpop.f32.mrf.mxu0
    %v2991 = vadd.f32 %v384, %v2990
    %2992 = vdwg.mxu0
    %2993 = vmatprep.subr.mxu0 %v288
    %2994 = vmatpush1.msra.mxu0 %v287
    %2995 = vmatprep.subr.mxu0 %v284
    %2996 = vmatpush1.msra.mxu0 %v283
    %2997 = vmatprep.subr.mxu0 %v280
    %2998 = vmatpush1.msra.mxu0 %v279
    %2999 = vmatprep.subr.mxu0 %v276
    %3000 = vmatpush1.msra.mxu0 %v275
    %3001 = vmatprep.subr.mxu0 %v272
    %3002 = vmatpush1.msra.mxu0 %v271
    %3003 = vmatprep.subr.mxu0 %v268
    %3004 = vmatpush1.msra.mxu0 %v267
    %3005 = vmatprep.subr.mxu0 %v264
    %3006 = vmatpush1.msra.mxu0 %v263
    %3007 = vmatprep.subr.mxu0 %v260
    %3008 = vmatpush1.msra.mxu0 %v259
    %3009 = vmatprep.subr.mxu0 %v256
    %3010 = vmatpush1.msra.mxu0 %v255
    %3011 = vmatprep.subr.mxu0 %v252
    %3012 = vmatpush1.msra.mxu0 %v251
    %3013 = vmatprep.subr.mxu0 %v248
    %3014 = vmatpush1.msra.mxu0 %v247
    %3015 = vmatprep.subr.mxu0 %v244
    %3016 = vmatpush1.msra.mxu0 %v243
    %3017 = vmatprep.subr.mxu0 %v240
    %3018 = vmatpush1.msra.mxu0 %v239
    %3019 = vmatprep.subr.mxu0 %v236
    %3020 = vmatpush1.msra.mxu0 %v235
    %3021 = vmatprep.subr.mxu0 %v232
    %3022 = vmatpush1.msra.mxu0 %v231
    %3023 = vmatprep.subr.mxu0 %v228
    %3024 = vmatpush1.msra.mxu0 %v227
    %3025 = vmatprep.subr.mxu0 %v352
    %3026 = vmatpush2.msra.mxu0 %v351
    %3027 = vmatprep.subr.mxu0 %v348
    %3028 = vmatpush2.msra.mxu0 %v347
    %3029 = vmatprep.subr.mxu0 %v344
    %3030 = vmatpush2.msra.mxu0 %v343
    %3031 = vmatprep.subr.mxu0 %v340
    %3032 = vmatpush2.msra.mxu0 %v339
    %3033 = vmatprep.subr.mxu0 %v336
    %3034 = vmatpush2.msra.mxu0 %v335
    %3035 = vmatprep.subr.mxu0 %v332
    %3036 = vmatpush2.msra.mxu0 %v331
    %3037 = vmatprep.subr.mxu0 %v328
    %3038 = vmatpush2.msra.mxu0 %v327
    %3039 = vmatprep.subr.mxu0 %v324
    %3040 = vmatpush2.msra.mxu0 %v323
    %3041 = vmatprep.subr.mxu0 %v320
    %3042 = vmatpush2.msra.mxu0 %v319
    %3043 = vmatprep.subr.mxu0 %v316
    %3044 = vmatpush2.msra.mxu0 %v315
    %3045 = vmatprep.subr.mxu0 %v312
    %3046 = vmatpush2.msra.mxu0 %v311
    %3047 = vmatprep.subr.mxu0 %v308
    %3048 = vmatpush2.msra.mxu0 %v307
    %3049 = vmatprep.subr.mxu0 %v304
    %3050 = vmatpush2.msra.mxu0 %v303
    %3051 = vmatprep.subr.mxu0 %v300
    %3052 = vmatpush2.msra.mxu0 %v299
    %3053 = vmatprep.subr.mxu0 %v296
    %3054 = vmatpush2.msra.mxu0 %v295
    %3055 = vmatprep.subr.mxu0 %v292
    %3056 = vmatpush2.msra.mxu0 %v291
    %3057 = vmatprep.mubr.f32.mxu0 %v2750
    %3058 = vmatmul.mubr.f32.gmra.mxu0 %v2921
    %v3059 = vpop.f32.mrf.mxu0
    %v3060 = vadd.f32 %v388, %v3059
    %v3061 = vpop.f32.mrf.mxu0
    %v3062 = vadd.f32 %v392, %v3061
    %3063 = vdwg.mxu0
    %v3064 = vxor.u32 %v2989, 2147483648
    %v3065 = vmul.f32 %v3064, 1.442695
    %v3066 = vpow.pop %v3065
    %v3067 = vadd.f32 %v3066, 1.0
    %v3068 = vrcp.pop %v3067
    %v3069 = vmul.f32 1.0, %v3068
    %v3070 = vxor.u32 %v2991, 2147483648
    %v3071 = vmul.f32 %v3070, 1.442695
    %v3072 = vpow.pop %v3071
    %v3073 = vadd.f32 %v3072, 1.0
    %v3074 = vrcp.pop %v3073
    %v3075 = vmul.f32 1.0, %v3074
    %v3076 = vtanh.pop %v3060
    %v3077 = vxor.u32 %v3062, 2147483648
    %v3078 = vmul.f32 %v3077, 1.442695
    %v3079 = vpow.pop %v3078
    %v3080 = vadd.f32 %v3079, 1.0
    %v3081 = vrcp.pop %v3080
    %v3082 = vmul.f32 1.0, %v3081
    %v3083 = vmul.f32 %v3075, %v2748
    %v3084 = vmul.f32 %v3069, %v3076
    %v3085 = vadd.f32 %v3083, %v3084
    %v3086 = vtanh.pop %v3085
    %v3087 = vmul.f32 %v3082, %v3086
    %v3088 = vadd.f32 %v2921, %v3087
    %s3089 = scalar_lea.vmem [#allocation10], 56
    %3090 = vst [vmem:[%s3089] sm:$0xff] %v3088
    %v3091 = vld [vmem:[#allocation10] sm:$0xff]
    %v3092 = vld [vmem:[#allocation10 + $0x8] sm:$0xff]
    %v3093 = vld [vmem:[#allocation10 + $0x10] sm:$0xff]
    %v3094 = vld [vmem:[#allocation10 + $0x18] sm:$0xff]
    %v3095 = vld [vmem:[#allocation10 + $0x20] sm:$0xff]
    %v3096 = vld [vmem:[#allocation10 + $0x28] sm:$0xff]
    %v3097 = vld [vmem:[#allocation10 + $0x30] sm:$0xff]
    %v3098 = vld [vmem:[#allocation10 + $0x38] sm:$0xff]
    %v3099 = vld [vmem:[%s10] sm:$0xff]
    %v3100 = vld [vmem:[%s10 + $0x8] sm:$0xff]
    %v3101 = vld [vmem:[%s10 + $0x10] sm:$0xff]
    %v3102 = vld [vmem:[%s10 + $0x18] sm:$0xff]
    %v3103 = vld [vmem:[%s10 + $0x20] sm:$0xff]
    %v3104 = vld [vmem:[%s10 + $0x28] sm:$0xff]
    %v3105 = vld [vmem:[%s10 + $0x30] sm:$0xff]
    %v3106 = vld [vmem:[%s10 + $0x38] sm:$0xff]
    %v3107 = vld [vmem:[#allocation7] sm:$0xff]
    %v3108 = vld [vmem:[#allocation7 + $0x8] sm:$0xff]
    %v3109 = vld [vmem:[#allocation7 + $0x10] sm:$0xff]
    %v3110 = vld [vmem:[#allocation7 + $0x18] sm:$0xff]
    %v3111 = vld [vmem:[#allocation7 + $0x20] sm:$0xff]
    %v3112 = vld [vmem:[#allocation7 + $0x28] sm:$0xff]
    %v3113 = vld [vmem:[#allocation7 + $0x30] sm:$0xff]
    %v3114 = vld [vmem:[#allocation7 + $0x38] sm:$0xff]
    %v3115 = vld [vmem:[#allocation7 + $0x40] sm:$0xff]
    %v3116 = vld [vmem:[#allocation7 + $0x48] sm:$0xff]
    %v3117 = vld [vmem:[#allocation7 + $0x50] sm:$0xff]
    %v3118 = vld [vmem:[#allocation7 + $0x58] sm:$0xff]
    %v3119 = vld [vmem:[#allocation7 + $0x60] sm:$0xff]
    %v3120 = vld [vmem:[#allocation7 + $0x68] sm:$0xff]
    %v3121 = vld [vmem:[#allocation7 + $0x70] sm:$0xff]
    %v3122 = vld [vmem:[#allocation7 + $0x78] sm:$0xff]
    %3123 = vmatprep.subr.mxu0 0.0
    %3124 = vmatpush1.msra.mxu0 %v3122
    %3125 = vmatprep.subr.mxu0 0.0
    %3126 = vmatpush1.msra.mxu0 %v3121
    %3127 = vmatprep.subr.mxu0 0.0
    %3128 = vmatpush1.msra.mxu0 %v3120
    %3129 = vmatprep.subr.mxu0 0.0
    %3130 = vmatpush1.msra.mxu0 %v3119
    %3131 = vmatprep.subr.mxu0 0.0
    %3132 = vmatpush1.msra.mxu0 %v3118
    %3133 = vmatprep.subr.mxu0 0.0
    %3134 = vmatpush1.msra.mxu0 %v3117
    %3135 = vmatprep.subr.mxu0 0.0
    %3136 = vmatpush1.msra.mxu0 %v3116
    %3137 = vmatprep.subr.mxu0 0.0
    %3138 = vmatpush1.msra.mxu0 %v3115
    %3139 = vmatprep.subr.mxu0 0.0
    %3140 = vmatpush1.msra.mxu0 %v3114
    %3141 = vmatprep.subr.mxu0 0.0
    %3142 = vmatpush1.msra.mxu0 %v3113
    %3143 = vmatprep.subr.mxu0 0.0
    %3144 = vmatpush1.msra.mxu0 %v3112
    %3145 = vmatprep.subr.mxu0 0.0
    %3146 = vmatpush1.msra.mxu0 %v3111
    %3147 = vmatprep.subr.mxu0 0.0
    %3148 = vmatpush1.msra.mxu0 %v3110
    %3149 = vmatprep.subr.mxu0 0.0
    %3150 = vmatpush1.msra.mxu0 %v3109
    %3151 = vmatprep.subr.mxu0 0.0
    %3152 = vmatpush1.msra.mxu0 %v3108
    %3153 = vmatprep.subr.mxu0 0.0
    %3154 = vmatpush1.msra.mxu0 %v3107
    %3155 = vmatprep.subr.mxu0 0.0
    %3156 = vmatpush2.msra.mxu0 0.0
    %3157 = vmatprep.subr.mxu0 0.0
    %3158 = vmatpush2.msra.mxu0 0.0
    %3159 = vmatprep.subr.mxu0 0.0
    %3160 = vmatpush2.msra.mxu0 0.0
    %3161 = vmatprep.subr.mxu0 0.0
    %3162 = vmatpush2.msra.mxu0 0.0
    %3163 = vmatprep.subr.mxu0 0.0
    %3164 = vmatpush2.msra.mxu0 0.0
    %3165 = vmatprep.subr.mxu0 0.0
    %3166 = vmatpush2.msra.mxu0 0.0
    %3167 = vmatprep.subr.mxu0 0.0
    %3168 = vmatpush2.msra.mxu0 0.0
    %3169 = vmatprep.subr.mxu0 0.0
    %3170 = vmatpush2.msra.mxu0 0.0
    %3171 = vmatprep.subr.mxu0 0.0
    %3172 = vmatpush2.msra.mxu0 0.0
    %3173 = vmatprep.subr.mxu0 0.0
    %3174 = vmatpush2.msra.mxu0 0.0
    %3175 = vmatprep.subr.mxu0 0.0
    %3176 = vmatpush2.msra.mxu0 0.0
    %3177 = vmatprep.subr.mxu0 0.0
    %3178 = vmatpush2.msra.mxu0 0.0
    %3179 = vmatprep.subr.mxu0 0.0
    %3180 = vmatpush2.msra.mxu0 0.0
    %3181 = vmatprep.subr.mxu0 0.0
    %3182 = vmatpush2.msra.mxu0 0.0
    %3183 = vmatprep.subr.mxu0 0.0
    %3184 = vmatpush2.msra.mxu0 0.0
    %3185 = vmatprep.subr.mxu0 0.0
    %3186 = vmatpush2.msra.mxu0 0.0
    %3187 = vmatprep.mubr.f32.mxu0 0.0
    %3188 = vmatmul.mubr.f32.gmra.mxu0 %v3091
    %v3189 = vpop.f32.mrf.mxu0
    %v3190 = vadd.f32 0.0, %v3189
    %v3191 = vpop.f32.mrf.mxu0
    %3192 = vmatprep.mubr.f32.mxu0 0.0
    %3193 = vmatmul.mubr.f32.gmra.mxu0 %v3092
    %v3194 = vpop.f32.mrf.mxu0
    %v3195 = vadd.f32 0.0, %v3194
    %v3196 = vpop.f32.mrf.mxu0
    %3197 = vmatprep.mubr.f32.mxu0 0.0
    %3198 = vmatmul.mubr.f32.gmra.mxu0 %v3093
    %v3199 = vpop.f32.mrf.mxu0
    %v3200 = vadd.f32 0.0, %v3199
    %v3201 = vpop.f32.mrf.mxu0
    %3202 = vmatprep.mubr.f32.mxu0 0.0
    %3203 = vmatmul.mubr.f32.gmra.mxu0 %v3094
    %v3204 = vpop.f32.mrf.mxu0
    %v3205 = vadd.f32 0.0, %v3204
    %v3206 = vpop.f32.mrf.mxu0
    %3207 = vmatprep.mubr.f32.mxu0 0.0
    %3208 = vmatmul.mubr.f32.gmra.mxu0 %v3095
    %v3209 = vpop.f32.mrf.mxu0
    %v3210 = vadd.f32 0.0, %v3209
    %v3211 = vpop.f32.mrf.mxu0
    %3212 = vmatprep.mubr.f32.mxu0 0.0
    %3213 = vmatmul.mubr.f32.gmra.mxu0 %v3096
    %v3214 = vpop.f32.mrf.mxu0
    %v3215 = vadd.f32 0.0, %v3214
    %v3216 = vpop.f32.mrf.mxu0
    %3217 = vmatprep.mubr.f32.mxu0 0.0
    %3218 = vmatmul.mubr.f32.gmra.mxu0 %v3097
    %v3219 = vpop.f32.mrf.mxu0
    %v3220 = vadd.f32 0.0, %v3219
    %v3221 = vpop.f32.mrf.mxu0
    %3222 = vmatprep.mubr.f32.mxu0 0.0
    %3223 = vmatmul.mubr.f32.gmra.mxu0 %v3098
    %v3224 = vpop.f32.mrf.mxu0
    %v3225 = vadd.f32 0.0, %v3224
    %v3226 = vpop.f32.mrf.mxu0
    %3227 = vdwg.mxu0
    %3229 = vset.pattern.permute.xlu0 0
    %3230 = vperm.xlu0 %3229, %v3099
    %v3231 = vpop.permute.xlu0 %3230
    %3234 = vset.pattern.permute.xlu0 0
    %3235 = vperm.xlu0 %3234, %v3100
    %v3236 = vpop.permute.xlu0 %3235
    %3239 = vset.pattern.permute.xlu0 0
    %3240 = vperm.xlu0 %3239, %v3101
    %v3241 = vpop.permute.xlu0 %3240
    %3244 = vset.pattern.permute.xlu0 0
    %3245 = vperm.xlu0 %3244, %v3102
    %v3246 = vpop.permute.xlu0 %3245
    %3249 = vset.pattern.permute.xlu0 0
    %3250 = vperm.xlu0 %3249, %v3103
    %v3251 = vpop.permute.xlu0 %3250
    %3254 = vset.pattern.permute.xlu0 0
    %3255 = vperm.xlu0 %3254, %v3104
    %v3256 = vpop.permute.xlu0 %3255
    %3259 = vset.pattern.permute.xlu0 0
    %3260 = vperm.xlu0 %3259, %v3105
    %v3261 = vpop.permute.xlu0 %3260
    %3264 = vset.pattern.permute.xlu0 0
    %3265 = vperm.xlu0 %3264, %v3106
    %v3266 = vpop.permute.xlu0 %3265
    %v3268 = vmul.f32 %v3190, %v3231
    %v3269 = vmul.f32 %v3195, %v3236
    %v3270 = vmul.f32 %v3200, %v3241
    %v3271 = vmul.f32 %v3205, %v3246
    %v3272 = vmul.f32 %v3210, %v3251
    %v3273 = vmul.f32 %v3215, %v3256
    %v3274 = vmul.f32 %v3220, %v3261
    %v3275 = vmul.f32 %v3225, %v3266
    %v3276 = vadd.f32 %v3268, %v3269
    %v3277 = vadd.f32 %v3276, %v3270
    %v3278 = vadd.f32 %v3277, %v3271
    %v3279 = vadd.f32 %v3278, %v3272
    %v3280 = vadd.f32 %v3279, %v3273
    %v3281 = vadd.f32 %v3280, %v3274
    %v3282 = vadd.f32 %v3281, %v3275
    %v3283 = vrot.slane %v3282, 4
    %v3284 = vadd.f32 %v3282, %v3283
    %v3285 = vrot.slane %v3284, 2
    %v3286 = vadd.f32 %v3284, %v3285
    %v3287 = vrot.slane %v3286, 1
    %v3288 = vadd.f32 %v3286, %v3287
    %v3289 = vmul.f32 %v3288, 0.03125
    %v3290 = vsub.f32 %v3190, %v3289
    %v3291 = vsub.f32 %v3195, %v3289
    %v3292 = vsub.f32 %v3200, %v3289
    %v3293 = vsub.f32 %v3205, %v3289
    %v3294 = vsub.f32 %v3210, %v3289
    %v3295 = vsub.f32 %v3215, %v3289
    %v3296 = vsub.f32 %v3220, %v3289
    %v3297 = vsub.f32 %v3225, %v3289
    %v3298 = vmul.f32 %v3290, %v3231
    %v3299 = vmul.f32 %v3291, %v3236
    %v3300 = vmul.f32 %v3292, %v3241
    %v3301 = vmul.f32 %v3293, %v3246
    %v3302 = vmul.f32 %v3294, %v3251
    %v3303 = vmul.f32 %v3295, %v3256
    %v3304 = vmul.f32 %v3296, %v3261
    %v3305 = vmul.f32 %v3297, %v3266
    %v3306 = vmul.f32 %v3298, %v3298
    %v3307 = vmul.f32 %v3299, %v3299
    %v3308 = vmul.f32 %v3300, %v3300
    %v3309 = vmul.f32 %v3301, %v3301
    %v3310 = vmul.f32 %v3302, %v3302
    %v3311 = vmul.f32 %v3303, %v3303
    %v3312 = vmul.f32 %v3304, %v3304
    %v3313 = vmul.f32 %v3305, %v3305
    %v3314 = vadd.f32 %v3306, %v3307
    %v3315 = vadd.f32 %v3314, %v3308
    %v3316 = vadd.f32 %v3315, %v3309
    %v3317 = vadd.f32 %v3316, %v3310
    %v3318 = vadd.f32 %v3317, %v3311
    %v3319 = vadd.f32 %v3318, %v3312
    %v3320 = vadd.f32 %v3319, %v3313
    %v3321 = vrot.slane %v3320, 4
    %v3322 = vadd.f32 %v3320, %v3321
    %v3323 = vrot.slane %v3322, 2
    %v3324 = vadd.f32 %v3322, %v3323
    %v3325 = vrot.slane %v3324, 1
    %v3326 = vadd.f32 %v3324, %v3325
    %v3327 = vmul.f32 %v3326, 0.03125
    %v3328 = vadd.f32 %v3327, 1e-05
    %v3329 = vrsqrt.pop %v3328
    %v3330 = vmul.f32 %v3290, %v3329
    %v3331 = vmul.f32 %v3291, %v3329
    %v3332 = vmul.f32 %v3292, %v3329
    %v3333 = vmul.f32 %v3293, %v3329
    %v3334 = vmul.f32 %v3294, %v3329
    %v3335 = vmul.f32 %v3295, %v3329
    %v3336 = vmul.f32 %v3296, %v3329
    %v3337 = vmul.f32 %v3297, %v3329
    %v3338 = vld [vmem:[%s6] sm:$0x1]
    %v3340 = vlaneseq
    %v3341 = vshrl.u32 %v3340, 7
    %v3342 = vsub.s32 0, %v3341
    %v3343 = vrot.slane %v3338, %v3342
    %v3345 = vmul.f32 %v3330, %v3343
    %v3346 = vmul.f32 %v3331, %v3343
    %v3347 = vmul.f32 %v3332, %v3343
    %v3348 = vmul.f32 %v3333, %v3343
    %v3349 = vmul.f32 %v3334, %v3343
    %v3350 = vmul.f32 %v3335, %v3343
    %v3351 = vmul.f32 %v3336, %v3343
    %v3352 = vmul.f32 %v3337, %v3343
    %v3353 = vld [vmem:[%s7] sm:$0x1]
    %v3355 = vlaneseq
    %v3356 = vshrl.u32 %v3355, 7
    %v3357 = vsub.s32 0, %v3356
    %v3358 = vrot.slane %v3353, %v3357
    %v3360 = vadd.f32 %v3345, %v3358
    %v3361 = vadd.f32 %v3346, %v3358
    %v3362 = vadd.f32 %v3347, %v3358
    %v3363 = vadd.f32 %v3348, %v3358
    %v3364 = vadd.f32 %v3349, %v3358
    %v3365 = vadd.f32 %v3350, %v3358
    %v3366 = vadd.f32 %v3351, %v3358
    %v3367 = vadd.f32 %v3352, %v3358
    %v3368 = vmax.f32 %v3360, 0.0
    %v3369 = vmax.f32 %v3361, 0.0
    %v3370 = vmax.f32 %v3362, 0.0
    %v3371 = vmax.f32 %v3363, 0.0
    %v3372 = vmax.f32 %v3364, 0.0
    %v3373 = vmax.f32 %v3365, 0.0
    %v3374 = vmax.f32 %v3366, 0.0
    %v3375 = vmax.f32 %v3367, 0.0
    %v3376 = vld [vmem:[#allocation8] sm:$0xff]
    %v3377 = vld [vmem:[#allocation8 + $0x8] sm:$0xff]
    %v3378 = vld [vmem:[#allocation8 + $0x10] sm:$0xff]
    %v3379 = vld [vmem:[#allocation8 + $0x18] sm:$0xff]
    %v3380 = vld [vmem:[#allocation8 + $0x20] sm:$0xff]
    %v3381 = vld [vmem:[#allocation8 + $0x28] sm:$0xff]
    %v3382 = vld [vmem:[#allocation8 + $0x30] sm:$0xff]
    %v3383 = vld [vmem:[#allocation8 + $0x38] sm:$0xff]
    %v3384 = vld [vmem:[#allocation8 + $0x40] sm:$0xff]
    %v3385 = vld [vmem:[#allocation8 + $0x48] sm:$0xff]
    %v3386 = vld [vmem:[#allocation8 + $0x50] sm:$0xff]
    %v3387 = vld [vmem:[#allocation8 + $0x58] sm:$0xff]
    %v3388 = vld [vmem:[#allocation8 + $0x60] sm:$0xff]
    %v3389 = vld [vmem:[#allocation8 + $0x68] sm:$0xff]
    %v3390 = vld [vmem:[#allocation8 + $0x70] sm:$0xff]
    %v3391 = vld [vmem:[#allocation8 + $0x78] sm:$0xff]
    %v3392 = vld [vmem:[%s9] sm:$0x1]
    %v3394 = vlaneseq
    %v3395 = vshrl.u32 %v3394, 7
    %v3396 = vsub.s32 0, %v3395
    %v3397 = vrot.slane %v3392, %v3396
    %3399 = vmatprep.subr.mxu0 0.0
    %3400 = vmatpush1.msra.mxu0 %v3391
    %3401 = vmatprep.subr.mxu0 0.0
    %3402 = vmatpush1.msra.mxu0 %v3390
    %3403 = vmatprep.subr.mxu0 0.0
    %3404 = vmatpush1.msra.mxu0 %v3389
    %3405 = vmatprep.subr.mxu0 0.0
    %3406 = vmatpush1.msra.mxu0 %v3388
    %3407 = vmatprep.subr.mxu0 0.0
    %3408 = vmatpush1.msra.mxu0 %v3387
    %3409 = vmatprep.subr.mxu0 0.0
    %3410 = vmatpush1.msra.mxu0 %v3386
    %3411 = vmatprep.subr.mxu0 0.0
    %3412 = vmatpush1.msra.mxu0 %v3385
    %3413 = vmatprep.subr.mxu0 0.0
    %3414 = vmatpush1.msra.mxu0 %v3384
    %3415 = vmatprep.subr.mxu0 0.0
    %3416 = vmatpush1.msra.mxu0 %v3383
    %3417 = vmatprep.subr.mxu0 0.0
    %3418 = vmatpush1.msra.mxu0 %v3382
    %3419 = vmatprep.subr.mxu0 0.0
    %3420 = vmatpush1.msra.mxu0 %v3381
    %3421 = vmatprep.subr.mxu0 0.0
    %3422 = vmatpush1.msra.mxu0 %v3380
    %3423 = vmatprep.subr.mxu0 0.0
    %3424 = vmatpush1.msra.mxu0 %v3379
    %3425 = vmatprep.subr.mxu0 0.0
    %3426 = vmatpush1.msra.mxu0 %v3378
    %3427 = vmatprep.subr.mxu0 0.0
    %3428 = vmatpush1.msra.mxu0 %v3377
    %3429 = vmatprep.subr.mxu0 0.0
    %3430 = vmatpush1.msra.mxu0 %v3376
    %3431 = vmatprep.subr.mxu0 0.0
    %3432 = vmatpush2.msra.mxu0 0.0
    %3433 = vmatprep.subr.mxu0 0.0
    %3434 = vmatpush2.msra.mxu0 0.0
    %3435 = vmatprep.subr.mxu0 0.0
    %3436 = vmatpush2.msra.mxu0 0.0
    %3437 = vmatprep.subr.mxu0 0.0
    %3438 = vmatpush2.msra.mxu0 0.0
    %3439 = vmatprep.subr.mxu0 0.0
    %3440 = vmatpush2.msra.mxu0 0.0
    %3441 = vmatprep.subr.mxu0 0.0
    %3442 = vmatpush2.msra.mxu0 0.0
    %3443 = vmatprep.subr.mxu0 0.0
    %3444 = vmatpush2.msra.mxu0 0.0
    %3445 = vmatprep.subr.mxu0 0.0
    %3446 = vmatpush2.msra.mxu0 0.0
    %3447 = vmatprep.subr.mxu0 0.0
    %3448 = vmatpush2.msra.mxu0 0.0
    %3449 = vmatprep.subr.mxu0 0.0
    %3450 = vmatpush2.msra.mxu0 0.0
    %3451 = vmatprep.subr.mxu0 0.0
    %3452 = vmatpush2.msra.mxu0 0.0
    %3453 = vmatprep.subr.mxu0 0.0
    %3454 = vmatpush2.msra.mxu0 0.0
    %3455 = vmatprep.subr.mxu0 0.0
    %3456 = vmatpush2.msra.mxu0 0.0
    %3457 = vmatprep.subr.mxu0 0.0
    %3458 = vmatpush2.msra.mxu0 0.0
    %3459 = vmatprep.subr.mxu0 0.0
    %3460 = vmatpush2.msra.mxu0 0.0
    %3461 = vmatprep.subr.mxu0 0.0
    %3462 = vmatpush2.msra.mxu0 0.0
    %3463 = vmatprep.mubr.f32.mxu0 0.0
    %3464 = vmatmul.mubr.f32.gmra.mxu0 %v3368
    %v3465 = vpop.f32.mrf.mxu0
    %v3466 = vadd.f32 %v3397, %v3465
    %v3467 = vpop.f32.mrf.mxu0
    %3468 = vmatprep.mubr.f32.mxu0 0.0
    %3469 = vmatmul.mubr.f32.gmra.mxu0 %v3369
    %v3470 = vpop.f32.mrf.mxu0
    %v3471 = vadd.f32 %v3397, %v3470
    %v3472 = vpop.f32.mrf.mxu0
    %3473 = vmatprep.mubr.f32.mxu0 0.0
    %3474 = vmatmul.mubr.f32.gmra.mxu0 %v3370
    %v3475 = vpop.f32.mrf.mxu0
    %v3476 = vadd.f32 %v3397, %v3475
    %v3477 = vpop.f32.mrf.mxu0
    %3478 = vmatprep.mubr.f32.mxu0 0.0
    %3479 = vmatmul.mubr.f32.gmra.mxu0 %v3371
    %v3480 = vpop.f32.mrf.mxu0
    %v3481 = vadd.f32 %v3397, %v3480
    %v3482 = vpop.f32.mrf.mxu0
    %3483 = vmatprep.mubr.f32.mxu0 0.0
    %3484 = vmatmul.mubr.f32.gmra.mxu0 %v3372
    %v3485 = vpop.f32.mrf.mxu0
    %v3486 = vadd.f32 %v3397, %v3485
    %v3487 = vpop.f32.mrf.mxu0
    %3488 = vmatprep.mubr.f32.mxu0 0.0
    %3489 = vmatmul.mubr.f32.gmra.mxu0 %v3373
    %v3490 = vpop.f32.mrf.mxu0
    %v3491 = vadd.f32 %v3397, %v3490
    %v3492 = vpop.f32.mrf.mxu0
    %3493 = vmatprep.mubr.f32.mxu0 0.0
    %3494 = vmatmul.mubr.f32.gmra.mxu0 %v3374
    %v3495 = vpop.f32.mrf.mxu0
    %v3496 = vadd.f32 %v3397, %v3495
    %v3497 = vpop.f32.mrf.mxu0
    %3498 = vmatprep.mubr.f32.mxu0 0.0
    %3499 = vmatmul.mubr.f32.gmra.mxu0 %v3375
    %v3500 = vpop.f32.mrf.mxu0
    %v3501 = vadd.f32 %v3397, %v3500
    %v3502 = vpop.f32.mrf.mxu0
    %3503 = vdwg.mxu0
    %3504 = vst [vmem:[#allocation11] sm:$0xff] %v3466
    %3505 = vst [vmem:[#allocation11 + $0x8] sm:$0xff] %v3471
    %3506 = vst [vmem:[#allocation11 + $0x10] sm:$0xff] %v3476
    %3507 = vst [vmem:[#allocation11 + $0x18] sm:$0xff] %v3481
    %3508 = vst [vmem:[#allocation11 + $0x20] sm:$0xff] %v3486
    %3509 = vst [vmem:[#allocation11 + $0x28] sm:$0xff] %v3491
    %3510 = vst [vmem:[#allocation11 + $0x30] sm:$0xff] %v3496
    %3511 = vst [vmem:[#allocation11 + $0x38] sm:$0xff] %v3501
    // Predicated region
    $region62: #{tpu_custom_call.1} parent=1 // pred_check
      _
    $region63: #{tpu_custom_call.1} parent=1 // pred_check_branch
      %3513 = sbr.rel (0) target = $region65
    $region64: #{tpu_custom_call.1} parent=1 // pred_region
      %s3515 = ssub.s32 1024, 1024
      %3516 = vsyncadd [#allocation4], %s3515
      %s3517 = sshll.u32 [#allocation10], 4
      %s3518 = int_to_ptr.vmem [resolvable:$true] %s3517
      %3523 = dma.vmem_to_hbm [thread:$0]  %s3518, 1024, %s11, [#allocation4], 128, 128, 8
    $region65: #{tpu_custom_call.1} parent=1 // pred_fallthru
      _
    // Predicated region
    $region66: #{tpu_custom_call.1} parent=1 // pred_check
      _
    $region67: #{tpu_custom_call.1} parent=1 // pred_check_branch
      %3525 = sbr.rel (0) target = $region69
    $region68: #{tpu_custom_call.1} parent=1 // pred_region
      %s3527 = ssub.s32 1024, 1024
      %3528 = vsyncadd [#allocation12], %s3527
      %s3529 = sshll.u32 [#allocation11], 4
      %s3530 = int_to_ptr.vmem [resolvable:$true] %s3529
      %3535 = dma.vmem_to_hbm [thread:$0]  %s3530, 1024, %s12, [#allocation12], 128, 128, 8
    $region69: #{tpu_custom_call.1} parent=1 // pred_fallthru
      _
    // Predicated region
    $region70: #{tpu_custom_call.1} parent=1 // pred_check
      _
    $region71: #{tpu_custom_call.1} parent=1 // pred_check_branch
      %3537 = sbr.rel (0) target = $region73
    $region72: #{tpu_custom_call.1} parent=1 // pred_region
      %3538 = dma.done [#allocation4], 1024
    $region73: #{tpu_custom_call.1} parent=1 // pred_fallthru
      _
    // Predicated region
    $region74: #{tpu_custom_call.1} parent=1 // pred_check
      _
    $region75: #{tpu_custom_call.1} parent=1 // pred_check_branch
      %3540 = sbr.rel (0) target = $region77
    $region76: #{tpu_custom_call.1} parent=1 // pred_region
      %3541 = dma.done [#allocation12], 1024
    $region77: #{tpu_custom_call.1} parent=1 // pred_fallthru
      _
    %3542 = vsyncpa [#allocation3], 1
    %3543 = vsyncpa [#allocation6], 1
    %3544 = vsyncpa [#allocation9], 1
    %3545 = vsyncpa [#allocation4], 1
    %3546 = vsyncpa [#allocation12], 1

</llo_original>
